<compile_context>
chip_gen: v6e
topology: v6e:2x2x1
jax: 0.10.0
libtpu: 0.0.40
codegen_flags: <defaults>
</compile_context>

<pallas_src>
import functools
import math

import jax
import jax.numpy as jnp
from jax.experimental import pallas as pl
from jax.experimental.pallas import tpu as pltpu

SELU_ALPHA = 1.6732632423543772
SELU_SCALE = 1.0507009873554805
LN_EPS = 1e-5  # PyTorch nn.LayerNorm default


def _selu(x):
    return SELU_SCALE * jnp.where(x > 0, x, SELU_ALPHA * (jnp.exp(x) - 1.0))


def _layernorm(x, g, b):
    mu = jnp.mean(x, axis=-1, keepdims=True)
    var = jnp.mean((x - mu) ** 2, axis=-1, keepdims=True)
    return (x - mu) * jax.lax.rsqrt(var + LN_EPS) * g + b


def _bf16(x):
    return x.astype(jnp.bfloat16)


# ---------------------------------------------------------------------------
# One fused kernel: embed + L transformer layers + bond predictor.
# ---------------------------------------------------------------------------
def _fused_kernel(coord_ref, atom_ref,
                  ce_w1_ref, ce_b1_ref, ce_w2_ref, ce_b2_ref,
                  fus_wc_ref, fus_wa_ref, fus_b_ref,
                  wqkv_ref, bqkv_ref, wo_ref, bo_ref,
                  ln1g_ref, ln1b_ref,
                  ffw1_ref, ffb1_ref, ffw2_ref, ffb2_ref,
                  ln2g_ref, ln2b_ref,
                  bw1_ref, bb1_ref, bw2_ref, bb2_ref,
                  o_ref, *, num_layers, num_heads, batch, n_points):
    B, N = batch, n_points
    BN = B * N
    H = fus_b_ref.shape[-1]
    nh = num_heads
    hd = H // nh
    scale = 1.0 / math.sqrt(hd)
    f32 = jnp.float32

    # ---------------- embedding front-end ----------------
    # coord Linear(3, H/4): K=3 is a degenerate MXU shape -> 3 VPU FMAs.
    coords = coord_ref[...]                                    # (BN, 3) f32
    cw1 = ce_w1_ref[...]                                       # (3, H/4) f32
    c = (coords[:, 0:1] * cw1[0:1, :]
         + coords[:, 1:2] * cw1[1:2, :]
         + coords[:, 2:3] * cw1[2:3, :]) + ce_b1_ref[...]
    c = _selu(c)                                               # (BN, H/4)
    c = jnp.dot(_bf16(c), ce_w2_ref[...],
                preferred_element_type=f32) + ce_b2_ref[...]   # (BN, H/2)
    # fusion Linear on concat([coord_feat, atom_feat]) == split into 2 matmuls.
    pf = (jnp.dot(_bf16(c), fus_wc_ref[...], preferred_element_type=f32)
          + jnp.dot(_bf16(atom_ref[...]), fus_wa_ref[...],
                    preferred_element_type=f32)
          + fus_b_ref[...])
    x = _selu(pf)                                              # (BN, H) f32

    # ---------------- transformer layers -----------------
    # L is static & small -> unrolled loop, static indexing of stacked weights.
    for l in range(num_layers):
        # Combined QKV projection: one lane-dense (H, 3H) bf16 matmul.
        qkv = jnp.dot(_bf16(x), wqkv_ref[l],
                      preferred_element_type=f32) + bqkv_ref[l]     # (BN, 3H)
        head_out = []
        for h in range(nh):
            # Per-head score/context matmuls are inherently K=hd=8; negligible
            # MXU work at this size (acknowledged lane-utilization limit).
            qh = _bf16(qkv[:, h * hd:(h + 1) * hd]).reshape(B, N, hd)
            kh = _bf16(qkv[:, H + h * hd:H + (h + 1) * hd]).reshape(B, N, hd)
            vh = _bf16(qkv[:, 2 * H + h * hd:2 * H + (h + 1) * hd]).reshape(B, N, hd)
            s = jnp.einsum("bqd,bkd->bqk", qh, kh,
                           preferred_element_type=f32) * scale      # (B, N, N)
            s = s - jnp.max(s, axis=-1, keepdims=True)               # f32 stats
            p = jnp.exp(s)
            p = p * pl.reciprocal(jnp.sum(p, axis=-1, keepdims=True),
                                  approx=True)
            oh = jnp.einsum("bqk,bkd->bqd", _bf16(p), vh,
                            preferred_element_type=f32)              # (B, N, hd)
            head_out.append(oh.reshape(BN, hd))
        # Combined output projection: concat heads -> one (H, H) matmul.
        attn = jnp.concatenate(head_out, axis=-1)                    # (BN, H)
        attn = jnp.dot(_bf16(attn), wo_ref[l],
                       preferred_element_type=f32) + bo_ref[l]
        x = _layernorm(x + attn, ln1g_ref[l], ln1b_ref[l])           # res + LN1
        ff = _selu(jnp.dot(_bf16(x), ffw1_ref[l],
                           preferred_element_type=f32) + ffb1_ref[l])
        ff = jnp.dot(_bf16(ff), ffw2_ref[l],
                     preferred_element_type=f32) + ffb2_ref[l]
        x = _layernorm(x + ff, ln2g_ref[l], ln2b_ref[l])             # res + LN2

    # ---------------- bond predictor ----------------------
    # concat(f_i, f_j) @ W1 == f_i @ W1[:H] + f_j @ W1[H:]; both halves via a
    # single (H, 2H) matmul, then a broadcast add over the (i, j) pair grid.
    ab = jnp.dot(_bf16(x), bw1_ref[...], preferred_element_type=f32)  # (BN, 2H)
    ai = ab[:, :H].reshape(B, N, H)
    aj = ab[:, H:].reshape(B, N, H)
    hp = _selu(ai[:, :, None, :] + aj[:, None, :, :] + bb1_ref[...])  # (B,N,N,H)
    logits = (jnp.dot(_bf16(hp.reshape(BN * N, H)), bw2_ref[...],
                      preferred_element_type=f32) + bb2_ref[...])     # (BN*N, nb)
    # Final reshape done in-kernel; output written once, exactly (B,N,N,nb).
    o_ref[...] = logits.reshape(B, N, N, logits.shape[-1])


def _full_block_spec(x):
    ndim = x.ndim

    def index_map(b):
        return (0,) * ndim

    return pl.BlockSpec(x.shape, index_map)


def fused_forward(coords2d, atom2d, params, *, batch, n_points, num_heads,
                  num_layers, num_bond_types):
    operands = (
        coords2d, atom2d,
        params["ce_w1"], params["ce_b1"], params["ce_w2"], params["ce_b2"],
        params["fus_wc"], params["fus_wa"], params["fus_b"],
        params["wqkv"], params["bqkv"], params["wo"], params["bo"],
        params["ln1_g"], params["ln1_b"],
        params["ff_w1"], params["ff_b1"], params["ff_w2"], params["ff_b2"],
        params["ln2_g"], params["ln2_b"],
        params["bp_w1"], params["bp_b1"], params["bp_w2"], params["bp_b2"],
    )
    kernel = functools.partial(_fused_kernel, num_layers=num_layers,
                               num_heads=num_heads, batch=batch,
                               n_points=n_points)
    out_shape = jax.ShapeDtypeStruct(
        (batch, n_points, n_points, num_bond_types), jnp.float32)
    return pl.pallas_call(
        kernel,
        out_shape=out_shape,
        grid=(1,),  # single step: whole batch in one VMEM-resident invocation
        in_specs=[_full_block_spec(x) for x in operands],
        out_specs=pl.BlockSpec(out_shape.shape, lambda b: (0, 0, 0, 0)),
        compiler_params=pltpu.CompilerParams(
            dimension_semantics=("arbitrary",)),
    )(*operands)


# ---------------------------------------------------------------------------
# Parameter init: weights generated directly in the kernel layouts (combined
# QKV, split fusion weight, split bond W1, stacked over layers, bf16 matmul
# weights) so no re-layout ops run inside the jitted forward.
# ---------------------------------------------------------------------------
def init_params(key, hidden_dim, num_heads, num_layers, num_bond_types,
                num_atom_types):
    H = hidden_dim
    L = num_layers
    f32 = jnp.float32
    keys = iter(jax.random.split(key, 32))

    def w(shape, dtype=jnp.bfloat16, scale=0.05):
        return (scale * jax.random.normal(next(keys), shape,
                                          dtype=f32)).astype(dtype)

    return {
        # embedding lookup table (gathered outside the kernel)
        "atom_emb": w((num_atom_types, H // 2), f32),
        # coord MLP (first layer stays f32 -> VPU path in-kernel)
        "ce_w1": w((3, H // 4), f32),
        "ce_b1": w((1, H // 4), f32),
        "ce_w2": w((H // 4, H // 2)),
        "ce_b2": w((1, H // 2), f32),
        # fusion layer, pre-split into coord-half / atom-half of the
        # concat([coord_feat, atom_feat]) weight
        "fus_wc": w((H // 2, H)),
        "fus_wa": w((H // 2, H)),
        "fus_b": w((1, H), f32),
        # transformer layers, stacked over L; combined QKV weight (H, 3H)
        "wqkv": w((L, H, 3 * H)),
        "bqkv": w((L, 1, 3 * H), f32),
        "wo": w((L, H, H)),
        "bo": w((L, 1, H), f32),
        "ln1_g": jnp.ones((L, 1, H), f32),
        "ln1_b": jnp.zeros((L, 1, H), f32),
        "ff_w1": w((L, H, 4 * H)),
        "ff_b1": w((L, 1, 4 * H), f32),
        "ff_w2": w((L, 4 * H, H)),
        "ff_b2": w((L, 1, H), f32),
        "ln2_g": jnp.ones((L, 1, H), f32),
        "ln2_b": jnp.zeros((L, 1, H), f32),
        # bond predictor: W1 stored as [W_i | W_j] -> (H, 2H), final (H, nb)
        "bp_w1": w((H, 2 * H)),
        "bp_b1": w((1, H), f32),
        "bp_w2": w((H, num_bond_types)),
        "bp_b2": w((1, num_bond_types), f32),
    }


def forward(params, coordinates, atom_types, *, num_heads):
    if coordinates.ndim != 3:
        coordinates = coordinates[None, ...]
    if atom_types.ndim != 2:
        atom_types = atom_types[None, ...]
    B, N, _ = coordinates.shape
    H = params["fus_b"].shape[-1]
    num_layers = params["wqkv"].shape[0]
    num_bond_types = params["bp_b2"].shape[-1]

    # Atom-type embedding lookup is a gather -> trace-time XLA glue (tiny).
    atom_feat = jnp.take(params["atom_emb"], atom_types, axis=0)   # (B, N, H/2)

    return fused_forward(
        coordinates.reshape(B * N, 3).astype(jnp.float32),
        atom_feat.reshape(B * N, H // 2),
        params, batch=B, n_points=N, num_heads=num_heads,
        num_layers=num_layers, num_bond_types=num_bond_types)


if __name__ == "__main__":
    HIDDEN_DIM = 32
    NUM_HEADS = 4
    NUM_LAYERS = 2
    NUM_BOND_TYPES = 5
    NUM_ATOM_TYPES = 20
    B, N = 2, 8

    key = jax.random.PRNGKey(0)
    k_par, k_coord, k_atom = jax.random.split(key, 3)

    params = init_params(k_par, HIDDEN_DIM, NUM_HEADS, NUM_LAYERS,
                         NUM_BOND_TYPES, NUM_ATOM_TYPES)
    coordinates = jax.random.normal(k_coord, (B, N, 3), dtype=jnp.float32)
    atom_types = jax.random.randint(k_atom, (B, N), 0, NUM_ATOM_TYPES,
                                    dtype=jnp.int32)

    fwd = jax.jit(functools.partial(forward, num_heads=NUM_HEADS))
    bond_logits = fwd(params, coordinates, atom_types)
    jax.block_until_ready(bond_logits)

    assert bond_logits.shape == (B, N, N, NUM_BOND_TYPES)
    assert bond_logits.dtype == jnp.float32
    print("KERNEL_OK")
</pallas_src>

<mosaic_0001>
module attributes {stable_mosaic.version = 11 : i64} {
  func.func @_fused_kernel(%arg0: i32, %arg1: memref<16x3xf32, #tpu.memory_space<vmem>>, %arg2: memref<16x16xf32, #tpu.memory_space<vmem>>, %arg3: memref<3x8xf32, #tpu.memory_space<vmem>>, %arg4: memref<1x8xf32, #tpu.memory_space<vmem>>, %arg5: memref<8x16xbf16, #tpu.memory_space<vmem>>, %arg6: memref<1x16xf32, #tpu.memory_space<vmem>>, %arg7: memref<16x32xbf16, #tpu.memory_space<vmem>>, %arg8: memref<16x32xbf16, #tpu.memory_space<vmem>>, %arg9: memref<1x32xf32, #tpu.memory_space<vmem>>, %arg10: memref<2x32x96xbf16, #tpu.memory_space<vmem>>, %arg11: memref<2x1x96xf32, #tpu.memory_space<vmem>>, %arg12: memref<2x32x32xbf16, #tpu.memory_space<vmem>>, %arg13: memref<2x1x32xf32, #tpu.memory_space<vmem>>, %arg14: memref<2x1x32xf32, #tpu.memory_space<vmem>>, %arg15: memref<2x1x32xf32, #tpu.memory_space<vmem>>, %arg16: memref<2x32x128xbf16, #tpu.memory_space<vmem>>, %arg17: memref<2x1x128xf32, #tpu.memory_space<vmem>>, %arg18: memref<2x128x32xbf16, #tpu.memory_space<vmem>>, %arg19: memref<2x1x32xf32, #tpu.memory_space<vmem>>, %arg20: memref<2x1x32xf32, #tpu.memory_space<vmem>>, %arg21: memref<2x1x32xf32, #tpu.memory_space<vmem>>, %arg22: memref<32x64xbf16, #tpu.memory_space<vmem>>, %arg23: memref<1x32xf32, #tpu.memory_space<vmem>>, %arg24: memref<32x5xbf16, #tpu.memory_space<vmem>>, %arg25: memref<1x5xf32, #tpu.memory_space<vmem>>, %arg26: memref<2x8x8x5xf32, #tpu.memory_space<vmem>>) attributes {dimension_semantics = [#tpu.dimension_semantics<arbitrary>], iteration_bounds = array<i64: 1>, scalar_prefetch = 0 : i64, scratch_operands = 0 : i64, tpu.core_type = #tpu.core_type<tc>, window_params = [{pipeline_mode = #tpu.pipeline_mode<synchronous>, transform_indices = @transform_0, window_bounds = array<i64: 16, 3>}, {pipeline_mode = #tpu.pipeline_mode<synchronous>, transform_indices = @transform_1, window_bounds = array<i64: 16, 16>}, {pipeline_mode = #tpu.pipeline_mode<synchronous>, transform_indices = @transform_2, window_bounds = array<i64: 3, 8>}, {pipeline_mode = #tpu.pipeline_mode<synchronous>, transform_indices = @transform_3, window_bounds = array<i64: 1, 8>}, {pipeline_mode = #tpu.pipeline_mode<synchronous>, transform_indices = @transform_4, window_bounds = array<i64: 8, 16>}, {pipeline_mode = #tpu.pipeline_mode<synchronous>, transform_indices = @transform_5, window_bounds = array<i64: 1, 16>}, {pipeline_mode = #tpu.pipeline_mode<synchronous>, transform_indices = @transform_6, window_bounds = array<i64: 16, 32>}, {pipeline_mode = #tpu.pipeline_mode<synchronous>, transform_indices = @transform_7, window_bounds = array<i64: 16, 32>}, {pipeline_mode = #tpu.pipeline_mode<synchronous>, transform_indices = @transform_8, window_bounds = array<i64: 1, 32>}, {pipeline_mode = #tpu.pipeline_mode<synchronous>, transform_indices = @transform_9, window_bounds = array<i64: 2, 32, 96>}, {pipeline_mode = #tpu.pipeline_mode<synchronous>, transform_indices = @transform_10, window_bounds = array<i64: 2, 1, 96>}, {pipeline_mode = #tpu.pipeline_mode<synchronous>, transform_indices = @transform_11, window_bounds = array<i64: 2, 32, 32>}, {pipeline_mode = #tpu.pipeline_mode<synchronous>, transform_indices = @transform_12, window_bounds = array<i64: 2, 1, 32>}, {pipeline_mode = #tpu.pipeline_mode<synchronous>, transform_indices = @transform_13, window_bounds = array<i64: 2, 1, 32>}, {pipeline_mode = #tpu.pipeline_mode<synchronous>, transform_indices = @transform_14, window_bounds = array<i64: 2, 1, 32>}, {pipeline_mode = #tpu.pipeline_mode<synchronous>, transform_indices = @transform_15, window_bounds = array<i64: 2, 32, 128>}, {pipeline_mode = #tpu.pipeline_mode<synchronous>, transform_indices = @transform_16, window_bounds = array<i64: 2, 1, 128>}, {pipeline_mode = #tpu.pipeline_mode<synchronous>, transform_indices = @transform_17, window_bounds = array<i64: 2, 128, 32>}, {pipeline_mode = #tpu.pipeline_mode<synchronous>, transform_indices = @transform_18, window_bounds = array<i64: 2, 1, 32>}, {pipeline_mode = #tpu.pipeline_mode<synchronous>, transform_indices = @transform_19, window_bounds = array<i64: 2, 1, 32>}, {pipeline_mode = #tpu.pipeline_mode<synchronous>, transform_indices = @transform_20, window_bounds = array<i64: 2, 1, 32>}, {pipeline_mode = #tpu.pipeline_mode<synchronous>, transform_indices = @transform_21, window_bounds = array<i64: 32, 64>}, {pipeline_mode = #tpu.pipeline_mode<synchronous>, transform_indices = @transform_22, window_bounds = array<i64: 1, 32>}, {pipeline_mode = #tpu.pipeline_mode<synchronous>, transform_indices = @transform_23, window_bounds = array<i64: 32, 5>}, {pipeline_mode = #tpu.pipeline_mode<synchronous>, transform_indices = @transform_24, window_bounds = array<i64: 1, 5>}, {pipeline_mode = #tpu.pipeline_mode<synchronous>, transform_indices = @transform_25, window_bounds = array<i64: 2, 8, 8, 5>}]} {
    %c0 = arith.constant 0 : index
    %c0_0 = arith.constant 0 : index
    %0 = vector.load %arg1[%c0, %c0_0] : memref<16x3xf32, #tpu.memory_space<vmem>>, vector<16x3xf32>
    %c0_1 = arith.constant 0 : index
    %c0_2 = arith.constant 0 : index
    %1 = vector.load %arg3[%c0_1, %c0_2] : memref<3x8xf32, #tpu.memory_space<vmem>>, vector<3x8xf32>
    %2 = vector.extract_strided_slice %0 {offsets = [0, 0], sizes = [16, 1], strides = [1, 1]} : vector<16x3xf32> to vector<16x1xf32>
    %3 = vector.extract_strided_slice %1 {offsets = [0, 0], sizes = [1, 8], strides = [1, 1]} : vector<3x8xf32> to vector<1x8xf32>
    %4 = vector.broadcast %2 : vector<16x1xf32> to vector<16x8xf32>
    %5 = vector.broadcast %3 : vector<1x8xf32> to vector<16x8xf32>
    %6 = arith.mulf %4, %5 : vector<16x8xf32>
    %7 = vector.extract_strided_slice %0 {offsets = [0, 1], sizes = [16, 1], strides = [1, 1]} : vector<16x3xf32> to vector<16x1xf32>
    %8 = vector.extract_strided_slice %1 {offsets = [1, 0], sizes = [1, 8], strides = [1, 1]} : vector<3x8xf32> to vector<1x8xf32>
    %9 = vector.broadcast %7 : vector<16x1xf32> to vector<16x8xf32>
    %10 = vector.broadcast %8 : vector<1x8xf32> to vector<16x8xf32>
    %11 = arith.mulf %9, %10 : vector<16x8xf32>
    %12 = arith.addf %6, %11 : vector<16x8xf32>
    %13 = vector.extract_strided_slice %0 {offsets = [0, 2], sizes = [16, 1], strides = [1, 1]} : vector<16x3xf32> to vector<16x1xf32>
    %14 = vector.extract_strided_slice %1 {offsets = [2, 0], sizes = [1, 8], strides = [1, 1]} : vector<3x8xf32> to vector<1x8xf32>
    %15 = vector.broadcast %13 : vector<16x1xf32> to vector<16x8xf32>
    %16 = vector.broadcast %14 : vector<1x8xf32> to vector<16x8xf32>
    %17 = arith.mulf %15, %16 : vector<16x8xf32>
    %18 = arith.addf %12, %17 : vector<16x8xf32>
    %c0_3 = arith.constant 0 : index
    %c0_4 = arith.constant 0 : index
    %19 = vector.load %arg4[%c0_3, %c0_4] : memref<1x8xf32, #tpu.memory_space<vmem>>, vector<1x8xf32>
    %20 = vector.broadcast %19 : vector<1x8xf32> to vector<16x8xf32>
    %21 = arith.addf %18, %20 : vector<16x8xf32>
    %cst = arith.constant 0.000000e+00 : f32
    %22 = vector.broadcast %cst : f32 to vector<16x8xf32>
    %23 = arith.cmpf ogt, %21, %22 : vector<16x8xf32>
    %24 = math.exp %21 : vector<16x8xf32>
    %cst_5 = arith.constant 1.000000e+00 : f32
    %25 = vector.broadcast %cst_5 : f32 to vector<16x8xf32>
    %26 = arith.subf %24, %25 : vector<16x8xf32>
    %cst_6 = arith.constant 1.67326319 : f32
    %27 = vector.broadcast %cst_6 : f32 to vector<16x8xf32>
    %28 = arith.mulf %27, %26 : vector<16x8xf32>
    %29 = arith.select %23, %21, %28 : vector<16x8xi1>, vector<16x8xf32>
    %cst_7 = arith.constant 1.05070102 : f32
    %30 = vector.broadcast %cst_7 : f32 to vector<16x8xf32>
    %31 = arith.mulf %30, %29 : vector<16x8xf32>
    %32 = arith.truncf %31 : vector<16x8xf32> to vector<16x8xbf16>
    %c0_8 = arith.constant 0 : index
    %c0_9 = arith.constant 0 : index
    %33 = vector.load %arg5[%c0_8, %c0_9] : memref<8x16xbf16, #tpu.memory_space<vmem>>, vector<8x16xbf16>
    %cst_10 = arith.constant dense<0.000000e+00> : vector<16x16xf32>
    %34 = tpu.matmul %32, %33, %cst_10 {dimension_numbers = #tpu.dot_dimension_numbers<[1], [0], [0], [1], [0, 0, 1, 1], [], []>} : vector<16x8xbf16>, vector<8x16xbf16>, vector<16x16xf32> -> vector<16x16xf32>
    %c0_11 = arith.constant 0 : index
    %c0_12 = arith.constant 0 : index
    %35 = vector.load %arg6[%c0_11, %c0_12] : memref<1x16xf32, #tpu.memory_space<vmem>>, vector<1x16xf32>
    %36 = vector.broadcast %35 : vector<1x16xf32> to vector<16x16xf32>
    %37 = arith.addf %34, %36 : vector<16x16xf32>
    %38 = arith.truncf %37 : vector<16x16xf32> to vector<16x16xbf16>
    %c0_13 = arith.constant 0 : index
    %c0_14 = arith.constant 0 : index
    %39 = vector.load %arg7[%c0_13, %c0_14] : memref<16x32xbf16, #tpu.memory_space<vmem>>, vector<16x32xbf16>
    %cst_15 = arith.constant dense<0.000000e+00> : vector<16x32xf32>
    %40 = tpu.matmul %38, %39, %cst_15 {dimension_numbers = #tpu.dot_dimension_numbers<[1], [0], [0], [1], [0, 0, 1, 1], [], []>} : vector<16x16xbf16>, vector<16x32xbf16>, vector<16x32xf32> -> vector<16x32xf32>
    %c0_16 = arith.constant 0 : index
    %c0_17 = arith.constant 0 : index
    %41 = vector.load %arg2[%c0_16, %c0_17] : memref<16x16xf32, #tpu.memory_space<vmem>>, vector<16x16xf32>
    %42 = arith.truncf %41 : vector<16x16xf32> to vector<16x16xbf16>
    %c0_18 = arith.constant 0 : index
    %c0_19 = arith.constant 0 : index
    %43 = vector.load %arg8[%c0_18, %c0_19] : memref<16x32xbf16, #tpu.memory_space<vmem>>, vector<16x32xbf16>
    %cst_20 = arith.constant dense<0.000000e+00> : vector<16x32xf32>
    %44 = tpu.matmul %42, %43, %cst_20 {dimension_numbers = #tpu.dot_dimension_numbers<[1], [0], [0], [1], [0, 0, 1, 1], [], []>} : vector<16x16xbf16>, vector<16x32xbf16>, vector<16x32xf32> -> vector<16x32xf32>
    %45 = arith.addf %40, %44 : vector<16x32xf32>
    %c0_21 = arith.constant 0 : index
    %c0_22 = arith.constant 0 : index
    %46 = vector.load %arg9[%c0_21, %c0_22] : memref<1x32xf32, #tpu.memory_space<vmem>>, vector<1x32xf32>
    %47 = vector.broadcast %46 : vector<1x32xf32> to vector<16x32xf32>
    %48 = arith.addf %45, %47 : vector<16x32xf32>
    %cst_23 = arith.constant 0.000000e+00 : f32
    %49 = vector.broadcast %cst_23 : f32 to vector<16x32xf32>
    %50 = arith.cmpf ogt, %48, %49 : vector<16x32xf32>
    %51 = math.exp %48 : vector<16x32xf32>
    %cst_24 = arith.constant 1.000000e+00 : f32
    %52 = vector.broadcast %cst_24 : f32 to vector<16x32xf32>
    %53 = arith.subf %51, %52 : vector<16x32xf32>
    %cst_25 = arith.constant 1.67326319 : f32
    %54 = vector.broadcast %cst_25 : f32 to vector<16x32xf32>
    %55 = arith.mulf %54, %53 : vector<16x32xf32>
    %56 = arith.select %50, %48, %55 : vector<16x32xi1>, vector<16x32xf32>
    %cst_26 = arith.constant 1.05070102 : f32
    %57 = vector.broadcast %cst_26 : f32 to vector<16x32xf32>
    %58 = arith.mulf %57, %56 : vector<16x32xf32>
    %59 = arith.truncf %58 : vector<16x32xf32> to vector<16x32xbf16>
    %c0_27 = arith.constant 0 : index
    %c0_28 = arith.constant 0 : index
    %c0_29 = arith.constant 0 : index
    %60 = vector.load %arg10[%c0_27, %c0_28, %c0_29] : memref<2x32x96xbf16, #tpu.memory_space<vmem>>, vector<1x32x96xbf16>
    %61 = vector.shape_cast %60 : vector<1x32x96xbf16> to vector<32x96xbf16>
    %cst_30 = arith.constant dense<0.000000e+00> : vector<16x96xf32>
    %62 = tpu.matmul %59, %61, %cst_30 {dimension_numbers = #tpu.dot_dimension_numbers<[1], [0], [0], [1], [0, 0, 1, 1], [], []>} : vector<16x32xbf16>, vector<32x96xbf16>, vector<16x96xf32> -> vector<16x96xf32>
    %c0_31 = arith.constant 0 : index
    %c0_32 = arith.constant 0 : index
    %c0_33 = arith.constant 0 : index
    %63 = vector.load %arg11[%c0_31, %c0_32, %c0_33] : memref<2x1x96xf32, #tpu.memory_space<vmem>>, vector<1x1x96xf32>
    %64 = vector.shape_cast %63 : vector<1x1x96xf32> to vector<1x96xf32>
    %65 = vector.broadcast %64 : vector<1x96xf32> to vector<16x96xf32>
    %66 = arith.addf %62, %65 : vector<16x96xf32>
    %67 = vector.extract_strided_slice %66 {offsets = [0, 0], sizes = [16, 8], strides = [1, 1]} : vector<16x96xf32> to vector<16x8xf32>
    %68 = arith.truncf %67 : vector<16x8xf32> to vector<16x8xbf16>
    %69 = vector.shape_cast %68 : vector<16x8xbf16> to vector<2x8x8xbf16>
    %70 = vector.extract_strided_slice %66 {offsets = [0, 32], sizes = [16, 8], strides = [1, 1]} : vector<16x96xf32> to vector<16x8xf32>
    %71 = arith.truncf %70 : vector<16x8xf32> to vector<16x8xbf16>
    %72 = vector.shape_cast %71 : vector<16x8xbf16> to vector<2x8x8xbf16>
    %73 = vector.extract_strided_slice %66 {offsets = [0, 64], sizes = [16, 8], strides = [1, 1]} : vector<16x96xf32> to vector<16x8xf32>
    %74 = arith.truncf %73 : vector<16x8xf32> to vector<16x8xbf16>
    %75 = vector.shape_cast %74 : vector<16x8xbf16> to vector<2x8x8xbf16>
    "tpu.trace_start"() <{level = 10 : i32, message = "bqd,bkd->bqk"}> : () -> ()
    %cst_34 = arith.constant dense<0.000000e+00> : vector<2x8x8xf32>
    %76 = tpu.matmul %69, %72, %cst_34 {dimension_numbers = #tpu.dot_dimension_numbers<[2], [2], [1], [1], [0, 0, 0, 1, 1, 1], [0], [0]>} : vector<2x8x8xbf16>, vector<2x8x8xbf16>, vector<2x8x8xf32> -> vector<2x8x8xf32>
    "tpu.trace_stop"() : () -> ()
    %cst_35 = arith.constant 0.353553385 : f32
    %77 = vector.broadcast %cst_35 : f32 to vector<2x8x8xf32>
    %78 = arith.mulf %76, %77 : vector<2x8x8xf32>
    %cst_36 = arith.constant dense<0xFF800000> : vector<2x8xf32>
    %79 = vector.multi_reduction <maximumf>, %78, %cst_36 [2] : vector<2x8x8xf32> to vector<2x8xf32>
    %80 = vector.shape_cast %79 : vector<2x8xf32> to vector<2x8x1xf32>
    %81 = vector.broadcast %80 : vector<2x8x1xf32> to vector<2x8x8xf32>
    %82 = arith.subf %78, %81 : vector<2x8x8xf32>
    %83 = math.exp %82 : vector<2x8x8xf32>
    %cst_37 = arith.constant dense<0.000000e+00> : vector<2x8xf32>
    %84 = vector.multi_reduction <add>, %83, %cst_37 [2] : vector<2x8x8xf32> to vector<2x8xf32>
    %85 = vector.shape_cast %84 : vector<2x8xf32> to vector<2x8x1xf32>
    %86 = tpu.reciprocal %85 {approx = true} : vector<2x8x1xf32> -> vector<2x8x1xf32>
    %87 = vector.broadcast %86 : vector<2x8x1xf32> to vector<2x8x8xf32>
    %88 = arith.mulf %83, %87 : vector<2x8x8xf32>
    %89 = arith.truncf %88 : vector<2x8x8xf32> to vector<2x8x8xbf16>
    "tpu.trace_start"() <{level = 10 : i32, message = "bqk,bkd->bqd"}> : () -> ()
    %cst_38 = arith.constant dense<0.000000e+00> : vector<2x8x8xf32>
    %90 = tpu.matmul %89, %75, %cst_38 {dimension_numbers = #tpu.dot_dimension_numbers<[2], [1], [1], [2], [0, 0, 0, 1, 1, 2], [0], [0]>} : vector<2x8x8xbf16>, vector<2x8x8xbf16>, vector<2x8x8xf32> -> vector<2x8x8xf32>
    "tpu.trace_stop"() : () -> ()
    %91 = vector.shape_cast %90 : vector<2x8x8xf32> to vector<16x8xf32>
    %92 = vector.extract_strided_slice %66 {offsets = [0, 8], sizes = [16, 8], strides = [1, 1]} : vector<16x96xf32> to vector<16x8xf32>
    %93 = arith.truncf %92 : vector<16x8xf32> to vector<16x8xbf16>
    %94 = vector.shape_cast %93 : vector<16x8xbf16> to vector<2x8x8xbf16>
    %95 = vector.extract_strided_slice %66 {offsets = [0, 40], sizes = [16, 8], strides = [1, 1]} : vector<16x96xf32> to vector<16x8xf32>
    %96 = arith.truncf %95 : vector<16x8xf32> to vector<16x8xbf16>
    %97 = vector.shape_cast %96 : vector<16x8xbf16> to vector<2x8x8xbf16>
    %98 = vector.extract_strided_slice %66 {offsets = [0, 72], sizes = [16, 8], strides = [1, 1]} : vector<16x96xf32> to vector<16x8xf32>
    %99 = arith.truncf %98 : vector<16x8xf32> to vector<16x8xbf16>
    %100 = vector.shape_cast %99 : vector<16x8xbf16> to vector<2x8x8xbf16>
    "tpu.trace_start"() <{level = 10 : i32, message = "bqd,bkd->bqk"}> : () -> ()
    %cst_39 = arith.constant dense<0.000000e+00> : vector<2x8x8xf32>
    %101 = tpu.matmul %94, %97, %cst_39 {dimension_numbers = #tpu.dot_dimension_numbers<[2], [2], [1], [1], [0, 0, 0, 1, 1, 1], [0], [0]>} : vector<2x8x8xbf16>, vector<2x8x8xbf16>, vector<2x8x8xf32> -> vector<2x8x8xf32>
    "tpu.trace_stop"() : () -> ()
    %cst_40 = arith.constant 0.353553385 : f32
    %102 = vector.broadcast %cst_40 : f32 to vector<2x8x8xf32>
    %103 = arith.mulf %101, %102 : vector<2x8x8xf32>
    %cst_41 = arith.constant dense<0xFF800000> : vector<2x8xf32>
    %104 = vector.multi_reduction <maximumf>, %103, %cst_41 [2] : vector<2x8x8xf32> to vector<2x8xf32>
    %105 = vector.shape_cast %104 : vector<2x8xf32> to vector<2x8x1xf32>
    %106 = vector.broadcast %105 : vector<2x8x1xf32> to vector<2x8x8xf32>
    %107 = arith.subf %103, %106 : vector<2x8x8xf32>
    %108 = math.exp %107 : vector<2x8x8xf32>
    %cst_42 = arith.constant dense<0.000000e+00> : vector<2x8xf32>
    %109 = vector.multi_reduction <add>, %108, %cst_42 [2] : vector<2x8x8xf32> to vector<2x8xf32>
    %110 = vector.shape_cast %109 : vector<2x8xf32> to vector<2x8x1xf32>
    %111 = tpu.reciprocal %110 {approx = true} : vector<2x8x1xf32> -> vector<2x8x1xf32>
    %112 = vector.broadcast %111 : vector<2x8x1xf32> to vector<2x8x8xf32>
    %113 = arith.mulf %108, %112 : vector<2x8x8xf32>
    %114 = arith.truncf %113 : vector<2x8x8xf32> to vector<2x8x8xbf16>
    "tpu.trace_start"() <{level = 10 : i32, message = "bqk,bkd->bqd"}> : () -> ()
    %cst_43 = arith.constant dense<0.000000e+00> : vector<2x8x8xf32>
    %115 = tpu.matmul %114, %100, %cst_43 {dimension_numbers = #tpu.dot_dimension_numbers<[2], [1], [1], [2], [0, 0, 0, 1, 1, 2], [0], [0]>} : vector<2x8x8xbf16>, vector<2x8x8xbf16>, vector<2x8x8xf32> -> vector<2x8x8xf32>
    "tpu.trace_stop"() : () -> ()
    %116 = vector.shape_cast %115 : vector<2x8x8xf32> to vector<16x8xf32>
    %117 = vector.extract_strided_slice %66 {offsets = [0, 16], sizes = [16, 8], strides = [1, 1]} : vector<16x96xf32> to vector<16x8xf32>
    %118 = arith.truncf %117 : vector<16x8xf32> to vector<16x8xbf16>
    %119 = vector.shape_cast %118 : vector<16x8xbf16> to vector<2x8x8xbf16>
    %120 = vector.extract_strided_slice %66 {offsets = [0, 48], sizes = [16, 8], strides = [1, 1]} : vector<16x96xf32> to vector<16x8xf32>
    %121 = arith.truncf %120 : vector<16x8xf32> to vector<16x8xbf16>
    %122 = vector.shape_cast %121 : vector<16x8xbf16> to vector<2x8x8xbf16>
    %123 = vector.extract_strided_slice %66 {offsets = [0, 80], sizes = [16, 8], strides = [1, 1]} : vector<16x96xf32> to vector<16x8xf32>
    %124 = arith.truncf %123 : vector<16x8xf32> to vector<16x8xbf16>
    %125 = vector.shape_cast %124 : vector<16x8xbf16> to vector<2x8x8xbf16>
    "tpu.trace_start"() <{level = 10 : i32, message = "bqd,bkd->bqk"}> : () -> ()
    %cst_44 = arith.constant dense<0.000000e+00> : vector<2x8x8xf32>
    %126 = tpu.matmul %119, %122, %cst_44 {dimension_numbers = #tpu.dot_dimension_numbers<[2], [2], [1], [1], [0, 0, 0, 1, 1, 1], [0], [0]>} : vector<2x8x8xbf16>, vector<2x8x8xbf16>, vector<2x8x8xf32> -> vector<2x8x8xf32>
    "tpu.trace_stop"() : () -> ()
    %cst_45 = arith.constant 0.353553385 : f32
    %127 = vector.broadcast %cst_45 : f32 to vector<2x8x8xf32>
    %128 = arith.mulf %126, %127 : vector<2x8x8xf32>
    %cst_46 = arith.constant dense<0xFF800000> : vector<2x8xf32>
    %129 = vector.multi_reduction <maximumf>, %128, %cst_46 [2] : vector<2x8x8xf32> to vector<2x8xf32>
    %130 = vector.shape_cast %129 : vector<2x8xf32> to vector<2x8x1xf32>
    %131 = vector.broadcast %130 : vector<2x8x1xf32> to vector<2x8x8xf32>
    %132 = arith.subf %128, %131 : vector<2x8x8xf32>
    %133 = math.exp %132 : vector<2x8x8xf32>
    %cst_47 = arith.constant dense<0.000000e+00> : vector<2x8xf32>
    %134 = vector.multi_reduction <add>, %133, %cst_47 [2] : vector<2x8x8xf32> to vector<2x8xf32>
    %135 = vector.shape_cast %134 : vector<2x8xf32> to vector<2x8x1xf32>
    %136 = tpu.reciprocal %135 {approx = true} : vector<2x8x1xf32> -> vector<2x8x1xf32>
    %137 = vector.broadcast %136 : vector<2x8x1xf32> to vector<2x8x8xf32>
    %138 = arith.mulf %133, %137 : vector<2x8x8xf32>
    %139 = arith.truncf %138 : vector<2x8x8xf32> to vector<2x8x8xbf16>
    "tpu.trace_start"() <{level = 10 : i32, message = "bqk,bkd->bqd"}> : () -> ()
    %cst_48 = arith.constant dense<0.000000e+00> : vector<2x8x8xf32>
    %140 = tpu.matmul %139, %125, %cst_48 {dimension_numbers = #tpu.dot_dimension_numbers<[2], [1], [1], [2], [0, 0, 0, 1, 1, 2], [0], [0]>} : vector<2x8x8xbf16>, vector<2x8x8xbf16>, vector<2x8x8xf32> -> vector<2x8x8xf32>
    "tpu.trace_stop"() : () -> ()
    %141 = vector.shape_cast %140 : vector<2x8x8xf32> to vector<16x8xf32>
    %142 = vector.extract_strided_slice %66 {offsets = [0, 24], sizes = [16, 8], strides = [1, 1]} : vector<16x96xf32> to vector<16x8xf32>
    %143 = arith.truncf %142 : vector<16x8xf32> to vector<16x8xbf16>
    %144 = vector.shape_cast %143 : vector<16x8xbf16> to vector<2x8x8xbf16>
    %145 = vector.extract_strided_slice %66 {offsets = [0, 56], sizes = [16, 8], strides = [1, 1]} : vector<16x96xf32> to vector<16x8xf32>
    %146 = arith.truncf %145 : vector<16x8xf32> to vector<16x8xbf16>
    %147 = vector.shape_cast %146 : vector<16x8xbf16> to vector<2x8x8xbf16>
    %148 = vector.extract_strided_slice %66 {offsets = [0, 88], sizes = [16, 8], strides = [1, 1]} : vector<16x96xf32> to vector<16x8xf32>
    %149 = arith.truncf %148 : vector<16x8xf32> to vector<16x8xbf16>
    %150 = vector.shape_cast %149 : vector<16x8xbf16> to vector<2x8x8xbf16>
    "tpu.trace_start"() <{level = 10 : i32, message = "bqd,bkd->bqk"}> : () -> ()
    %cst_49 = arith.constant dense<0.000000e+00> : vector<2x8x8xf32>
    %151 = tpu.matmul %144, %147, %cst_49 {dimension_numbers = #tpu.dot_dimension_numbers<[2], [2], [1], [1], [0, 0, 0, 1, 1, 1], [0], [0]>} : vector<2x8x8xbf16>, vector<2x8x8xbf16>, vector<2x8x8xf32> -> vector<2x8x8xf32>
    "tpu.trace_stop"() : () -> ()
    %cst_50 = arith.constant 0.353553385 : f32
    %152 = vector.broadcast %cst_50 : f32 to vector<2x8x8xf32>
    %153 = arith.mulf %151, %152 : vector<2x8x8xf32>
    %cst_51 = arith.constant dense<0xFF800000> : vector<2x8xf32>
    %154 = vector.multi_reduction <maximumf>, %153, %cst_51 [2] : vector<2x8x8xf32> to vector<2x8xf32>
    %155 = vector.shape_cast %154 : vector<2x8xf32> to vector<2x8x1xf32>
    %156 = vector.broadcast %155 : vector<2x8x1xf32> to vector<2x8x8xf32>
    %157 = arith.subf %153, %156 : vector<2x8x8xf32>
    %158 = math.exp %157 : vector<2x8x8xf32>
    %cst_52 = arith.constant dense<0.000000e+00> : vector<2x8xf32>
    %159 = vector.multi_reduction <add>, %158, %cst_52 [2] : vector<2x8x8xf32> to vector<2x8xf32>
    %160 = vector.shape_cast %159 : vector<2x8xf32> to vector<2x8x1xf32>
    %161 = tpu.reciprocal %160 {approx = true} : vector<2x8x1xf32> -> vector<2x8x1xf32>
    %162 = vector.broadcast %161 : vector<2x8x1xf32> to vector<2x8x8xf32>
    %163 = arith.mulf %158, %162 : vector<2x8x8xf32>
    %164 = arith.truncf %163 : vector<2x8x8xf32> to vector<2x8x8xbf16>
    "tpu.trace_start"() <{level = 10 : i32, message = "bqk,bkd->bqd"}> : () -> ()
    %cst_53 = arith.constant dense<0.000000e+00> : vector<2x8x8xf32>
    %165 = tpu.matmul %164, %150, %cst_53 {dimension_numbers = #tpu.dot_dimension_numbers<[2], [1], [1], [2], [0, 0, 0, 1, 1, 2], [0], [0]>} : vector<2x8x8xbf16>, vector<2x8x8xbf16>, vector<2x8x8xf32> -> vector<2x8x8xf32>
    "tpu.trace_stop"() : () -> ()
    %166 = vector.shape_cast %165 : vector<2x8x8xf32> to vector<16x8xf32>
    %167 = tpu.concatenate %91, %116, %141, %166 in 1 : vector<16x8xf32>, vector<16x8xf32>, vector<16x8xf32>, vector<16x8xf32> -> vector<16x32xf32>
    %168 = arith.truncf %167 : vector<16x32xf32> to vector<16x32xbf16>
    %c0_54 = arith.constant 0 : index
    %c0_55 = arith.constant 0 : index
    %c0_56 = arith.constant 0 : index
    %169 = vector.load %arg12[%c0_54, %c0_55, %c0_56] : memref<2x32x32xbf16, #tpu.memory_space<vmem>>, vector<1x32x32xbf16>
    %170 = vector.shape_cast %169 : vector<1x32x32xbf16> to vector<32x32xbf16>
    %cst_57 = arith.constant dense<0.000000e+00> : vector<16x32xf32>
    %171 = tpu.matmul %168, %170, %cst_57 {dimension_numbers = #tpu.dot_dimension_numbers<[1], [0], [0], [1], [0, 0, 1, 1], [], []>} : vector<16x32xbf16>, vector<32x32xbf16>, vector<16x32xf32> -> vector<16x32xf32>
    %c0_58 = arith.constant 0 : index
    %c0_59 = arith.constant 0 : index
    %c0_60 = arith.constant 0 : index
    %172 = vector.load %arg13[%c0_58, %c0_59, %c0_60] : memref<2x1x32xf32, #tpu.memory_space<vmem>>, vector<1x1x32xf32>
    %173 = vector.shape_cast %172 : vector<1x1x32xf32> to vector<1x32xf32>
    %174 = vector.broadcast %173 : vector<1x32xf32> to vector<16x32xf32>
    %175 = arith.addf %171, %174 : vector<16x32xf32>
    %176 = arith.addf %58, %175 : vector<16x32xf32>
    %c0_61 = arith.constant 0 : index
    %c0_62 = arith.constant 0 : index
    %c0_63 = arith.constant 0 : index
    %177 = vector.load %arg14[%c0_61, %c0_62, %c0_63] : memref<2x1x32xf32, #tpu.memory_space<vmem>>, vector<1x1x32xf32>
    %178 = vector.shape_cast %177 : vector<1x1x32xf32> to vector<1x32xf32>
    %c0_64 = arith.constant 0 : index
    %c0_65 = arith.constant 0 : index
    %c0_66 = arith.constant 0 : index
    %179 = vector.load %arg15[%c0_64, %c0_65, %c0_66] : memref<2x1x32xf32, #tpu.memory_space<vmem>>, vector<1x1x32xf32>
    %180 = vector.shape_cast %179 : vector<1x1x32xf32> to vector<1x32xf32>
    %cst_67 = arith.constant dense<0.000000e+00> : vector<16xf32>
    %181 = vector.multi_reduction <add>, %176, %cst_67 [1] : vector<16x32xf32> to vector<16xf32>
    %182 = vector.shape_cast %181 : vector<16xf32> to vector<16x1xf32>
    %cst_68 = arith.constant 3.200000e+01 : f32
    %183 = vector.broadcast %cst_68 : f32 to vector<16x1xf32>
    %184 = arith.divf %182, %183 : vector<16x1xf32>
    %185 = vector.broadcast %184 : vector<16x1xf32> to vector<16x32xf32>
    %186 = arith.subf %176, %185 : vector<16x32xf32>
    %187 = arith.mulf %186, %186 : vector<16x32xf32>
    %cst_69 = arith.constant dense<0.000000e+00> : vector<16xf32>
    %188 = vector.multi_reduction <add>, %187, %cst_69 [1] : vector<16x32xf32> to vector<16xf32>
    %189 = vector.shape_cast %188 : vector<16xf32> to vector<16x1xf32>
    %cst_70 = arith.constant 3.200000e+01 : f32
    %190 = vector.broadcast %cst_70 : f32 to vector<16x1xf32>
    %191 = arith.divf %189, %190 : vector<16x1xf32>
    %192 = vector.broadcast %184 : vector<16x1xf32> to vector<16x32xf32>
    %193 = arith.subf %176, %192 : vector<16x32xf32>
    %cst_71 = arith.constant 9.99999974E-6 : f32
    %194 = vector.broadcast %cst_71 : f32 to vector<16x1xf32>
    %195 = arith.addf %191, %194 : vector<16x1xf32>
    %196 = math.rsqrt %195 : vector<16x1xf32>
    %197 = vector.broadcast %196 : vector<16x1xf32> to vector<16x32xf32>
    %198 = arith.mulf %193, %197 : vector<16x32xf32>
    %199 = vector.broadcast %178 : vector<1x32xf32> to vector<16x32xf32>
    %200 = arith.mulf %198, %199 : vector<16x32xf32>
    %201 = vector.broadcast %180 : vector<1x32xf32> to vector<16x32xf32>
    %202 = arith.addf %200, %201 : vector<16x32xf32>
    %203 = arith.truncf %202 : vector<16x32xf32> to vector<16x32xbf16>
    %c0_72 = arith.constant 0 : index
    %c0_73 = arith.constant 0 : index
    %c0_74 = arith.constant 0 : index
    %204 = vector.load %arg16[%c0_72, %c0_73, %c0_74] : memref<2x32x128xbf16, #tpu.memory_space<vmem>>, vector<1x32x128xbf16>
    %205 = vector.shape_cast %204 : vector<1x32x128xbf16> to vector<32x128xbf16>
    %cst_75 = arith.constant dense<0.000000e+00> : vector<16x128xf32>
    %206 = tpu.matmul %203, %205, %cst_75 {dimension_numbers = #tpu.dot_dimension_numbers<[1], [0], [0], [1], [0, 0, 1, 1], [], []>} : vector<16x32xbf16>, vector<32x128xbf16>, vector<16x128xf32> -> vector<16x128xf32>
    %c0_76 = arith.constant 0 : index
    %c0_77 = arith.constant 0 : index
    %c0_78 = arith.constant 0 : index
    %207 = vector.load %arg17[%c0_76, %c0_77, %c0_78] : memref<2x1x128xf32, #tpu.memory_space<vmem>>, vector<1x1x128xf32>
    %208 = vector.shape_cast %207 : vector<1x1x128xf32> to vector<1x128xf32>
    %209 = vector.broadcast %208 : vector<1x128xf32> to vector<16x128xf32>
    %210 = arith.addf %206, %209 : vector<16x128xf32>
    %cst_79 = arith.constant 0.000000e+00 : f32
    %211 = vector.broadcast %cst_79 : f32 to vector<16x128xf32>
    %212 = arith.cmpf ogt, %210, %211 : vector<16x128xf32>
    %213 = math.exp %210 : vector<16x128xf32>
    %cst_80 = arith.constant 1.000000e+00 : f32
    %214 = vector.broadcast %cst_80 : f32 to vector<16x128xf32>
    %215 = arith.subf %213, %214 : vector<16x128xf32>
    %cst_81 = arith.constant 1.67326319 : f32
    %216 = vector.broadcast %cst_81 : f32 to vector<16x128xf32>
    %217 = arith.mulf %216, %215 : vector<16x128xf32>
    %218 = arith.select %212, %210, %217 : vector<16x128xi1>, vector<16x128xf32>
    %cst_82 = arith.constant 1.05070102 : f32
    %219 = vector.broadcast %cst_82 : f32 to vector<16x128xf32>
    %220 = arith.mulf %219, %218 : vector<16x128xf32>
    %221 = arith.truncf %220 : vector<16x128xf32> to vector<16x128xbf16>
    %c0_83 = arith.constant 0 : index
    %c0_84 = arith.constant 0 : index
    %c0_85 = arith.constant 0 : index
    %222 = vector.load %arg18[%c0_83, %c0_84, %c0_85] : memref<2x128x32xbf16, #tpu.memory_space<vmem>>, vector<1x128x32xbf16>
    %223 = vector.shape_cast %222 : vector<1x128x32xbf16> to vector<128x32xbf16>
    %cst_86 = arith.constant dense<0.000000e+00> : vector<16x32xf32>
    %224 = tpu.matmul %221, %223, %cst_86 {dimension_numbers = #tpu.dot_dimension_numbers<[1], [0], [0], [1], [0, 0, 1, 1], [], []>} : vector<16x128xbf16>, vector<128x32xbf16>, vector<16x32xf32> -> vector<16x32xf32>
    %c0_87 = arith.constant 0 : index
    %c0_88 = arith.constant 0 : index
    %c0_89 = arith.constant 0 : index
    %225 = vector.load %arg19[%c0_87, %c0_88, %c0_89] : memref<2x1x32xf32, #tpu.memory_space<vmem>>, vector<1x1x32xf32>
    %226 = vector.shape_cast %225 : vector<1x1x32xf32> to vector<1x32xf32>
    %227 = vector.broadcast %226 : vector<1x32xf32> to vector<16x32xf32>
    %228 = arith.addf %224, %227 : vector<16x32xf32>
    %229 = arith.addf %202, %228 : vector<16x32xf32>
    %c0_90 = arith.constant 0 : index
    %c0_91 = arith.constant 0 : index
    %c0_92 = arith.constant 0 : index
    %230 = vector.load %arg20[%c0_90, %c0_91, %c0_92] : memref<2x1x32xf32, #tpu.memory_space<vmem>>, vector<1x1x32xf32>
    %231 = vector.shape_cast %230 : vector<1x1x32xf32> to vector<1x32xf32>
    %c0_93 = arith.constant 0 : index
    %c0_94 = arith.constant 0 : index
    %c0_95 = arith.constant 0 : index
    %232 = vector.load %arg21[%c0_93, %c0_94, %c0_95] : memref<2x1x32xf32, #tpu.memory_space<vmem>>, vector<1x1x32xf32>
    %233 = vector.shape_cast %232 : vector<1x1x32xf32> to vector<1x32xf32>
    %cst_96 = arith.constant dense<0.000000e+00> : vector<16xf32>
    %234 = vector.multi_reduction <add>, %229, %cst_96 [1] : vector<16x32xf32> to vector<16xf32>
    %235 = vector.shape_cast %234 : vector<16xf32> to vector<16x1xf32>
    %cst_97 = arith.constant 3.200000e+01 : f32
    %236 = vector.broadcast %cst_97 : f32 to vector<16x1xf32>
    %237 = arith.divf %235, %236 : vector<16x1xf32>
    %238 = vector.broadcast %237 : vector<16x1xf32> to vector<16x32xf32>
    %239 = arith.subf %229, %238 : vector<16x32xf32>
    %240 = arith.mulf %239, %239 : vector<16x32xf32>
    %cst_98 = arith.constant dense<0.000000e+00> : vector<16xf32>
    %241 = vector.multi_reduction <add>, %240, %cst_98 [1] : vector<16x32xf32> to vector<16xf32>
    %242 = vector.shape_cast %241 : vector<16xf32> to vector<16x1xf32>
    %cst_99 = arith.constant 3.200000e+01 : f32
    %243 = vector.broadcast %cst_99 : f32 to vector<16x1xf32>
    %244 = arith.divf %242, %243 : vector<16x1xf32>
    %245 = vector.broadcast %237 : vector<16x1xf32> to vector<16x32xf32>
    %246 = arith.subf %229, %245 : vector<16x32xf32>
    %cst_100 = arith.constant 9.99999974E-6 : f32
    %247 = vector.broadcast %cst_100 : f32 to vector<16x1xf32>
    %248 = arith.addf %244, %247 : vector<16x1xf32>
    %249 = math.rsqrt %248 : vector<16x1xf32>
    %250 = vector.broadcast %249 : vector<16x1xf32> to vector<16x32xf32>
    %251 = arith.mulf %246, %250 : vector<16x32xf32>
    %252 = vector.broadcast %231 : vector<1x32xf32> to vector<16x32xf32>
    %253 = arith.mulf %251, %252 : vector<16x32xf32>
    %254 = vector.broadcast %233 : vector<1x32xf32> to vector<16x32xf32>
    %255 = arith.addf %253, %254 : vector<16x32xf32>
    %256 = arith.truncf %255 : vector<16x32xf32> to vector<16x32xbf16>
    %c1 = arith.constant 1 : index
    %c0_101 = arith.constant 0 : index
    %c0_102 = arith.constant 0 : index
    %257 = vector.load %arg10[%c1, %c0_101, %c0_102] : memref<2x32x96xbf16, #tpu.memory_space<vmem>>, vector<1x32x96xbf16>
    %258 = vector.shape_cast %257 : vector<1x32x96xbf16> to vector<32x96xbf16>
    %cst_103 = arith.constant dense<0.000000e+00> : vector<16x96xf32>
    %259 = tpu.matmul %256, %258, %cst_103 {dimension_numbers = #tpu.dot_dimension_numbers<[1], [0], [0], [1], [0, 0, 1, 1], [], []>} : vector<16x32xbf16>, vector<32x96xbf16>, vector<16x96xf32> -> vector<16x96xf32>
    %c1_104 = arith.constant 1 : index
    %c0_105 = arith.constant 0 : index
    %c0_106 = arith.constant 0 : index
    %260 = vector.load %arg11[%c1_104, %c0_105, %c0_106] : memref<2x1x96xf32, #tpu.memory_space<vmem>>, vector<1x1x96xf32>
    %261 = vector.shape_cast %260 : vector<1x1x96xf32> to vector<1x96xf32>
    %262 = vector.broadcast %261 : vector<1x96xf32> to vector<16x96xf32>
    %263 = arith.addf %259, %262 : vector<16x96xf32>
    %264 = vector.extract_strided_slice %263 {offsets = [0, 0], sizes = [16, 8], strides = [1, 1]} : vector<16x96xf32> to vector<16x8xf32>
    %265 = arith.truncf %264 : vector<16x8xf32> to vector<16x8xbf16>
    %266 = vector.shape_cast %265 : vector<16x8xbf16> to vector<2x8x8xbf16>
    %267 = vector.extract_strided_slice %263 {offsets = [0, 32], sizes = [16, 8], strides = [1, 1]} : vector<16x96xf32> to vector<16x8xf32>
    %268 = arith.truncf %267 : vector<16x8xf32> to vector<16x8xbf16>
    %269 = vector.shape_cast %268 : vector<16x8xbf16> to vector<2x8x8xbf16>
    %270 = vector.extract_strided_slice %263 {offsets = [0, 64], sizes = [16, 8], strides = [1, 1]} : vector<16x96xf32> to vector<16x8xf32>
    %271 = arith.truncf %270 : vector<16x8xf32> to vector<16x8xbf16>
    %272 = vector.shape_cast %271 : vector<16x8xbf16> to vector<2x8x8xbf16>
    "tpu.trace_start"() <{level = 10 : i32, message = "bqd,bkd->bqk"}> : () -> ()
    %cst_107 = arith.constant dense<0.000000e+00> : vector<2x8x8xf32>
    %273 = tpu.matmul %266, %269, %cst_107 {dimension_numbers = #tpu.dot_dimension_numbers<[2], [2], [1], [1], [0, 0, 0, 1, 1, 1], [0], [0]>} : vector<2x8x8xbf16>, vector<2x8x8xbf16>, vector<2x8x8xf32> -> vector<2x8x8xf32>
    "tpu.trace_stop"() : () -> ()
    %cst_108 = arith.constant 0.353553385 : f32
    %274 = vector.broadcast %cst_108 : f32 to vector<2x8x8xf32>
    %275 = arith.mulf %273, %274 : vector<2x8x8xf32>
    %cst_109 = arith.constant dense<0xFF800000> : vector<2x8xf32>
    %276 = vector.multi_reduction <maximumf>, %275, %cst_109 [2] : vector<2x8x8xf32> to vector<2x8xf32>
    %277 = vector.shape_cast %276 : vector<2x8xf32> to vector<2x8x1xf32>
    %278 = vector.broadcast %277 : vector<2x8x1xf32> to vector<2x8x8xf32>
    %279 = arith.subf %275, %278 : vector<2x8x8xf32>
    %280 = math.exp %279 : vector<2x8x8xf32>
    %cst_110 = arith.constant dense<0.000000e+00> : vector<2x8xf32>
    %281 = vector.multi_reduction <add>, %280, %cst_110 [2] : vector<2x8x8xf32> to vector<2x8xf32>
    %282 = vector.shape_cast %281 : vector<2x8xf32> to vector<2x8x1xf32>
    %283 = tpu.reciprocal %282 {approx = true} : vector<2x8x1xf32> -> vector<2x8x1xf32>
    %284 = vector.broadcast %283 : vector<2x8x1xf32> to vector<2x8x8xf32>
    %285 = arith.mulf %280, %284 : vector<2x8x8xf32>
    %286 = arith.truncf %285 : vector<2x8x8xf32> to vector<2x8x8xbf16>
    "tpu.trace_start"() <{level = 10 : i32, message = "bqk,bkd->bqd"}> : () -> ()
    %cst_111 = arith.constant dense<0.000000e+00> : vector<2x8x8xf32>
    %287 = tpu.matmul %286, %272, %cst_111 {dimension_numbers = #tpu.dot_dimension_numbers<[2], [1], [1], [2], [0, 0, 0, 1, 1, 2], [0], [0]>} : vector<2x8x8xbf16>, vector<2x8x8xbf16>, vector<2x8x8xf32> -> vector<2x8x8xf32>
    "tpu.trace_stop"() : () -> ()
    %288 = vector.shape_cast %287 : vector<2x8x8xf32> to vector<16x8xf32>
    %289 = vector.extract_strided_slice %263 {offsets = [0, 8], sizes = [16, 8], strides = [1, 1]} : vector<16x96xf32> to vector<16x8xf32>
    %290 = arith.truncf %289 : vector<16x8xf32> to vector<16x8xbf16>
    %291 = vector.shape_cast %290 : vector<16x8xbf16> to vector<2x8x8xbf16>
    %292 = vector.extract_strided_slice %263 {offsets = [0, 40], sizes = [16, 8], strides = [1, 1]} : vector<16x96xf32> to vector<16x8xf32>
    %293 = arith.truncf %292 : vector<16x8xf32> to vector<16x8xbf16>
    %294 = vector.shape_cast %293 : vector<16x8xbf16> to vector<2x8x8xbf16>
    %295 = vector.extract_strided_slice %263 {offsets = [0, 72], sizes = [16, 8], strides = [1, 1]} : vector<16x96xf32> to vector<16x8xf32>
    %296 = arith.truncf %295 : vector<16x8xf32> to vector<16x8xbf16>
    %297 = vector.shape_cast %296 : vector<16x8xbf16> to vector<2x8x8xbf16>
    "tpu.trace_start"() <{level = 10 : i32, message = "bqd,bkd->bqk"}> : () -> ()
    %cst_112 = arith.constant dense<0.000000e+00> : vector<2x8x8xf32>
    %298 = tpu.matmul %291, %294, %cst_112 {dimension_numbers = #tpu.dot_dimension_numbers<[2], [2], [1], [1], [0, 0, 0, 1, 1, 1], [0], [0]>} : vector<2x8x8xbf16>, vector<2x8x8xbf16>, vector<2x8x8xf32> -> vector<2x8x8xf32>
    "tpu.trace_stop"() : () -> ()
    %cst_113 = arith.constant 0.353553385 : f32
    %299 = vector.broadcast %cst_113 : f32 to vector<2x8x8xf32>
    %300 = arith.mulf %298, %299 : vector<2x8x8xf32>
    %cst_114 = arith.constant dense<0xFF800000> : vector<2x8xf32>
    %301 = vector.multi_reduction <maximumf>, %300, %cst_114 [2] : vector<2x8x8xf32> to vector<2x8xf32>
    %302 = vector.shape_cast %301 : vector<2x8xf32> to vector<2x8x1xf32>
    %303 = vector.broadcast %302 : vector<2x8x1xf32> to vector<2x8x8xf32>
    %304 = arith.subf %300, %303 : vector<2x8x8xf32>
    %305 = math.exp %304 : vector<2x8x8xf32>
    %cst_115 = arith.constant dense<0.000000e+00> : vector<2x8xf32>
    %306 = vector.multi_reduction <add>, %305, %cst_115 [2] : vector<2x8x8xf32> to vector<2x8xf32>
    %307 = vector.shape_cast %306 : vector<2x8xf32> to vector<2x8x1xf32>
    %308 = tpu.reciprocal %307 {approx = true} : vector<2x8x1xf32> -> vector<2x8x1xf32>
    %309 = vector.broadcast %308 : vector<2x8x1xf32> to vector<2x8x8xf32>
    %310 = arith.mulf %305, %309 : vector<2x8x8xf32>
    %311 = arith.truncf %310 : vector<2x8x8xf32> to vector<2x8x8xbf16>
    "tpu.trace_start"() <{level = 10 : i32, message = "bqk,bkd->bqd"}> : () -> ()
    %cst_116 = arith.constant dense<0.000000e+00> : vector<2x8x8xf32>
    %312 = tpu.matmul %311, %297, %cst_116 {dimension_numbers = #tpu.dot_dimension_numbers<[2], [1], [1], [2], [0, 0, 0, 1, 1, 2], [0], [0]>} : vector<2x8x8xbf16>, vector<2x8x8xbf16>, vector<2x8x8xf32> -> vector<2x8x8xf32>
    "tpu.trace_stop"() : () -> ()
    %313 = vector.shape_cast %312 : vector<2x8x8xf32> to vector<16x8xf32>
    %314 = vector.extract_strided_slice %263 {offsets = [0, 16], sizes = [16, 8], strides = [1, 1]} : vector<16x96xf32> to vector<16x8xf32>
    %315 = arith.truncf %314 : vector<16x8xf32> to vector<16x8xbf16>
    %316 = vector.shape_cast %315 : vector<16x8xbf16> to vector<2x8x8xbf16>
    %317 = vector.extract_strided_slice %263 {offsets = [0, 48], sizes = [16, 8], strides = [1, 1]} : vector<16x96xf32> to vector<16x8xf32>
    %318 = arith.truncf %317 : vector<16x8xf32> to vector<16x8xbf16>
    %319 = vector.shape_cast %318 : vector<16x8xbf16> to vector<2x8x8xbf16>
    %320 = vector.extract_strided_slice %263 {offsets = [0, 80], sizes = [16, 8], strides = [1, 1]} : vector<16x96xf32> to vector<16x8xf32>
    %321 = arith.truncf %320 : vector<16x8xf32> to vector<16x8xbf16>
    %322 = vector.shape_cast %321 : vector<16x8xbf16> to vector<2x8x8xbf16>
    "tpu.trace_start"() <{level = 10 : i32, message = "bqd,bkd->bqk"}> : () -> ()
    %cst_117 = arith.constant dense<0.000000e+00> : vector<2x8x8xf32>
    %323 = tpu.matmul %316, %319, %cst_117 {dimension_numbers = #tpu.dot_dimension_numbers<[2], [2], [1], [1], [0, 0, 0, 1, 1, 1], [0], [0]>} : vector<2x8x8xbf16>, vector<2x8x8xbf16>, vector<2x8x8xf32> -> vector<2x8x8xf32>
    "tpu.trace_stop"() : () -> ()
    %cst_118 = arith.constant 0.353553385 : f32
    %324 = vector.broadcast %cst_118 : f32 to vector<2x8x8xf32>
    %325 = arith.mulf %323, %324 : vector<2x8x8xf32>
    %cst_119 = arith.constant dense<0xFF800000> : vector<2x8xf32>
    %326 = vector.multi_reduction <maximumf>, %325, %cst_119 [2] : vector<2x8x8xf32> to vector<2x8xf32>
    %327 = vector.shape_cast %326 : vector<2x8xf32> to vector<2x8x1xf32>
    %328 = vector.broadcast %327 : vector<2x8x1xf32> to vector<2x8x8xf32>
    %329 = arith.subf %325, %328 : vector<2x8x8xf32>
    %330 = math.exp %329 : vector<2x8x8xf32>
    %cst_120 = arith.constant dense<0.000000e+00> : vector<2x8xf32>
    %331 = vector.multi_reduction <add>, %330, %cst_120 [2] : vector<2x8x8xf32> to vector<2x8xf32>
    %332 = vector.shape_cast %331 : vector<2x8xf32> to vector<2x8x1xf32>
    %333 = tpu.reciprocal %332 {approx = true} : vector<2x8x1xf32> -> vector<2x8x1xf32>
    %334 = vector.broadcast %333 : vector<2x8x1xf32> to vector<2x8x8xf32>
    %335 = arith.mulf %330, %334 : vector<2x8x8xf32>
    %336 = arith.truncf %335 : vector<2x8x8xf32> to vector<2x8x8xbf16>
    "tpu.trace_start"() <{level = 10 : i32, message = "bqk,bkd->bqd"}> : () -> ()
    %cst_121 = arith.constant dense<0.000000e+00> : vector<2x8x8xf32>
    %337 = tpu.matmul %336, %322, %cst_121 {dimension_numbers = #tpu.dot_dimension_numbers<[2], [1], [1], [2], [0, 0, 0, 1, 1, 2], [0], [0]>} : vector<2x8x8xbf16>, vector<2x8x8xbf16>, vector<2x8x8xf32> -> vector<2x8x8xf32>
    "tpu.trace_stop"() : () -> ()
    %338 = vector.shape_cast %337 : vector<2x8x8xf32> to vector<16x8xf32>
    %339 = vector.extract_strided_slice %263 {offsets = [0, 24], sizes = [16, 8], strides = [1, 1]} : vector<16x96xf32> to vector<16x8xf32>
    %340 = arith.truncf %339 : vector<16x8xf32> to vector<16x8xbf16>
    %341 = vector.shape_cast %340 : vector<16x8xbf16> to vector<2x8x8xbf16>
    %342 = vector.extract_strided_slice %263 {offsets = [0, 56], sizes = [16, 8], strides = [1, 1]} : vector<16x96xf32> to vector<16x8xf32>
    %343 = arith.truncf %342 : vector<16x8xf32> to vector<16x8xbf16>
    %344 = vector.shape_cast %343 : vector<16x8xbf16> to vector<2x8x8xbf16>
    %345 = vector.extract_strided_slice %263 {offsets = [0, 88], sizes = [16, 8], strides = [1, 1]} : vector<16x96xf32> to vector<16x8xf32>
    %346 = arith.truncf %345 : vector<16x8xf32> to vector<16x8xbf16>
    %347 = vector.shape_cast %346 : vector<16x8xbf16> to vector<2x8x8xbf16>
    "tpu.trace_start"() <{level = 10 : i32, message = "bqd,bkd->bqk"}> : () -> ()
    %cst_122 = arith.constant dense<0.000000e+00> : vector<2x8x8xf32>
    %348 = tpu.matmul %341, %344, %cst_122 {dimension_numbers = #tpu.dot_dimension_numbers<[2], [2], [1], [1], [0, 0, 0, 1, 1, 1], [0], [0]>} : vector<2x8x8xbf16>, vector<2x8x8xbf16>, vector<2x8x8xf32> -> vector<2x8x8xf32>
    "tpu.trace_stop"() : () -> ()
    %cst_123 = arith.constant 0.353553385 : f32
    %349 = vector.broadcast %cst_123 : f32 to vector<2x8x8xf32>
    %350 = arith.mulf %348, %349 : vector<2x8x8xf32>
    %cst_124 = arith.constant dense<0xFF800000> : vector<2x8xf32>
    %351 = vector.multi_reduction <maximumf>, %350, %cst_124 [2] : vector<2x8x8xf32> to vector<2x8xf32>
    %352 = vector.shape_cast %351 : vector<2x8xf32> to vector<2x8x1xf32>
    %353 = vector.broadcast %352 : vector<2x8x1xf32> to vector<2x8x8xf32>
    %354 = arith.subf %350, %353 : vector<2x8x8xf32>
    %355 = math.exp %354 : vector<2x8x8xf32>
    %cst_125 = arith.constant dense<0.000000e+00> : vector<2x8xf32>
    %356 = vector.multi_reduction <add>, %355, %cst_125 [2] : vector<2x8x8xf32> to vector<2x8xf32>
    %357 = vector.shape_cast %356 : vector<2x8xf32> to vector<2x8x1xf32>
    %358 = tpu.reciprocal %357 {approx = true} : vector<2x8x1xf32> -> vector<2x8x1xf32>
    %359 = vector.broadcast %358 : vector<2x8x1xf32> to vector<2x8x8xf32>
    %360 = arith.mulf %355, %359 : vector<2x8x8xf32>
    %361 = arith.truncf %360 : vector<2x8x8xf32> to vector<2x8x8xbf16>
    "tpu.trace_start"() <{level = 10 : i32, message = "bqk,bkd->bqd"}> : () -> ()
    %cst_126 = arith.constant dense<0.000000e+00> : vector<2x8x8xf32>
    %362 = tpu.matmul %361, %347, %cst_126 {dimension_numbers = #tpu.dot_dimension_numbers<[2], [1], [1], [2], [0, 0, 0, 1, 1, 2], [0], [0]>} : vector<2x8x8xbf16>, vector<2x8x8xbf16>, vector<2x8x8xf32> -> vector<2x8x8xf32>
    "tpu.trace_stop"() : () -> ()
    %363 = vector.shape_cast %362 : vector<2x8x8xf32> to vector<16x8xf32>
    %364 = tpu.concatenate %288, %313, %338, %363 in 1 : vector<16x8xf32>, vector<16x8xf32>, vector<16x8xf32>, vector<16x8xf32> -> vector<16x32xf32>
    %365 = arith.truncf %364 : vector<16x32xf32> to vector<16x32xbf16>
    %c1_127 = arith.constant 1 : index
    %c0_128 = arith.constant 0 : index
    %c0_129 = arith.constant 0 : index
    %366 = vector.load %arg12[%c1_127, %c0_128, %c0_129] : memref<2x32x32xbf16, #tpu.memory_space<vmem>>, vector<1x32x32xbf16>
    %367 = vector.shape_cast %366 : vector<1x32x32xbf16> to vector<32x32xbf16>
    %cst_130 = arith.constant dense<0.000000e+00> : vector<16x32xf32>
    %368 = tpu.matmul %365, %367, %cst_130 {dimension_numbers = #tpu.dot_dimension_numbers<[1], [0], [0], [1], [0, 0, 1, 1], [], []>} : vector<16x32xbf16>, vector<32x32xbf16>, vector<16x32xf32> -> vector<16x32xf32>
    %c1_131 = arith.constant 1 : index
    %c0_132 = arith.constant 0 : index
    %c0_133 = arith.constant 0 : index
    %369 = vector.load %arg13[%c1_131, %c0_132, %c0_133] : memref<2x1x32xf32, #tpu.memory_space<vmem>>, vector<1x1x32xf32>
    %370 = vector.shape_cast %369 : vector<1x1x32xf32> to vector<1x32xf32>
    %371 = vector.broadcast %370 : vector<1x32xf32> to vector<16x32xf32>
    %372 = arith.addf %368, %371 : vector<16x32xf32>
    %373 = arith.addf %255, %372 : vector<16x32xf32>
    %c1_134 = arith.constant 1 : index
    %c0_135 = arith.constant 0 : index
    %c0_136 = arith.constant 0 : index
    %374 = vector.load %arg14[%c1_134, %c0_135, %c0_136] : memref<2x1x32xf32, #tpu.memory_space<vmem>>, vector<1x1x32xf32>
    %375 = vector.shape_cast %374 : vector<1x1x32xf32> to vector<1x32xf32>
    %c1_137 = arith.constant 1 : index
    %c0_138 = arith.constant 0 : index
    %c0_139 = arith.constant 0 : index
    %376 = vector.load %arg15[%c1_137, %c0_138, %c0_139] : memref<2x1x32xf32, #tpu.memory_space<vmem>>, vector<1x1x32xf32>
    %377 = vector.shape_cast %376 : vector<1x1x32xf32> to vector<1x32xf32>
    %cst_140 = arith.constant dense<0.000000e+00> : vector<16xf32>
    %378 = vector.multi_reduction <add>, %373, %cst_140 [1] : vector<16x32xf32> to vector<16xf32>
    %379 = vector.shape_cast %378 : vector<16xf32> to vector<16x1xf32>
    %cst_141 = arith.constant 3.200000e+01 : f32
    %380 = vector.broadcast %cst_141 : f32 to vector<16x1xf32>
    %381 = arith.divf %379, %380 : vector<16x1xf32>
    %382 = vector.broadcast %381 : vector<16x1xf32> to vector<16x32xf32>
    %383 = arith.subf %373, %382 : vector<16x32xf32>
    %384 = arith.mulf %383, %383 : vector<16x32xf32>
    %cst_142 = arith.constant dense<0.000000e+00> : vector<16xf32>
    %385 = vector.multi_reduction <add>, %384, %cst_142 [1] : vector<16x32xf32> to vector<16xf32>
    %386 = vector.shape_cast %385 : vector<16xf32> to vector<16x1xf32>
    %cst_143 = arith.constant 3.200000e+01 : f32
    %387 = vector.broadcast %cst_143 : f32 to vector<16x1xf32>
    %388 = arith.divf %386, %387 : vector<16x1xf32>
    %389 = vector.broadcast %381 : vector<16x1xf32> to vector<16x32xf32>
    %390 = arith.subf %373, %389 : vector<16x32xf32>
    %cst_144 = arith.constant 9.99999974E-6 : f32
    %391 = vector.broadcast %cst_144 : f32 to vector<16x1xf32>
    %392 = arith.addf %388, %391 : vector<16x1xf32>
    %393 = math.rsqrt %392 : vector<16x1xf32>
    %394 = vector.broadcast %393 : vector<16x1xf32> to vector<16x32xf32>
    %395 = arith.mulf %390, %394 : vector<16x32xf32>
    %396 = vector.broadcast %375 : vector<1x32xf32> to vector<16x32xf32>
    %397 = arith.mulf %395, %396 : vector<16x32xf32>
    %398 = vector.broadcast %377 : vector<1x32xf32> to vector<16x32xf32>
    %399 = arith.addf %397, %398 : vector<16x32xf32>
    %400 = arith.truncf %399 : vector<16x32xf32> to vector<16x32xbf16>
    %c1_145 = arith.constant 1 : index
    %c0_146 = arith.constant 0 : index
    %c0_147 = arith.constant 0 : index
    %401 = vector.load %arg16[%c1_145, %c0_146, %c0_147] : memref<2x32x128xbf16, #tpu.memory_space<vmem>>, vector<1x32x128xbf16>
    %402 = vector.shape_cast %401 : vector<1x32x128xbf16> to vector<32x128xbf16>
    %cst_148 = arith.constant dense<0.000000e+00> : vector<16x128xf32>
    %403 = tpu.matmul %400, %402, %cst_148 {dimension_numbers = #tpu.dot_dimension_numbers<[1], [0], [0], [1], [0, 0, 1, 1], [], []>} : vector<16x32xbf16>, vector<32x128xbf16>, vector<16x128xf32> -> vector<16x128xf32>
    %c1_149 = arith.constant 1 : index
    %c0_150 = arith.constant 0 : index
    %c0_151 = arith.constant 0 : index
    %404 = vector.load %arg17[%c1_149, %c0_150, %c0_151] : memref<2x1x128xf32, #tpu.memory_space<vmem>>, vector<1x1x128xf32>
    %405 = vector.shape_cast %404 : vector<1x1x128xf32> to vector<1x128xf32>
    %406 = vector.broadcast %405 : vector<1x128xf32> to vector<16x128xf32>
    %407 = arith.addf %403, %406 : vector<16x128xf32>
    %cst_152 = arith.constant 0.000000e+00 : f32
    %408 = vector.broadcast %cst_152 : f32 to vector<16x128xf32>
    %409 = arith.cmpf ogt, %407, %408 : vector<16x128xf32>
    %410 = math.exp %407 : vector<16x128xf32>
    %cst_153 = arith.constant 1.000000e+00 : f32
    %411 = vector.broadcast %cst_153 : f32 to vector<16x128xf32>
    %412 = arith.subf %410, %411 : vector<16x128xf32>
    %cst_154 = arith.constant 1.67326319 : f32
    %413 = vector.broadcast %cst_154 : f32 to vector<16x128xf32>
    %414 = arith.mulf %413, %412 : vector<16x128xf32>
    %415 = arith.select %409, %407, %414 : vector<16x128xi1>, vector<16x128xf32>
    %cst_155 = arith.constant 1.05070102 : f32
    %416 = vector.broadcast %cst_155 : f32 to vector<16x128xf32>
    %417 = arith.mulf %416, %415 : vector<16x128xf32>
    %418 = arith.truncf %417 : vector<16x128xf32> to vector<16x128xbf16>
    %c1_156 = arith.constant 1 : index
    %c0_157 = arith.constant 0 : index
    %c0_158 = arith.constant 0 : index
    %419 = vector.load %arg18[%c1_156, %c0_157, %c0_158] : memref<2x128x32xbf16, #tpu.memory_space<vmem>>, vector<1x128x32xbf16>
    %420 = vector.shape_cast %419 : vector<1x128x32xbf16> to vector<128x32xbf16>
    %cst_159 = arith.constant dense<0.000000e+00> : vector<16x32xf32>
    %421 = tpu.matmul %418, %420, %cst_159 {dimension_numbers = #tpu.dot_dimension_numbers<[1], [0], [0], [1], [0, 0, 1, 1], [], []>} : vector<16x128xbf16>, vector<128x32xbf16>, vector<16x32xf32> -> vector<16x32xf32>
    %c1_160 = arith.constant 1 : index
    %c0_161 = arith.constant 0 : index
    %c0_162 = arith.constant 0 : index
    %422 = vector.load %arg19[%c1_160, %c0_161, %c0_162] : memref<2x1x32xf32, #tpu.memory_space<vmem>>, vector<1x1x32xf32>
    %423 = vector.shape_cast %422 : vector<1x1x32xf32> to vector<1x32xf32>
    %424 = vector.broadcast %423 : vector<1x32xf32> to vector<16x32xf32>
    %425 = arith.addf %421, %424 : vector<16x32xf32>
    %426 = arith.addf %399, %425 : vector<16x32xf32>
    %c1_163 = arith.constant 1 : index
    %c0_164 = arith.constant 0 : index
    %c0_165 = arith.constant 0 : index
    %427 = vector.load %arg20[%c1_163, %c0_164, %c0_165] : memref<2x1x32xf32, #tpu.memory_space<vmem>>, vector<1x1x32xf32>
    %428 = vector.shape_cast %427 : vector<1x1x32xf32> to vector<1x32xf32>
    %c1_166 = arith.constant 1 : index
    %c0_167 = arith.constant 0 : index
    %c0_168 = arith.constant 0 : index
    %429 = vector.load %arg21[%c1_166, %c0_167, %c0_168] : memref<2x1x32xf32, #tpu.memory_space<vmem>>, vector<1x1x32xf32>
    %430 = vector.shape_cast %429 : vector<1x1x32xf32> to vector<1x32xf32>
    %cst_169 = arith.constant dense<0.000000e+00> : vector<16xf32>
    %431 = vector.multi_reduction <add>, %426, %cst_169 [1] : vector<16x32xf32> to vector<16xf32>
    %432 = vector.shape_cast %431 : vector<16xf32> to vector<16x1xf32>
    %cst_170 = arith.constant 3.200000e+01 : f32
    %433 = vector.broadcast %cst_170 : f32 to vector<16x1xf32>
    %434 = arith.divf %432, %433 : vector<16x1xf32>
    %435 = vector.broadcast %434 : vector<16x1xf32> to vector<16x32xf32>
    %436 = arith.subf %426, %435 : vector<16x32xf32>
    %437 = arith.mulf %436, %436 : vector<16x32xf32>
    %cst_171 = arith.constant dense<0.000000e+00> : vector<16xf32>
    %438 = vector.multi_reduction <add>, %437, %cst_171 [1] : vector<16x32xf32> to vector<16xf32>
    %439 = vector.shape_cast %438 : vector<16xf32> to vector<16x1xf32>
    %cst_172 = arith.constant 3.200000e+01 : f32
    %440 = vector.broadcast %cst_172 : f32 to vector<16x1xf32>
    %441 = arith.divf %439, %440 : vector<16x1xf32>
    %442 = vector.broadcast %434 : vector<16x1xf32> to vector<16x32xf32>
    %443 = arith.subf %426, %442 : vector<16x32xf32>
    %cst_173 = arith.constant 9.99999974E-6 : f32
    %444 = vector.broadcast %cst_173 : f32 to vector<16x1xf32>
    %445 = arith.addf %441, %444 : vector<16x1xf32>
    %446 = math.rsqrt %445 : vector<16x1xf32>
    %447 = vector.broadcast %446 : vector<16x1xf32> to vector<16x32xf32>
    %448 = arith.mulf %443, %447 : vector<16x32xf32>
    %449 = vector.broadcast %428 : vector<1x32xf32> to vector<16x32xf32>
    %450 = arith.mulf %448, %449 : vector<16x32xf32>
    %451 = vector.broadcast %430 : vector<1x32xf32> to vector<16x32xf32>
    %452 = arith.addf %450, %451 : vector<16x32xf32>
    %453 = arith.truncf %452 : vector<16x32xf32> to vector<16x32xbf16>
    %c0_174 = arith.constant 0 : index
    %c0_175 = arith.constant 0 : index
    %454 = vector.load %arg22[%c0_174, %c0_175] : memref<32x64xbf16, #tpu.memory_space<vmem>>, vector<32x64xbf16>
    %cst_176 = arith.constant dense<0.000000e+00> : vector<16x64xf32>
    %455 = tpu.matmul %453, %454, %cst_176 {dimension_numbers = #tpu.dot_dimension_numbers<[1], [0], [0], [1], [0, 0, 1, 1], [], []>} : vector<16x32xbf16>, vector<32x64xbf16>, vector<16x64xf32> -> vector<16x64xf32>
    %456 = vector.extract_strided_slice %455 {offsets = [0, 0], sizes = [16, 32], strides = [1, 1]} : vector<16x64xf32> to vector<16x32xf32>
    %457 = vector.shape_cast %456 : vector<16x32xf32> to vector<2x8x32xf32>
    %458 = vector.extract_strided_slice %455 {offsets = [0, 32], sizes = [16, 32], strides = [1, 1]} : vector<16x64xf32> to vector<16x32xf32>
    %459 = vector.shape_cast %458 : vector<16x32xf32> to vector<2x8x32xf32>
    %460 = vector.shape_cast %457 : vector<2x8x32xf32> to vector<2x8x1x32xf32>
    %461 = vector.shape_cast %459 : vector<2x8x32xf32> to vector<2x1x8x32xf32>
    %462 = vector.broadcast %460 : vector<2x8x1x32xf32> to vector<2x8x8x32xf32>
    %463 = vector.broadcast %461 : vector<2x1x8x32xf32> to vector<2x8x8x32xf32>
    %464 = arith.addf %462, %463 : vector<2x8x8x32xf32>
    %c0_177 = arith.constant 0 : index
    %c0_178 = arith.constant 0 : index
    %465 = vector.load %arg23[%c0_177, %c0_178] : memref<1x32xf32, #tpu.memory_space<vmem>>, vector<1x32xf32>
    %466 = vector.shape_cast %465 : vector<1x32xf32> to vector<1x1x1x32xf32>
    %467 = vector.broadcast %466 : vector<1x1x1x32xf32> to vector<2x8x8x32xf32>
    %468 = arith.addf %464, %467 : vector<2x8x8x32xf32>
    %cst_179 = arith.constant 0.000000e+00 : f32
    %469 = vector.broadcast %cst_179 : f32 to vector<2x8x8x32xf32>
    %470 = arith.cmpf ogt, %468, %469 : vector<2x8x8x32xf32>
    %471 = math.exp %468 : vector<2x8x8x32xf32>
    %cst_180 = arith.constant 1.000000e+00 : f32
    %472 = vector.broadcast %cst_180 : f32 to vector<2x8x8x32xf32>
    %473 = arith.subf %471, %472 : vector<2x8x8x32xf32>
    %cst_181 = arith.constant 1.67326319 : f32
    %474 = vector.broadcast %cst_181 : f32 to vector<2x8x8x32xf32>
    %475 = arith.mulf %474, %473 : vector<2x8x8x32xf32>
    %476 = arith.select %470, %468, %475 : vector<2x8x8x32xi1>, vector<2x8x8x32xf32>
    %cst_182 = arith.constant 1.05070102 : f32
    %477 = vector.broadcast %cst_182 : f32 to vector<2x8x8x32xf32>
    %478 = arith.mulf %477, %476 : vector<2x8x8x32xf32>
    %479 = vector.shape_cast %478 : vector<2x8x8x32xf32> to vector<128x32xf32>
    %480 = arith.truncf %479 : vector<128x32xf32> to vector<128x32xbf16>
    %c0_183 = arith.constant 0 : index
    %c0_184 = arith.constant 0 : index
    %481 = vector.load %arg24[%c0_183, %c0_184] : memref<32x5xbf16, #tpu.memory_space<vmem>>, vector<32x5xbf16>
    %cst_185 = arith.constant dense<0.000000e+00> : vector<128x5xf32>
    %482 = tpu.matmul %480, %481, %cst_185 {dimension_numbers = #tpu.dot_dimension_numbers<[1], [0], [0], [1], [0, 0, 1, 1], [], []>} : vector<128x32xbf16>, vector<32x5xbf16>, vector<128x5xf32> -> vector<128x5xf32>
    %c0_186 = arith.constant 0 : index
    %c0_187 = arith.constant 0 : index
    %483 = vector.load %arg25[%c0_186, %c0_187] : memref<1x5xf32, #tpu.memory_space<vmem>>, vector<1x5xf32>
    %484 = vector.broadcast %483 : vector<1x5xf32> to vector<128x5xf32>
    %485 = arith.addf %482, %484 : vector<128x5xf32>
    %486 = vector.shape_cast %485 : vector<128x5xf32> to vector<2x8x8x5xf32>
    %c0_188 = arith.constant 0 : index
    %c0_189 = arith.constant 0 : index
    %c0_190 = arith.constant 0 : index
    %c0_191 = arith.constant 0 : index
    %487 = vector.load %arg26[%c0_188, %c0_189, %c0_190, %c0_191] : memref<2x8x8x5xf32, #tpu.memory_space<vmem>>, vector<2x8x8x5xf32>
    tpu.vector_store %arg26[%c0_188, %c0_189, %c0_190, %c0_191], %486 {strides = array<i32>} : memref<2x8x8x5xf32, #tpu.memory_space<vmem>>, vector<2x8x8x5xf32>,
    return
  }
  func.func @transform_0(%arg0: i32) -> (i32, i32) {
    %c0_i32 = arith.constant 0 : i32
    %c0_i32_0 = arith.constant 0 : i32
    %c0_i32_1 = arith.constant 0 : i32
    return %c0_i32, %c0_i32_0 : i32, i32
  }
  func.func @transform_1(%arg0: i32) -> (i32, i32) {
    %c0_i32 = arith.constant 0 : i32
    %c0_i32_0 = arith.constant 0 : i32
    %c0_i32_1 = arith.constant 0 : i32
    return %c0_i32, %c0_i32_0 : i32, i32
  }
  func.func @transform_2(%arg0: i32) -> (i32, i32) {
    %c0_i32 = arith.constant 0 : i32
    %c0_i32_0 = arith.constant 0 : i32
    %c0_i32_1 = arith.constant 0 : i32
    return %c0_i32, %c0_i32_0 : i32, i32
  }
  func.func @transform_3(%arg0: i32) -> (i32, i32) {
    %c0_i32 = arith.constant 0 : i32
    %c0_i32_0 = arith.constant 0 : i32
    %c0_i32_1 = arith.constant 0 : i32
    return %c0_i32, %c0_i32_0 : i32, i32
  }
  func.func @transform_4(%arg0: i32) -> (i32, i32) {
    %c0_i32 = arith.constant 0 : i32
    %c0_i32_0 = arith.constant 0 : i32
    %c0_i32_1 = arith.constant 0 : i32
    return %c0_i32, %c0_i32_0 : i32, i32
  }
  func.func @transform_5(%arg0: i32) -> (i32, i32) {
    %c0_i32 = arith.constant 0 : i32
    %c0_i32_0 = arith.constant 0 : i32
    %c0_i32_1 = arith.constant 0 : i32
    return %c0_i32, %c0_i32_0 : i32, i32
  }
  func.func @transform_6(%arg0: i32) -> (i32, i32) {
    %c0_i32 = arith.constant 0 : i32
    %c0_i32_0 = arith.constant 0 : i32
    %c0_i32_1 = arith.constant 0 : i32
    return %c0_i32, %c0_i32_0 : i32, i32
  }
  func.func @transform_7(%arg0: i32) -> (i32, i32) {
    %c0_i32 = arith.constant 0 : i32
    %c0_i32_0 = arith.constant 0 : i32
    %c0_i32_1 = arith.constant 0 : i32
    return %c0_i32, %c0_i32_0 : i32, i32
  }
  func.func @transform_8(%arg0: i32) -> (i32, i32) {
    %c0_i32 = arith.constant 0 : i32
    %c0_i32_0 = arith.constant 0 : i32
    %c0_i32_1 = arith.constant 0 : i32
    return %c0_i32, %c0_i32_0 : i32, i32
  }
  func.func @transform_9(%arg0: i32) -> (i32, i32, i32) {
    %c0_i32 = arith.constant 0 : i32
    %c0_i32_0 = arith.constant 0 : i32
    %c0_i32_1 = arith.constant 0 : i32
    %c0_i32_2 = arith.constant 0 : i32
    return %c0_i32, %c0_i32_0, %c0_i32_1 : i32, i32, i32
  }
  func.func @transform_10(%arg0: i32) -> (i32, i32, i32) {
    %c0_i32 = arith.constant 0 : i32
    %c0_i32_0 = arith.constant 0 : i32
    %c0_i32_1 = arith.constant 0 : i32
    %c0_i32_2 = arith.constant 0 : i32
    return %c0_i32, %c0_i32_0, %c0_i32_1 : i32, i32, i32
  }
  func.func @transform_11(%arg0: i32) -> (i32, i32, i32) {
    %c0_i32 = arith.constant 0 : i32
    %c0_i32_0 = arith.constant 0 : i32
    %c0_i32_1 = arith.constant 0 : i32
    %c0_i32_2 = arith.constant 0 : i32
    return %c0_i32, %c0_i32_0, %c0_i32_1 : i32, i32, i32
  }
  func.func @transform_12(%arg0: i32) -> (i32, i32, i32) {
    %c0_i32 = arith.constant 0 : i32
    %c0_i32_0 = arith.constant 0 : i32
    %c0_i32_1 = arith.constant 0 : i32
    %c0_i32_2 = arith.constant 0 : i32
    return %c0_i32, %c0_i32_0, %c0_i32_1 : i32, i32, i32
  }
  func.func @transform_13(%arg0: i32) -> (i32, i32, i32) {
    %c0_i32 = arith.constant 0 : i32
    %c0_i32_0 = arith.constant 0 : i32
    %c0_i32_1 = arith.constant 0 : i32
    %c0_i32_2 = arith.constant 0 : i32
    return %c0_i32, %c0_i32_0, %c0_i32_1 : i32, i32, i32
  }
  func.func @transform_14(%arg0: i32) -> (i32, i32, i32) {
    %c0_i32 = arith.constant 0 : i32
    %c0_i32_0 = arith.constant 0 : i32
    %c0_i32_1 = arith.constant 0 : i32
    %c0_i32_2 = arith.constant 0 : i32
    return %c0_i32, %c0_i32_0, %c0_i32_1 : i32, i32, i32
  }
  func.func @transform_15(%arg0: i32) -> (i32, i32, i32) {
    %c0_i32 = arith.constant 0 : i32
    %c0_i32_0 = arith.constant 0 : i32
    %c0_i32_1 = arith.constant 0 : i32
    %c0_i32_2 = arith.constant 0 : i32
    return %c0_i32, %c0_i32_0, %c0_i32_1 : i32, i32, i32
  }
  func.func @transform_16(%arg0: i32) -> (i32, i32, i32) {
    %c0_i32 = arith.constant 0 : i32
    %c0_i32_0 = arith.constant 0 : i32
    %c0_i32_1 = arith.constant 0 : i32
    %c0_i32_2 = arith.constant 0 : i32
    return %c0_i32, %c0_i32_0, %c0_i32_1 : i32, i32, i32
  }
  func.func @transform_17(%arg0: i32) -> (i32, i32, i32) {
    %c0_i32 = arith.constant 0 : i32
    %c0_i32_0 = arith.constant 0 : i32
    %c0_i32_1 = arith.constant 0 : i32
    %c0_i32_2 = arith.constant 0 : i32
    return %c0_i32, %c0_i32_0, %c0_i32_1 : i32, i32, i32
  }
  func.func @transform_18(%arg0: i32) -> (i32, i32, i32) {
    %c0_i32 = arith.constant 0 : i32
    %c0_i32_0 = arith.constant 0 : i32
    %c0_i32_1 = arith.constant 0 : i32
    %c0_i32_2 = arith.constant 0 : i32
    return %c0_i32, %c0_i32_0, %c0_i32_1 : i32, i32, i32
  }
  func.func @transform_19(%arg0: i32) -> (i32, i32, i32) {
    %c0_i32 = arith.constant 0 : i32
    %c0_i32_0 = arith.constant 0 : i32
    %c0_i32_1 = arith.constant 0 : i32
    %c0_i32_2 = arith.constant 0 : i32
    return %c0_i32, %c0_i32_0, %c0_i32_1 : i32, i32, i32
  }
  func.func @transform_20(%arg0: i32) -> (i32, i32, i32) {
    %c0_i32 = arith.constant 0 : i32
    %c0_i32_0 = arith.constant 0 : i32
    %c0_i32_1 = arith.constant 0 : i32
    %c0_i32_2 = arith.constant 0 : i32
    return %c0_i32, %c0_i32_0, %c0_i32_1 : i32, i32, i32
  }
  func.func @transform_21(%arg0: i32) -> (i32, i32) {
    %c0_i32 = arith.constant 0 : i32
    %c0_i32_0 = arith.constant 0 : i32
    %c0_i32_1 = arith.constant 0 : i32
    return %c0_i32, %c0_i32_0 : i32, i32
  }
  func.func @transform_22(%arg0: i32) -> (i32, i32) {
    %c0_i32 = arith.constant 0 : i32
    %c0_i32_0 = arith.constant 0 : i32
    %c0_i32_1 = arith.constant 0 : i32
    return %c0_i32, %c0_i32_0 : i32, i32
  }
  func.func @transform_23(%arg0: i32) -> (i32, i32) {
    %c0_i32 = arith.constant 0 : i32
    %c0_i32_0 = arith.constant 0 : i32
    %c0_i32_1 = arith.constant 0 : i32
    return %c0_i32, %c0_i32_0 : i32, i32
  }
  func.func @transform_24(%arg0: i32) -> (i32, i32) {
    %c0_i32 = arith.constant 0 : i32
    %c0_i32_0 = arith.constant 0 : i32
    %c0_i32_1 = arith.constant 0 : i32
    return %c0_i32, %c0_i32_0 : i32, i32
  }
  func.func @transform_25(%arg0: i32) -> (i32, i32, i32, i32) {
    %c0_i32 = arith.constant 0 : i32
    %c0_i32_0 = arith.constant 0 : i32
    %c0_i32_1 = arith.constant 0 : i32
    %c0_i32_2 = arith.constant 0 : i32
    %c0_i32_3 = arith.constant 0 : i32
    return %c0_i32, %c0_i32_0, %c0_i32_1, %c0_i32_2 : i32, i32, i32, i32
  }
}

</mosaic_0001>

<llo_original>
// kernel: forward.1
$region0: #{forward.1}
  #allocation0 [shape = 'u32[]', space=smem, size = 0x4, offset = 0x4, fixed_abs, tag = 'smem constant byte address 0x4 - core index']
  #allocation1 [shape = 'u32[144,128]{1,0:T(1,128)}', space=vmem, size = 0x12000, scoped, tag = 'internal scratch']
  %s0 = inlined_call_operand.vmem [shape: f32[16,3], index: 0, kind: input, shape index: {}]
  %s1 = inlined_call_operand.vmem [shape: f32[16,16], index: 1, kind: input, shape index: {}]
  %s2 = inlined_call_operand.vmem [shape: f32[3,8], index: 2, kind: input, shape index: {}]
  %s3 = inlined_call_operand.vmem [shape: f32[1,8], index: 3, kind: input, shape index: {}]
  %s4 = inlined_call_operand.vmem [shape: bf16[8,16], index: 4, kind: input, shape index: {}]
  %s5 = inlined_call_operand.vmem [shape: f32[1,16], index: 5, kind: input, shape index: {}]
  %s6 = inlined_call_operand.vmem [shape: bf16[16,32], index: 6, kind: input, shape index: {}]
  %s7 = inlined_call_operand.vmem [shape: bf16[16,32], index: 7, kind: input, shape index: {}]
  %s8 = inlined_call_operand.vmem [shape: f32[1,32], index: 8, kind: input, shape index: {}]
  %s9 = inlined_call_operand.vmem [shape: bf16[2,32,96], index: 9, kind: input, shape index: {}]
  %s10 = inlined_call_operand.vmem [shape: f32[2,1,96], index: 10, kind: input, shape index: {}]
  %s11 = inlined_call_operand.vmem [shape: bf16[2,32,32], index: 11, kind: input, shape index: {}]
  %s12 = inlined_call_operand.vmem [shape: f32[2,1,32], index: 12, kind: input, shape index: {}]
  %s13 = inlined_call_operand.vmem [shape: f32[2,1,32], index: 13, kind: input, shape index: {}]
  %s14 = inlined_call_operand.vmem [shape: f32[2,1,32], index: 14, kind: input, shape index: {}]
  %s15 = inlined_call_operand.vmem [shape: bf16[2,32,128], index: 15, kind: input, shape index: {}]
  %s16 = inlined_call_operand.vmem [shape: f32[2,1,128], index: 16, kind: input, shape index: {}]
  %s17 = inlined_call_operand.vmem [shape: bf16[2,128,32], index: 17, kind: input, shape index: {}]
  %s18 = inlined_call_operand.vmem [shape: f32[2,1,32], index: 18, kind: input, shape index: {}]
  %s19 = inlined_call_operand.vmem [shape: f32[2,1,32], index: 19, kind: input, shape index: {}]
  %s20 = inlined_call_operand.vmem [shape: f32[2,1,32], index: 20, kind: input, shape index: {}]
  %s21 = inlined_call_operand.vmem [shape: bf16[32,64], index: 21, kind: input, shape index: {}]
  %s22 = inlined_call_operand.vmem [shape: f32[1,32], index: 22, kind: input, shape index: {}]
  %s23 = inlined_call_operand.vmem [shape: bf16[32,5], index: 23, kind: input, shape index: {}]
  %s24 = inlined_call_operand.vmem [shape: f32[1,5], index: 24, kind: input, shape index: {}]
  %s25 = inlined_call_operand.vmem [shape: f32[2,8,8,5], index: 25, kind: output, shape index: {}]
  %s26 = sld [smem:[#allocation0]]
  $region110: #{forward.1} parent=0
    _
  %s28 = ssub.s32 1, %s26
  %s29 = scalar_select 0, %s28, %s26
  // Predicated region
  $region2: #{forward.1} parent=0 // pred_check
    _
  $region3: #{forward.1} parent=0 // pred_check_branch
    %31 = sbr.rel (0) target = $region5
  $region4: #{forward.1} parent=0 // pred_region
    _
  $region5: #{forward.1} parent=0 // pred_fallthru
    _
  // Predicated region
  $region6: #{forward.1} parent=0 // pred_check
    _
  $region7: #{forward.1} parent=0 // pred_check_branch
    %33 = sbr.rel (0) target = $region9
  $region8: #{forward.1} parent=0 // pred_region
    _
  $region9: #{forward.1} parent=0 // pred_fallthru
    _
  // Predicated region
  $region10: #{forward.1} parent=0 // pred_check
    _
  $region11: #{forward.1} parent=0 // pred_check_branch
    %35 = sbr.rel (0) target = $region13
  $region12: #{forward.1} parent=0 // pred_region
    _
  $region13: #{forward.1} parent=0 // pred_fallthru
    _
  // Predicated region
  $region14: #{forward.1} parent=0 // pred_check
    _
  $region15: #{forward.1} parent=0 // pred_check_branch
    %37 = sbr.rel (0) target = $region17
  $region16: #{forward.1} parent=0 // pred_region
    _
  $region17: #{forward.1} parent=0 // pred_fallthru
    _
  // Predicated region
  $region18: #{forward.1} parent=0 // pred_check
    _
  $region19: #{forward.1} parent=0 // pred_check_branch
    %39 = sbr.rel (0) target = $region21
  $region20: #{forward.1} parent=0 // pred_region
    _
  $region21: #{forward.1} parent=0 // pred_fallthru
    _
  // Predicated region
  $region22: #{forward.1} parent=0 // pred_check
    _
  $region23: #{forward.1} parent=0 // pred_check_branch
    %41 = sbr.rel (0) target = $region25
  $region24: #{forward.1} parent=0 // pred_region
    _
  $region25: #{forward.1} parent=0 // pred_fallthru
    _
  // Predicated region
  $region26: #{forward.1} parent=0 // pred_check
    _
  $region27: #{forward.1} parent=0 // pred_check_branch
    %43 = sbr.rel (0) target = $region29
  $region28: #{forward.1} parent=0 // pred_region
    _
  $region29: #{forward.1} parent=0 // pred_fallthru
    _
  // Predicated region
  $region30: #{forward.1} parent=0 // pred_check
    _
  $region31: #{forward.1} parent=0 // pred_check_branch
    %45 = sbr.rel (0) target = $region33
  $region32: #{forward.1} parent=0 // pred_region
    _
  $region33: #{forward.1} parent=0 // pred_fallthru
    _
  // Predicated region
  $region34: #{forward.1} parent=0 // pred_check
    _
  $region35: #{forward.1} parent=0 // pred_check_branch
    %47 = sbr.rel (0) target = $region37
  $region36: #{forward.1} parent=0 // pred_region
    _
  $region37: #{forward.1} parent=0 // pred_fallthru
    _
  // Predicated region
  $region38: #{forward.1} parent=0 // pred_check
    _
  $region39: #{forward.1} parent=0 // pred_check_branch
    %49 = sbr.rel (0) target = $region41
  $region40: #{forward.1} parent=0 // pred_region
    _
  $region41: #{forward.1} parent=0 // pred_fallthru
    _
  // Predicated region
  $region42: #{forward.1} parent=0 // pred_check
    _
  $region43: #{forward.1} parent=0 // pred_check_branch
    %51 = sbr.rel (0) target = $region45
  $region44: #{forward.1} parent=0 // pred_region
    _
  $region45: #{forward.1} parent=0 // pred_fallthru
    _
  // Predicated region
  $region46: #{forward.1} parent=0 // pred_check
    _
  $region47: #{forward.1} parent=0 // pred_check_branch
    %53 = sbr.rel (0) target = $region49
  $region48: #{forward.1} parent=0 // pred_region
    _
  $region49: #{forward.1} parent=0 // pred_fallthru
    _
  // Predicated region
  $region50: #{forward.1} parent=0 // pred_check
    _
  $region51: #{forward.1} parent=0 // pred_check_branch
    %55 = sbr.rel (0) target = $region53
  $region52: #{forward.1} parent=0 // pred_region
    _
  $region53: #{forward.1} parent=0 // pred_fallthru
    _
  // Predicated region
  $region54: #{forward.1} parent=0 // pred_check
    _
  $region55: #{forward.1} parent=0 // pred_check_branch
    %57 = sbr.rel (0) target = $region57
  $region56: #{forward.1} parent=0 // pred_region
    _
  $region57: #{forward.1} parent=0 // pred_fallthru
    _
  // Predicated region
  $region58: #{forward.1} parent=0 // pred_check
    _
  $region59: #{forward.1} parent=0 // pred_check_branch
    %59 = sbr.rel (0) target = $region61
  $region60: #{forward.1} parent=0 // pred_region
    _
  $region61: #{forward.1} parent=0 // pred_fallthru
    _
  // Predicated region
  $region62: #{forward.1} parent=0 // pred_check
    _
  $region63: #{forward.1} parent=0 // pred_check_branch
    %61 = sbr.rel (0) target = $region65
  $region64: #{forward.1} parent=0 // pred_region
    _
  $region65: #{forward.1} parent=0 // pred_fallthru
    _
  // Predicated region
  $region66: #{forward.1} parent=0 // pred_check
    _
  $region67: #{forward.1} parent=0 // pred_check_branch
    %63 = sbr.rel (0) target = $region69
  $region68: #{forward.1} parent=0 // pred_region
    _
  $region69: #{forward.1} parent=0 // pred_fallthru
    _
  // Predicated region
  $region70: #{forward.1} parent=0 // pred_check
    _
  $region71: #{forward.1} parent=0 // pred_check_branch
    %65 = sbr.rel (0) target = $region73
  $region72: #{forward.1} parent=0 // pred_region
    _
  $region73: #{forward.1} parent=0 // pred_fallthru
    _
  // Predicated region
  $region74: #{forward.1} parent=0 // pred_check
    _
  $region75: #{forward.1} parent=0 // pred_check_branch
    %67 = sbr.rel (0) target = $region77
  $region76: #{forward.1} parent=0 // pred_region
    _
  $region77: #{forward.1} parent=0 // pred_fallthru
    _
  // Predicated region
  $region78: #{forward.1} parent=0 // pred_check
    _
  $region79: #{forward.1} parent=0 // pred_check_branch
    %69 = sbr.rel (0) target = $region81
  $region80: #{forward.1} parent=0 // pred_region
    _
  $region81: #{forward.1} parent=0 // pred_fallthru
    _
  // Predicated region
  $region82: #{forward.1} parent=0 // pred_check
    _
  $region83: #{forward.1} parent=0 // pred_check_branch
    %71 = sbr.rel (0) target = $region85
  $region84: #{forward.1} parent=0 // pred_region
    _
  $region85: #{forward.1} parent=0 // pred_fallthru
    _
  // Predicated region
  $region86: #{forward.1} parent=0 // pred_check
    _
  $region87: #{forward.1} parent=0 // pred_check_branch
    %73 = sbr.rel (0) target = $region89
  $region88: #{forward.1} parent=0 // pred_region
    _
  $region89: #{forward.1} parent=0 // pred_fallthru
    _
  // Predicated region
  $region90: #{forward.1} parent=0 // pred_check
    _
  $region91: #{forward.1} parent=0 // pred_check_branch
    %75 = sbr.rel (0) target = $region93
  $region92: #{forward.1} parent=0 // pred_region
    _
  $region93: #{forward.1} parent=0 // pred_fallthru
    _
  // Predicated region
  $region94: #{forward.1} parent=0 // pred_check
    _
  $region95: #{forward.1} parent=0 // pred_check_branch
    %77 = sbr.rel (0) target = $region97
  $region96: #{forward.1} parent=0 // pred_region
    _
  $region97: #{forward.1} parent=0 // pred_fallthru
    _
  // Predicated region
  $region98: #{forward.1} parent=0 // pred_check
    _
  $region99: #{forward.1} parent=0 // pred_check_branch
    %79 = sbr.rel (0) target = $region101
  $region100: #{forward.1} parent=0 // pred_region
    _
  $region101: #{forward.1} parent=0 // pred_fallthru
    _
  %v81 = vld [vmem:[%s0] sm:$0xff]
  %v82 = vld [vmem:[%s0 + $0x8] sm:$0xff]
  %v83 = vld [vmem:[%s2] sm:$0x7]
  %85 = vset.pattern.permute.xlu0 0
  %86 = vperm.xlu0 %85, %v81
  %v87 = vpop.permute.xlu0 %86
  %90 = vset.pattern.permute.xlu0 0
  %91 = vperm.xlu0 %90, %v82
  %v92 = vpop.permute.xlu0 %91
  %v94 = vlaneseq
  %v95 = vshrl.u32 %v94, 7
  %v96 = vsub.s32 0, %v95
  %v97 = vrot.slane %v83, %v96
  %v98 = vmul.f32 %v87, %v97
  %v99 = vmul.f32 %v92, %v97
  %100 = vset.pattern.permute.xlu0 1
  %101 = vperm.xlu0 %100, %v81
  %v102 = vpop.permute.xlu0 %101
  %104 = vset.pattern.permute.xlu0 1
  %105 = vperm.xlu0 %104, %v82
  %v106 = vpop.permute.xlu0 %105
  %v108 = vlaneseq
  %v109 = vshrl.u32 %v108, 7
  %v110 = vsub.s32 1, %v109
  %v111 = vrot.slane %v83, %v110
  %v112 = vmul.f32 %v102, %v111
  %v113 = vmul.f32 %v106, %v111
  %v114 = vadd.f32 %v98, %v112
  %v115 = vadd.f32 %v99, %v113
  %116 = vset.pattern.permute.xlu0 2
  %117 = vperm.xlu0 %116, %v81
  %v118 = vpop.permute.xlu0 %117
  %120 = vset.pattern.permute.xlu0 2
  %121 = vperm.xlu0 %120, %v82
  %v122 = vpop.permute.xlu0 %121
  %v124 = vlaneseq
  %v125 = vshrl.u32 %v124, 7
  %v126 = vsub.s32 2, %v125
  %v127 = vrot.slane %v83, %v126
  %v128 = vmul.f32 %v118, %v127
  %v129 = vmul.f32 %v122, %v127
  %v130 = vadd.f32 %v114, %v128
  %v131 = vadd.f32 %v115, %v129
  %v132 = vld [vmem:[%s3] sm:$0x1]
  %v134 = vlaneseq
  %v135 = vshrl.u32 %v134, 7
  %v136 = vsub.s32 0, %v135
  %v137 = vrot.slane %v132, %v136
  %v139 = vadd.f32 %v130, %v137
  %v140 = vadd.f32 %v131, %v137
  %vm141 = vcmp.gt.f32.partialorder %v139, 0.0
  %vm142 = vcmp.gt.f32.partialorder %v140, 0.0
  %v143 = vmul.f32 %v139, 1.442695
  %v144 = vpow.pop %v143
  %v145 = vmul.f32 %v140, 1.442695
  %v146 = vpow.pop %v145
  %v147 = vsub.f32 %v144, 1.0
  %v148 = vsub.f32 %v146, 1.0
  %v149 = vmul.f32 %v147, 1.6732632
  %v150 = vmul.f32 %v148, 1.6732632
  %v151 = vsel %vm141, %v139, %v149
  %v152 = vsel %vm142, %v140, %v150
  %v153 = vmul.f32 %v151, 1.050701
  %v154 = vmul.f32 %v152, 1.050701
  %v155 = vpack.c.bf16 %v154, %v153
  %v156 = vld [vmem:[%s4] sm:$0xf]
  %v157 = vld [vmem:[%s5] sm:$0x1]
  %v159 = vlaneseq
  %v160 = vshrl.u32 %v159, 7
  %v161 = vsub.s32 0, %v160
  %v162 = vrot.slane %v157, %v161
  %vm164 = vcmask 64512
  %v166 = vsel %vm164, %v155, 0
  %vm168 = vcmask 1043456
  %v170 = vsel %vm168, %v156, 0
  %172 = vmatprep.subr.bf16.mxu0 0
  %173 = vmatpush1.bf16.msra.mxu0 0
  %174 = vmatprep.subr.bf16.mxu0 0
  %175 = vmatpush1.bf16.msra.mxu0 0
  %176 = vmatprep.subr.bf16.mxu0 0
  %177 = vmatpush1.bf16.msra.mxu0 0
  %178 = vmatprep.subr.bf16.mxu0 0
  %179 = vmatpush1.bf16.msra.mxu0 0
  %180 = vmatprep.subr.bf16.mxu0 0
  %181 = vmatpush1.bf16.msra.mxu0 0
  %182 = vmatprep.subr.bf16.mxu0 0
  %183 = vmatpush1.bf16.msra.mxu0 0
  %184 = vmatprep.subr.bf16.mxu0 0
  %185 = vmatpush1.bf16.msra.mxu0 0
  %186 = vmatprep.subr.bf16.mxu0 0
  %187 = vmatpush1.bf16.msra.mxu0 %v170
  %188 = vmatprep.subr.bf16.mxu0 0
  %189 = vmatpush2.bf16.msra.mxu0 0
  %190 = vmatprep.subr.bf16.mxu0 0
  %191 = vmatpush2.bf16.msra.mxu0 0
  %192 = vmatprep.subr.bf16.mxu0 0
  %193 = vmatpush2.bf16.msra.mxu0 0
  %194 = vmatprep.subr.bf16.mxu0 0
  %195 = vmatpush2.bf16.msra.mxu0 0
  %196 = vmatprep.subr.bf16.mxu0 0
  %197 = vmatpush2.bf16.msra.mxu0 0
  %198 = vmatprep.subr.bf16.mxu0 0
  %199 = vmatpush2.bf16.msra.mxu0 0
  %200 = vmatprep.subr.bf16.mxu0 0
  %201 = vmatpush2.bf16.msra.mxu0 0
  %202 = vmatprep.subr.bf16.mxu0 0
  %203 = vmatpush2.bf16.msra.mxu0 0
  %204 = vmatprep.mubr.bf16.mxu0 0
  %205 = vmatmul.mubr.bf16.gmra.mxu0 %v166
  %v206 = vpop.f32.mrf.mxu0
  %v207 = vadd.f32 %v162, %v206
  %v208 = vpop.f32.mrf.mxu0
  %v209 = vpop.f32.mrf.mxu0
  %v210 = vadd.f32 %v162, %v209
  %v211 = vpop.f32.mrf.mxu0
  %212 = vdwg.mxu0
  %v213 = vpack.c.bf16 %v210, %v207
  %v214 = vld [vmem:[%s6] sm:$0xf]
  %v215 = vld [vmem:[%s6 + $0x4] sm:$0xf]
  %v216 = vld [vmem:[%s1] sm:$0xff]
  %v217 = vld [vmem:[%s1 + $0x8] sm:$0xff]
  %v218 = vpack.c.bf16 %v217, %v216
  %v219 = vld [vmem:[%s7] sm:$0xf]
  %v220 = vld [vmem:[%s7 + $0x4] sm:$0xf]
  %v223 = vunpack.c.l.b16 %v219
  %v224 = vunpack.c.l.b16 %v220
  %v225 = vpack.c.b16 %v224, %v223
  %vm227 = vcmask 130048
  %v229 = vsel %vm227, %v218, 0
  %231 = vmatprep.subr.bf16.mxu0 0
  %232 = vmatpush1.bf16.msra.mxu0 0
  %233 = vmatprep.subr.bf16.mxu0 0
  %234 = vmatpush1.bf16.msra.mxu0 0
  %235 = vmatprep.subr.bf16.mxu0 0
  %236 = vmatpush1.bf16.msra.mxu0 0
  %237 = vmatprep.subr.bf16.mxu0 0
  %238 = vmatpush1.bf16.msra.mxu0 0
  %239 = vmatprep.subr.bf16.mxu0 0
  %240 = vmatpush1.bf16.msra.mxu0 0
  %241 = vmatprep.subr.bf16.mxu0 0
  %242 = vmatpush1.bf16.msra.mxu0 0
  %243 = vmatprep.subr.bf16.mxu0 0
  %244 = vmatpush1.bf16.msra.mxu0 0
  %245 = vmatprep.subr.bf16.mxu0 0
  %246 = vmatpush1.bf16.msra.mxu0 %v225
  %247 = vmatprep.subr.bf16.mxu0 0
  %248 = vmatpush2.bf16.msra.mxu0 0
  %249 = vmatprep.subr.bf16.mxu0 0
  %250 = vmatpush2.bf16.msra.mxu0 0
  %251 = vmatprep.subr.bf16.mxu0 0
  %252 = vmatpush2.bf16.msra.mxu0 0
  %253 = vmatprep.subr.bf16.mxu0 0
  %254 = vmatpush2.bf16.msra.mxu0 0
  %255 = vmatprep.subr.bf16.mxu0 0
  %256 = vmatpush2.bf16.msra.mxu0 0
  %257 = vmatprep.subr.bf16.mxu0 0
  %258 = vmatpush2.bf16.msra.mxu0 0
  %259 = vmatprep.subr.bf16.mxu0 0
  %260 = vmatpush2.bf16.msra.mxu0 0
  %261 = vmatprep.subr.bf16.mxu0 0
  %262 = vmatpush2.bf16.msra.mxu0 0
  %263 = vmatprep.mubr.bf16.mxu0 0
  %264 = vmatmul.mubr.bf16.gmra.mxu0 %v229
  %v265 = vpop.f32.mrf.mxu0
  %v266 = vadd.f32 0.0, %v265
  %v267 = vpop.f32.mrf.mxu0
  %v268 = vpop.f32.mrf.mxu0
  %v269 = vadd.f32 0.0, %v268
  %v270 = vpop.f32.mrf.mxu0
  %271 = vdwg.mxu0
  %v274 = vunpack.c.l.b16 %v214
  %v275 = vunpack.c.l.b16 %v215
  %v276 = vpack.c.b16 %v275, %v274
  %v279 = vsel %vm227, %v213, 0
  %281 = vmatprep.subr.bf16.mxu0 0
  %282 = vmatpush1.bf16.msra.mxu0 0
  %283 = vmatprep.subr.bf16.mxu0 0
  %284 = vmatpush1.bf16.msra.mxu0 0
  %285 = vmatprep.subr.bf16.mxu0 0
  %286 = vmatpush1.bf16.msra.mxu0 0
  %287 = vmatprep.subr.bf16.mxu0 0
  %288 = vmatpush1.bf16.msra.mxu0 0
  %289 = vmatprep.subr.bf16.mxu0 0
  %290 = vmatpush1.bf16.msra.mxu0 0
  %291 = vmatprep.subr.bf16.mxu0 0
  %292 = vmatpush1.bf16.msra.mxu0 0
  %293 = vmatprep.subr.bf16.mxu0 0
  %294 = vmatpush1.bf16.msra.mxu0 0
  %295 = vmatprep.subr.bf16.mxu0 0
  %296 = vmatpush1.bf16.msra.mxu0 %v276
  %297 = vmatprep.subr.bf16.mxu0 0
  %298 = vmatpush2.bf16.msra.mxu0 0
  %299 = vmatprep.subr.bf16.mxu0 0
  %300 = vmatpush2.bf16.msra.mxu0 0
  %301 = vmatprep.subr.bf16.mxu0 0
  %302 = vmatpush2.bf16.msra.mxu0 0
  %303 = vmatprep.subr.bf16.mxu0 0
  %304 = vmatpush2.bf16.msra.mxu0 0
  %305 = vmatprep.subr.bf16.mxu0 0
  %306 = vmatpush2.bf16.msra.mxu0 0
  %307 = vmatprep.subr.bf16.mxu0 0
  %308 = vmatpush2.bf16.msra.mxu0 0
  %309 = vmatprep.subr.bf16.mxu0 0
  %310 = vmatpush2.bf16.msra.mxu0 0
  %311 = vmatprep.subr.bf16.mxu0 0
  %312 = vmatpush2.bf16.msra.mxu0 0
  %313 = vmatprep.mubr.bf16.mxu0 0
  %314 = vmatmul.mubr.bf16.gmra.mxu0 %v279
  %v315 = vpop.f32.mrf.mxu0
  %v316 = vadd.f32 %v266, %v315
  %v317 = vpop.f32.mrf.mxu0
  %v318 = vpop.f32.mrf.mxu0
  %v319 = vadd.f32 %v269, %v318
  %v320 = vpop.f32.mrf.mxu0
  %321 = vdwg.mxu0
  %v322 = vld [vmem:[%s8] sm:$0x1]
  %v324 = vlaneseq
  %v325 = vshrl.u32 %v324, 7
  %v326 = vsub.s32 0, %v325
  %v327 = vrot.slane %v322, %v326
  %v329 = vadd.f32 %v316, %v327
  %v330 = vadd.f32 %v319, %v327
  %vm331 = vcmp.gt.f32.partialorder %v329, 0.0
  %vm332 = vcmp.gt.f32.partialorder %v330, 0.0
  %v333 = vmul.f32 %v329, 1.442695
  %v334 = vpow.pop %v333
  %v335 = vmul.f32 %v330, 1.442695
  %v336 = vpow.pop %v335
  %v337 = vsub.f32 %v334, 1.0
  %v338 = vsub.f32 %v336, 1.0
  %v339 = vmul.f32 %v337, 1.6732632
  %v340 = vmul.f32 %v338, 1.6732632
  %v341 = vsel %vm331, %v329, %v339
  %v342 = vsel %vm332, %v330, %v340
  %v343 = vmul.f32 %v341, 1.050701
  %v344 = vmul.f32 %v342, 1.050701
  %v345 = vpack.c.bf16 %v344, %v343
  %v346 = vld [vmem:[%s9] sm:$0xf]
  %v347 = vld [vmem:[%s9 + $0x4] sm:$0xf]
  %v348 = vld [vmem:[%s9 + $0x8] sm:$0xf]
  %v349 = vld [vmem:[%s9 + $0xc] sm:$0xf]
  %v350 = vld [vmem:[%s10] sm:$0x1]
  %v352 = vlaneseq
  %v353 = vshrl.u32 %v352, 7
  %v354 = vsub.s32 0, %v353
  %v355 = vrot.slane %v350, %v354
  %v361 = vunpack.c.l.b16 %v346
  %v362 = vunpack.c.l.b16 %v347
  %v363 = vunpack.c.l.b16 %v348
  %v364 = vunpack.c.l.b16 %v349
  %v365 = vpack.c.b16 %v362, %v361
  %v366 = vpack.c.b16 %v364, %v363
  %vm369 = vcmask 261120
  %v371 = vsel %vm369, %v345, 0
  %373 = vmatprep.subr.bf16.mxu0 0
  %374 = vmatpush1.bf16.msra.mxu0 0
  %375 = vmatprep.subr.bf16.mxu0 0
  %376 = vmatpush1.bf16.msra.mxu0 0
  %377 = vmatprep.subr.bf16.mxu0 0
  %378 = vmatpush1.bf16.msra.mxu0 0
  %379 = vmatprep.subr.bf16.mxu0 0
  %380 = vmatpush1.bf16.msra.mxu0 0
  %381 = vmatprep.subr.bf16.mxu0 0
  %382 = vmatpush1.bf16.msra.mxu0 0
  %383 = vmatprep.subr.bf16.mxu0 0
  %384 = vmatpush1.bf16.msra.mxu0 0
  %385 = vmatprep.subr.bf16.mxu0 0
  %386 = vmatpush1.bf16.msra.mxu0 %v366
  %387 = vmatprep.subr.bf16.mxu0 0
  %388 = vmatpush1.bf16.msra.mxu0 %v365
  %389 = vmatprep.subr.bf16.mxu0 0
  %390 = vmatpush2.bf16.msra.mxu0 0
  %391 = vmatprep.subr.bf16.mxu0 0
  %392 = vmatpush2.bf16.msra.mxu0 0
  %393 = vmatprep.subr.bf16.mxu0 0
  %394 = vmatpush2.bf16.msra.mxu0 0
  %395 = vmatprep.subr.bf16.mxu0 0
  %396 = vmatpush2.bf16.msra.mxu0 0
  %397 = vmatprep.subr.bf16.mxu0 0
  %398 = vmatpush2.bf16.msra.mxu0 0
  %399 = vmatprep.subr.bf16.mxu0 0
  %400 = vmatpush2.bf16.msra.mxu0 0
  %401 = vmatprep.subr.bf16.mxu0 0
  %402 = vmatpush2.bf16.msra.mxu0 0
  %403 = vmatprep.subr.bf16.mxu0 0
  %404 = vmatpush2.bf16.msra.mxu0 0
  %405 = vmatprep.mubr.bf16.mxu0 0
  %406 = vmatmul.mubr.bf16.gmra.mxu0 %v371
  %v407 = vpop.f32.mrf.mxu0
  %v408 = vadd.f32 %v355, %v407
  %v409 = vpop.f32.mrf.mxu0
  %v410 = vpop.f32.mrf.mxu0
  %v411 = vadd.f32 %v355, %v410
  %v412 = vpop.f32.mrf.mxu0
  %413 = vdwg.mxu0
  %v414 = vpack.c.bf16 %v411, %v408
  %v416 = vunpack.c.l.b16 %v414
  %v417 = vunpack.c.h.b16 %v414
  %v418 = vpack.c.b16 %v416, %v416
  %v419 = vpack.c.b16 %v417, %v417
  %420 = vrot.lane.b32.xlu0 %v418, 96
  %v421 = vpop.permute.xlu0 %420
  %v423 = vsel %vm164, %v418, 0
  %v426 = vsel %vm164, %v421, 0
  %428 = vmatprep.subr.bf16.mxu0 0
  %429 = vmatpush1.bf16.xpose.msra.mxu0 0
  %430 = vmatprep.subr.bf16.mxu0 0
  %431 = vmatpush1.bf16.xpose.msra.mxu0 0
  %432 = vmatprep.subr.bf16.mxu0 0
  %433 = vmatpush1.bf16.xpose.msra.mxu0 0
  %434 = vmatprep.subr.bf16.mxu0 0
  %435 = vmatpush1.bf16.xpose.msra.mxu0 0
  %436 = vmatprep.subr.bf16.mxu0 0
  %437 = vmatpush1.bf16.xpose.msra.mxu0 0
  %438 = vmatprep.subr.bf16.mxu0 0
  %439 = vmatpush1.bf16.xpose.msra.mxu0 0
  %440 = vmatprep.subr.bf16.mxu0 0
  %441 = vmatpush1.bf16.xpose.msra.mxu0 0
  %442 = vmatprep.subr.bf16.mxu0 0
  %443 = vmatpush1.bf16.xpose.msra.mxu0 %v426
  %444 = vmatprep.subr.bf16.mxu0 0
  %445 = vmatpush2.bf16.xpose.msra.mxu0 0
  %446 = vmatprep.subr.bf16.mxu0 0
  %447 = vmatpush2.bf16.xpose.msra.mxu0 0
  %448 = vmatprep.subr.bf16.mxu0 0
  %449 = vmatpush2.bf16.xpose.msra.mxu0 0
  %450 = vmatprep.subr.bf16.mxu0 0
  %451 = vmatpush2.bf16.xpose.msra.mxu0 0
  %452 = vmatprep.subr.bf16.mxu0 0
  %453 = vmatpush2.bf16.xpose.msra.mxu0 0
  %454 = vmatprep.subr.bf16.mxu0 0
  %455 = vmatpush2.bf16.xpose.msra.mxu0 0
  %456 = vmatprep.subr.bf16.mxu0 0
  %457 = vmatpush2.bf16.xpose.msra.mxu0 0
  %458 = vmatprep.subr.bf16.mxu0 0
  %459 = vmatpush2.bf16.xpose.msra.mxu0 0
  %460 = vmatprep.mubr.bf16.mxu0 0
  %461 = vmatmul.mubr.bf16.gmra.mxu0 %v423
  %v462 = vpop.f32.mrf.mxu0
  %v463 = vadd.f32 0.0, %v462
  %v464 = vpop.f32.mrf.mxu0
  %v465 = vpop.f32.mrf.mxu0
  %v466 = vpop.f32.mrf.mxu0
  %467 = vdwg.mxu0
  %468 = vrot.lane.b32.xlu0 %v419, 96
  %v469 = vpop.permute.xlu0 %468
  %v471 = vsel %vm164, %v419, 0
  %v474 = vsel %vm164, %v469, 0
  %476 = vmatprep.subr.bf16.mxu0 0
  %477 = vmatpush1.bf16.xpose.msra.mxu0 0
  %478 = vmatprep.subr.bf16.mxu0 0
  %479 = vmatpush1.bf16.xpose.msra.mxu0 0
  %480 = vmatprep.subr.bf16.mxu0 0
  %481 = vmatpush1.bf16.xpose.msra.mxu0 0
  %482 = vmatprep.subr.bf16.mxu0 0
  %483 = vmatpush1.bf16.xpose.msra.mxu0 0
  %484 = vmatprep.subr.bf16.mxu0 0
  %485 = vmatpush1.bf16.xpose.msra.mxu0 0
  %486 = vmatprep.subr.bf16.mxu0 0
  %487 = vmatpush1.bf16.xpose.msra.mxu0 0
  %488 = vmatprep.subr.bf16.mxu0 0
  %489 = vmatpush1.bf16.xpose.msra.mxu0 0
  %490 = vmatprep.subr.bf16.mxu0 0
  %491 = vmatpush1.bf16.xpose.msra.mxu0 %v474
  %492 = vmatprep.subr.bf16.mxu0 0
  %493 = vmatpush2.bf16.xpose.msra.mxu0 0
  %494 = vmatprep.subr.bf16.mxu0 0
  %495 = vmatpush2.bf16.xpose.msra.mxu0 0
  %496 = vmatprep.subr.bf16.mxu0 0
  %497 = vmatpush2.bf16.xpose.msra.mxu0 0
  %498 = vmatprep.subr.bf16.mxu0 0
  %499 = vmatpush2.bf16.xpose.msra.mxu0 0
  %500 = vmatprep.subr.bf16.mxu0 0
  %501 = vmatpush2.bf16.xpose.msra.mxu0 0
  %502 = vmatprep.subr.bf16.mxu0 0
  %503 = vmatpush2.bf16.xpose.msra.mxu0 0
  %504 = vmatprep.subr.bf16.mxu0 0
  %505 = vmatpush2.bf16.xpose.msra.mxu0 0
  %506 = vmatprep.subr.bf16.mxu0 0
  %507 = vmatpush2.bf16.xpose.msra.mxu0 0
  %508 = vmatprep.mubr.bf16.mxu0 0
  %509 = vmatmul.mubr.bf16.gmra.mxu0 %v471
  %v510 = vpop.f32.mrf.mxu0
  %v511 = vadd.f32 0.0, %v510
  %v512 = vpop.f32.mrf.mxu0
  %v513 = vpop.f32.mrf.mxu0
  %v514 = vpop.f32.mrf.mxu0
  %515 = vdwg.mxu0
  %v516 = vmul.f32 %v463, 0.35355338
  %v517 = vmul.f32 %v511, 0.35355338
  %v518 = vsel %vm164, %v516, -inf
  %519 = vmax.xlane.f32.xlu0 %v518
  %v520 = vpop.xlane.xlu0 %519
  %v521 = vsel %vm164, %v517, -inf
  %522 = vmax.xlane.f32.xlu0 %v521
  %v523 = vpop.xlane.xlu0 %522
  %v524 = vsub.f32 %v516, %v520
  %v525 = vsub.f32 %v517, %v523
  %v526 = vmul.f32 %v524, 1.442695
  %v527 = vpow.pop %v526
  %v528 = vmul.f32 %v525, 1.442695
  %v529 = vpow.pop %v528
  %v530 = vsel %vm164, %v527, 0.0
  %531 = vadd.xlane.f32.xlu0 %v530
  %v532 = vpop.xlane.xlu0 %531
  %v533 = vsel %vm164, %v529, 0.0
  %534 = vadd.xlane.f32.xlu0 %v533
  %v535 = vpop.xlane.xlu0 %534
  %v536 = vrcp.pop %v532
  %v537 = vrcp.pop %v535
  %v538 = vmul.f32 %v527, %v536
  %v539 = vmul.f32 %v529, %v537
  %v540 = vpack.c.bf16 %v538, %v538
  %v541 = vpack.c.bf16 %v539, %v539
  %542 = vrot.lane.b32.xlu0 %v418, 64
  %v543 = vpop.permute.xlu0 %542
  %v545 = vsel %vm164, %v540, 0
  %v548 = vsel %vm168, %v543, 0
  %550 = vmatprep.subr.bf16.mxu0 0
  %551 = vmatpush1.bf16.msra.mxu0 0
  %552 = vmatprep.subr.bf16.mxu0 0
  %553 = vmatpush1.bf16.msra.mxu0 0
  %554 = vmatprep.subr.bf16.mxu0 0
  %555 = vmatpush1.bf16.msra.mxu0 0
  %556 = vmatprep.subr.bf16.mxu0 0
  %557 = vmatpush1.bf16.msra.mxu0 0
  %558 = vmatprep.subr.bf16.mxu0 0
  %559 = vmatpush1.bf16.msra.mxu0 0
  %560 = vmatprep.subr.bf16.mxu0 0
  %561 = vmatpush1.bf16.msra.mxu0 0
  %562 = vmatprep.subr.bf16.mxu0 0
  %563 = vmatpush1.bf16.msra.mxu0 0
  %564 = vmatprep.subr.bf16.mxu0 0
  %565 = vmatpush1.bf16.msra.mxu0 %v548
  %566 = vmatprep.subr.bf16.mxu0 0
  %567 = vmatpush2.bf16.msra.mxu0 0
  %568 = vmatprep.subr.bf16.mxu0 0
  %569 = vmatpush2.bf16.msra.mxu0 0
  %570 = vmatprep.subr.bf16.mxu0 0
  %571 = vmatpush2.bf16.msra.mxu0 0
  %572 = vmatprep.subr.bf16.mxu0 0
  %573 = vmatpush2.bf16.msra.mxu0 0
  %574 = vmatprep.subr.bf16.mxu0 0
  %575 = vmatpush2.bf16.msra.mxu0 0
  %576 = vmatprep.subr.bf16.mxu0 0
  %577 = vmatpush2.bf16.msra.mxu0 0
  %578 = vmatprep.subr.bf16.mxu0 0
  %579 = vmatpush2.bf16.msra.mxu0 0
  %580 = vmatprep.subr.bf16.mxu0 0
  %581 = vmatpush2.bf16.msra.mxu0 0
  %582 = vmatprep.mubr.bf16.mxu0 0
  %583 = vmatmul.mubr.bf16.gmra.mxu0 %v545
  %v584 = vpop.f32.mrf.mxu0
  %v585 = vadd.f32 0.0, %v584
  %v586 = vpop.f32.mrf.mxu0
  %v587 = vpop.f32.mrf.mxu0
  %v588 = vpop.f32.mrf.mxu0
  %589 = vdwg.mxu0
  %590 = vrot.lane.b32.xlu0 %v419, 64
  %v591 = vpop.permute.xlu0 %590
  %v593 = vsel %vm164, %v541, 0
  %v596 = vsel %vm168, %v591, 0
  %598 = vmatprep.subr.bf16.mxu0 0
  %599 = vmatpush1.bf16.msra.mxu0 0
  %600 = vmatprep.subr.bf16.mxu0 0
  %601 = vmatpush1.bf16.msra.mxu0 0
  %602 = vmatprep.subr.bf16.mxu0 0
  %603 = vmatpush1.bf16.msra.mxu0 0
  %604 = vmatprep.subr.bf16.mxu0 0
  %605 = vmatpush1.bf16.msra.mxu0 0
  %606 = vmatprep.subr.bf16.mxu0 0
  %607 = vmatpush1.bf16.msra.mxu0 0
  %608 = vmatprep.subr.bf16.mxu0 0
  %609 = vmatpush1.bf16.msra.mxu0 0
  %610 = vmatprep.subr.bf16.mxu0 0
  %611 = vmatpush1.bf16.msra.mxu0 0
  %612 = vmatprep.subr.bf16.mxu0 0
  %613 = vmatpush1.bf16.msra.mxu0 %v596
  %614 = vmatprep.subr.bf16.mxu0 0
  %615 = vmatpush2.bf16.msra.mxu0 0
  %616 = vmatprep.subr.bf16.mxu0 0
  %617 = vmatpush2.bf16.msra.mxu0 0
  %618 = vmatprep.subr.bf16.mxu0 0
  %619 = vmatpush2.bf16.msra.mxu0 0
  %620 = vmatprep.subr.bf16.mxu0 0
  %621 = vmatpush2.bf16.msra.mxu0 0
  %622 = vmatprep.subr.bf16.mxu0 0
  %623 = vmatpush2.bf16.msra.mxu0 0
  %624 = vmatprep.subr.bf16.mxu0 0
  %625 = vmatpush2.bf16.msra.mxu0 0
  %626 = vmatprep.subr.bf16.mxu0 0
  %627 = vmatpush2.bf16.msra.mxu0 0
  %628 = vmatprep.subr.bf16.mxu0 0
  %629 = vmatpush2.bf16.msra.mxu0 0
  %630 = vmatprep.mubr.bf16.mxu0 0
  %631 = vmatmul.mubr.bf16.gmra.mxu0 %v593
  %v632 = vpop.f32.mrf.mxu0
  %v633 = vadd.f32 0.0, %v632
  %v634 = vpop.f32.mrf.mxu0
  %v635 = vpop.f32.mrf.mxu0
  %v636 = vpop.f32.mrf.mxu0
  %637 = vdwg.mxu0
  %638 = vrot.lane.b32.xlu0 %v418, 120
  %v639 = vpop.permute.xlu0 %638
  %640 = vrot.lane.b32.xlu0 %v418, 88
  %v641 = vpop.permute.xlu0 %640
  %v643 = vsel %vm164, %v639, 0
  %v646 = vsel %vm164, %v641, 0
  %648 = vmatprep.subr.bf16.mxu0 0
  %649 = vmatpush1.bf16.xpose.msra.mxu0 0
  %650 = vmatprep.subr.bf16.mxu0 0
  %651 = vmatpush1.bf16.xpose.msra.mxu0 0
  %652 = vmatprep.subr.bf16.mxu0 0
  %653 = vmatpush1.bf16.xpose.msra.mxu0 0
  %654 = vmatprep.subr.bf16.mxu0 0
  %655 = vmatpush1.bf16.xpose.msra.mxu0 0
  %656 = vmatprep.subr.bf16.mxu0 0
  %657 = vmatpush1.bf16.xpose.msra.mxu0 0
  %658 = vmatprep.subr.bf16.mxu0 0
  %659 = vmatpush1.bf16.xpose.msra.mxu0 0
  %660 = vmatprep.subr.bf16.mxu0 0
  %661 = vmatpush1.bf16.xpose.msra.mxu0 0
  %662 = vmatprep.subr.bf16.mxu0 0
  %663 = vmatpush1.bf16.xpose.msra.mxu0 %v646
  %664 = vmatprep.subr.bf16.mxu0 0
  %665 = vmatpush2.bf16.xpose.msra.mxu0 0
  %666 = vmatprep.subr.bf16.mxu0 0
  %667 = vmatpush2.bf16.xpose.msra.mxu0 0
  %668 = vmatprep.subr.bf16.mxu0 0
  %669 = vmatpush2.bf16.xpose.msra.mxu0 0
  %670 = vmatprep.subr.bf16.mxu0 0
  %671 = vmatpush2.bf16.xpose.msra.mxu0 0
  %672 = vmatprep.subr.bf16.mxu0 0
  %673 = vmatpush2.bf16.xpose.msra.mxu0 0
  %674 = vmatprep.subr.bf16.mxu0 0
  %675 = vmatpush2.bf16.xpose.msra.mxu0 0
  %676 = vmatprep.subr.bf16.mxu0 0
  %677 = vmatpush2.bf16.xpose.msra.mxu0 0
  %678 = vmatprep.subr.bf16.mxu0 0
  %679 = vmatpush2.bf16.xpose.msra.mxu0 0
  %680 = vmatprep.mubr.bf16.mxu0 0
  %681 = vmatmul.mubr.bf16.gmra.mxu0 %v643
  %v682 = vpop.f32.mrf.mxu0
  %v683 = vadd.f32 0.0, %v682
  %v684 = vpop.f32.mrf.mxu0
  %v685 = vpop.f32.mrf.mxu0
  %v686 = vpop.f32.mrf.mxu0
  %687 = vdwg.mxu0
  %688 = vrot.lane.b32.xlu0 %v419, 120
  %v689 = vpop.permute.xlu0 %688
  %690 = vrot.lane.b32.xlu0 %v419, 88
  %v691 = vpop.permute.xlu0 %690
  %v693 = vsel %vm164, %v689, 0
  %v696 = vsel %vm164, %v691, 0
  %698 = vmatprep.subr.bf16.mxu0 0
  %699 = vmatpush1.bf16.xpose.msra.mxu0 0
  %700 = vmatprep.subr.bf16.mxu0 0
  %701 = vmatpush1.bf16.xpose.msra.mxu0 0
  %702 = vmatprep.subr.bf16.mxu0 0
  %703 = vmatpush1.bf16.xpose.msra.mxu0 0
  %704 = vmatprep.subr.bf16.mxu0 0
  %705 = vmatpush1.bf16.xpose.msra.mxu0 0
  %706 = vmatprep.subr.bf16.mxu0 0
  %707 = vmatpush1.bf16.xpose.msra.mxu0 0
  %708 = vmatprep.subr.bf16.mxu0 0
  %709 = vmatpush1.bf16.xpose.msra.mxu0 0
  %710 = vmatprep.subr.bf16.mxu0 0
  %711 = vmatpush1.bf16.xpose.msra.mxu0 0
  %712 = vmatprep.subr.bf16.mxu0 0
  %713 = vmatpush1.bf16.xpose.msra.mxu0 %v696
  %714 = vmatprep.subr.bf16.mxu0 0
  %715 = vmatpush2.bf16.xpose.msra.mxu0 0
  %716 = vmatprep.subr.bf16.mxu0 0
  %717 = vmatpush2.bf16.xpose.msra.mxu0 0
  %718 = vmatprep.subr.bf16.mxu0 0
  %719 = vmatpush2.bf16.xpose.msra.mxu0 0
  %720 = vmatprep.subr.bf16.mxu0 0
  %721 = vmatpush2.bf16.xpose.msra.mxu0 0
  %722 = vmatprep.subr.bf16.mxu0 0
  %723 = vmatpush2.bf16.xpose.msra.mxu0 0
  %724 = vmatprep.subr.bf16.mxu0 0
  %725 = vmatpush2.bf16.xpose.msra.mxu0 0
  %726 = vmatprep.subr.bf16.mxu0 0
  %727 = vmatpush2.bf16.xpose.msra.mxu0 0
  %728 = vmatprep.subr.bf16.mxu0 0
  %729 = vmatpush2.bf16.xpose.msra.mxu0 0
  %730 = vmatprep.mubr.bf16.mxu0 0
  %731 = vmatmul.mubr.bf16.gmra.mxu0 %v693
  %v732 = vpop.f32.mrf.mxu0
  %v733 = vadd.f32 0.0, %v732
  %v734 = vpop.f32.mrf.mxu0
  %v735 = vpop.f32.mrf.mxu0
  %v736 = vpop.f32.mrf.mxu0
  %737 = vdwg.mxu0
  %v738 = vmul.f32 %v683, 0.35355338
  %v739 = vmul.f32 %v733, 0.35355338
  %v740 = vsel %vm164, %v738, -inf
  %741 = vmax.xlane.f32.xlu0 %v740
  %v742 = vpop.xlane.xlu0 %741
  %v743 = vsel %vm164, %v739, -inf
  %744 = vmax.xlane.f32.xlu0 %v743
  %v745 = vpop.xlane.xlu0 %744
  %v746 = vsub.f32 %v738, %v742
  %v747 = vsub.f32 %v739, %v745
  %v748 = vmul.f32 %v746, 1.442695
  %v749 = vpow.pop %v748
  %v750 = vmul.f32 %v747, 1.442695
  %v751 = vpow.pop %v750
  %v752 = vsel %vm164, %v749, 0.0
  %753 = vadd.xlane.f32.xlu0 %v752
  %v754 = vpop.xlane.xlu0 %753
  %v755 = vsel %vm164, %v751, 0.0
  %756 = vadd.xlane.f32.xlu0 %v755
  %v757 = vpop.xlane.xlu0 %756
  %v758 = vrcp.pop %v754
  %v759 = vrcp.pop %v757
  %v760 = vmul.f32 %v749, %v758
  %v761 = vmul.f32 %v751, %v759
  %v762 = vpack.c.bf16 %v760, %v760
  %v763 = vpack.c.bf16 %v761, %v761
  %764 = vrot.lane.b32.xlu0 %v418, 56
  %v765 = vpop.permute.xlu0 %764
  %v767 = vsel %vm164, %v762, 0
  %v770 = vsel %vm168, %v765, 0
  %772 = vmatprep.subr.bf16.mxu0 0
  %773 = vmatpush1.bf16.msra.mxu0 0
  %774 = vmatprep.subr.bf16.mxu0 0
  %775 = vmatpush1.bf16.msra.mxu0 0
  %776 = vmatprep.subr.bf16.mxu0 0
  %777 = vmatpush1.bf16.msra.mxu0 0
  %778 = vmatprep.subr.bf16.mxu0 0
  %779 = vmatpush1.bf16.msra.mxu0 0
  %780 = vmatprep.subr.bf16.mxu0 0
  %781 = vmatpush1.bf16.msra.mxu0 0
  %782 = vmatprep.subr.bf16.mxu0 0
  %783 = vmatpush1.bf16.msra.mxu0 0
  %784 = vmatprep.subr.bf16.mxu0 0
  %785 = vmatpush1.bf16.msra.mxu0 0
  %786 = vmatprep.subr.bf16.mxu0 0
  %787 = vmatpush1.bf16.msra.mxu0 %v770
  %788 = vmatprep.subr.bf16.mxu0 0
  %789 = vmatpush2.bf16.msra.mxu0 0
  %790 = vmatprep.subr.bf16.mxu0 0
  %791 = vmatpush2.bf16.msra.mxu0 0
  %792 = vmatprep.subr.bf16.mxu0 0
  %793 = vmatpush2.bf16.msra.mxu0 0
  %794 = vmatprep.subr.bf16.mxu0 0
  %795 = vmatpush2.bf16.msra.mxu0 0
  %796 = vmatprep.subr.bf16.mxu0 0
  %797 = vmatpush2.bf16.msra.mxu0 0
  %798 = vmatprep.subr.bf16.mxu0 0
  %799 = vmatpush2.bf16.msra.mxu0 0
  %800 = vmatprep.subr.bf16.mxu0 0
  %801 = vmatpush2.bf16.msra.mxu0 0
  %802 = vmatprep.subr.bf16.mxu0 0
  %803 = vmatpush2.bf16.msra.mxu0 0
  %804 = vmatprep.mubr.bf16.mxu0 0
  %805 = vmatmul.mubr.bf16.gmra.mxu0 %v767
  %v806 = vpop.f32.mrf.mxu0
  %v807 = vadd.f32 0.0, %v806
  %v808 = vpop.f32.mrf.mxu0
  %v809 = vpop.f32.mrf.mxu0
  %v810 = vpop.f32.mrf.mxu0
  %811 = vdwg.mxu0
  %812 = vrot.lane.b32.xlu0 %v419, 56
  %v813 = vpop.permute.xlu0 %812
  %v815 = vsel %vm164, %v763, 0
  %v818 = vsel %vm168, %v813, 0
  %820 = vmatprep.subr.bf16.mxu0 0
  %821 = vmatpush1.bf16.msra.mxu0 0
  %822 = vmatprep.subr.bf16.mxu0 0
  %823 = vmatpush1.bf16.msra.mxu0 0
  %824 = vmatprep.subr.bf16.mxu0 0
  %825 = vmatpush1.bf16.msra.mxu0 0
  %826 = vmatprep.subr.bf16.mxu0 0
  %827 = vmatpush1.bf16.msra.mxu0 0
  %828 = vmatprep.subr.bf16.mxu0 0
  %829 = vmatpush1.bf16.msra.mxu0 0
  %830 = vmatprep.subr.bf16.mxu0 0
  %831 = vmatpush1.bf16.msra.mxu0 0
  %832 = vmatprep.subr.bf16.mxu0 0
  %833 = vmatpush1.bf16.msra.mxu0 0
  %834 = vmatprep.subr.bf16.mxu0 0
  %835 = vmatpush1.bf16.msra.mxu0 %v818
  %836 = vmatprep.subr.bf16.mxu0 0
  %837 = vmatpush2.bf16.msra.mxu0 0
  %838 = vmatprep.subr.bf16.mxu0 0
  %839 = vmatpush2.bf16.msra.mxu0 0
  %840 = vmatprep.subr.bf16.mxu0 0
  %841 = vmatpush2.bf16.msra.mxu0 0
  %842 = vmatprep.subr.bf16.mxu0 0
  %843 = vmatpush2.bf16.msra.mxu0 0
  %844 = vmatprep.subr.bf16.mxu0 0
  %845 = vmatpush2.bf16.msra.mxu0 0
  %846 = vmatprep.subr.bf16.mxu0 0
  %847 = vmatpush2.bf16.msra.mxu0 0
  %848 = vmatprep.subr.bf16.mxu0 0
  %849 = vmatpush2.bf16.msra.mxu0 0
  %850 = vmatprep.subr.bf16.mxu0 0
  %851 = vmatpush2.bf16.msra.mxu0 0
  %852 = vmatprep.mubr.bf16.mxu0 0
  %853 = vmatmul.mubr.bf16.gmra.mxu0 %v815
  %v854 = vpop.f32.mrf.mxu0
  %v855 = vadd.f32 0.0, %v854
  %v856 = vpop.f32.mrf.mxu0
  %v857 = vpop.f32.mrf.mxu0
  %v858 = vpop.f32.mrf.mxu0
  %859 = vdwg.mxu0
  %860 = vrot.lane.b32.xlu0 %v418, 112
  %v861 = vpop.permute.xlu0 %860
  %862 = vrot.lane.b32.xlu0 %v418, 80
  %v863 = vpop.permute.xlu0 %862
  %v865 = vsel %vm164, %v861, 0
  %v868 = vsel %vm164, %v863, 0
  %870 = vmatprep.subr.bf16.mxu0 0
  %871 = vmatpush1.bf16.xpose.msra.mxu0 0
  %872 = vmatprep.subr.bf16.mxu0 0
  %873 = vmatpush1.bf16.xpose.msra.mxu0 0
  %874 = vmatprep.subr.bf16.mxu0 0
  %875 = vmatpush1.bf16.xpose.msra.mxu0 0
  %876 = vmatprep.subr.bf16.mxu0 0
  %877 = vmatpush1.bf16.xpose.msra.mxu0 0
  %878 = vmatprep.subr.bf16.mxu0 0
  %879 = vmatpush1.bf16.xpose.msra.mxu0 0
  %880 = vmatprep.subr.bf16.mxu0 0
  %881 = vmatpush1.bf16.xpose.msra.mxu0 0
  %882 = vmatprep.subr.bf16.mxu0 0
  %883 = vmatpush1.bf16.xpose.msra.mxu0 0
  %884 = vmatprep.subr.bf16.mxu0 0
  %885 = vmatpush1.bf16.xpose.msra.mxu0 %v868
  %886 = vmatprep.subr.bf16.mxu0 0
  %887 = vmatpush2.bf16.xpose.msra.mxu0 0
  %888 = vmatprep.subr.bf16.mxu0 0
  %889 = vmatpush2.bf16.xpose.msra.mxu0 0
  %890 = vmatprep.subr.bf16.mxu0 0
  %891 = vmatpush2.bf16.xpose.msra.mxu0 0
  %892 = vmatprep.subr.bf16.mxu0 0
  %893 = vmatpush2.bf16.xpose.msra.mxu0 0
  %894 = vmatprep.subr.bf16.mxu0 0
  %895 = vmatpush2.bf16.xpose.msra.mxu0 0
  %896 = vmatprep.subr.bf16.mxu0 0
  %897 = vmatpush2.bf16.xpose.msra.mxu0 0
  %898 = vmatprep.subr.bf16.mxu0 0
  %899 = vmatpush2.bf16.xpose.msra.mxu0 0
  %900 = vmatprep.subr.bf16.mxu0 0
  %901 = vmatpush2.bf16.xpose.msra.mxu0 0
  %902 = vmatprep.mubr.bf16.mxu0 0
  %903 = vmatmul.mubr.bf16.gmra.mxu0 %v865
  %v904 = vpop.f32.mrf.mxu0
  %v905 = vadd.f32 0.0, %v904
  %v906 = vpop.f32.mrf.mxu0
  %v907 = vpop.f32.mrf.mxu0
  %v908 = vpop.f32.mrf.mxu0
  %909 = vdwg.mxu0
  %910 = vrot.lane.b32.xlu0 %v419, 112
  %v911 = vpop.permute.xlu0 %910
  %912 = vrot.lane.b32.xlu0 %v419, 80
  %v913 = vpop.permute.xlu0 %912
  %v915 = vsel %vm164, %v911, 0
  %v918 = vsel %vm164, %v913, 0
  %920 = vmatprep.subr.bf16.mxu0 0
  %921 = vmatpush1.bf16.xpose.msra.mxu0 0
  %922 = vmatprep.subr.bf16.mxu0 0
  %923 = vmatpush1.bf16.xpose.msra.mxu0 0
  %924 = vmatprep.subr.bf16.mxu0 0
  %925 = vmatpush1.bf16.xpose.msra.mxu0 0
  %926 = vmatprep.subr.bf16.mxu0 0
  %927 = vmatpush1.bf16.xpose.msra.mxu0 0
  %928 = vmatprep.subr.bf16.mxu0 0
  %929 = vmatpush1.bf16.xpose.msra.mxu0 0
  %930 = vmatprep.subr.bf16.mxu0 0
  %931 = vmatpush1.bf16.xpose.msra.mxu0 0
  %932 = vmatprep.subr.bf16.mxu0 0
  %933 = vmatpush1.bf16.xpose.msra.mxu0 0
  %934 = vmatprep.subr.bf16.mxu0 0
  %935 = vmatpush1.bf16.xpose.msra.mxu0 %v918
  %936 = vmatprep.subr.bf16.mxu0 0
  %937 = vmatpush2.bf16.xpose.msra.mxu0 0
  %938 = vmatprep.subr.bf16.mxu0 0
  %939 = vmatpush2.bf16.xpose.msra.mxu0 0
  %940 = vmatprep.subr.bf16.mxu0 0
  %941 = vmatpush2.bf16.xpose.msra.mxu0 0
  %942 = vmatprep.subr.bf16.mxu0 0
  %943 = vmatpush2.bf16.xpose.msra.mxu0 0
  %944 = vmatprep.subr.bf16.mxu0 0
  %945 = vmatpush2.bf16.xpose.msra.mxu0 0
  %946 = vmatprep.subr.bf16.mxu0 0
  %947 = vmatpush2.bf16.xpose.msra.mxu0 0
  %948 = vmatprep.subr.bf16.mxu0 0
  %949 = vmatpush2.bf16.xpose.msra.mxu0 0
  %950 = vmatprep.subr.bf16.mxu0 0
  %951 = vmatpush2.bf16.xpose.msra.mxu0 0
  %952 = vmatprep.mubr.bf16.mxu0 0
  %953 = vmatmul.mubr.bf16.gmra.mxu0 %v915
  %v954 = vpop.f32.mrf.mxu0
  %v955 = vadd.f32 0.0, %v954
  %v956 = vpop.f32.mrf.mxu0
  %v957 = vpop.f32.mrf.mxu0
  %v958 = vpop.f32.mrf.mxu0
  %959 = vdwg.mxu0
  %v960 = vmul.f32 %v905, 0.35355338
  %v961 = vmul.f32 %v955, 0.35355338
  %v962 = vsel %vm164, %v960, -inf
  %963 = vmax.xlane.f32.xlu0 %v962
  %v964 = vpop.xlane.xlu0 %963
  %v965 = vsel %vm164, %v961, -inf
  %966 = vmax.xlane.f32.xlu0 %v965
  %v967 = vpop.xlane.xlu0 %966
  %v968 = vsub.f32 %v960, %v964
  %v969 = vsub.f32 %v961, %v967
  %v970 = vmul.f32 %v968, 1.442695
  %v971 = vpow.pop %v970
  %v972 = vmul.f32 %v969, 1.442695
  %v973 = vpow.pop %v972
  %v974 = vsel %vm164, %v971, 0.0
  %975 = vadd.xlane.f32.xlu0 %v974
  %v976 = vpop.xlane.xlu0 %975
  %v977 = vsel %vm164, %v973, 0.0
  %978 = vadd.xlane.f32.xlu0 %v977
  %v979 = vpop.xlane.xlu0 %978
  %v980 = vrcp.pop %v976
  %v981 = vrcp.pop %v979
  %v982 = vmul.f32 %v971, %v980
  %v983 = vmul.f32 %v973, %v981
  %v984 = vpack.c.bf16 %v982, %v982
  %v985 = vpack.c.bf16 %v983, %v983
  %986 = vrot.lane.b32.xlu0 %v418, 48
  %v987 = vpop.permute.xlu0 %986
  %v989 = vsel %vm164, %v984, 0
  %v992 = vsel %vm168, %v987, 0
  %994 = vmatprep.subr.bf16.mxu0 0
  %995 = vmatpush1.bf16.msra.mxu0 0
  %996 = vmatprep.subr.bf16.mxu0 0
  %997 = vmatpush1.bf16.msra.mxu0 0
  %998 = vmatprep.subr.bf16.mxu0 0
  %999 = vmatpush1.bf16.msra.mxu0 0
  %1000 = vmatprep.subr.bf16.mxu0 0
  %1001 = vmatpush1.bf16.msra.mxu0 0
  %1002 = vmatprep.subr.bf16.mxu0 0
  %1003 = vmatpush1.bf16.msra.mxu0 0
  %1004 = vmatprep.subr.bf16.mxu0 0
  %1005 = vmatpush1.bf16.msra.mxu0 0
  %1006 = vmatprep.subr.bf16.mxu0 0
  %1007 = vmatpush1.bf16.msra.mxu0 0
  %1008 = vmatprep.subr.bf16.mxu0 0
  %1009 = vmatpush1.bf16.msra.mxu0 %v992
  %1010 = vmatprep.subr.bf16.mxu0 0
  %1011 = vmatpush2.bf16.msra.mxu0 0
  %1012 = vmatprep.subr.bf16.mxu0 0
  %1013 = vmatpush2.bf16.msra.mxu0 0
  %1014 = vmatprep.subr.bf16.mxu0 0
  %1015 = vmatpush2.bf16.msra.mxu0 0
  %1016 = vmatprep.subr.bf16.mxu0 0
  %1017 = vmatpush2.bf16.msra.mxu0 0
  %1018 = vmatprep.subr.bf16.mxu0 0
  %1019 = vmatpush2.bf16.msra.mxu0 0
  %1020 = vmatprep.subr.bf16.mxu0 0
  %1021 = vmatpush2.bf16.msra.mxu0 0
  %1022 = vmatprep.subr.bf16.mxu0 0
  %1023 = vmatpush2.bf16.msra.mxu0 0
  %1024 = vmatprep.subr.bf16.mxu0 0
  %1025 = vmatpush2.bf16.msra.mxu0 0
  %1026 = vmatprep.mubr.bf16.mxu0 0
  %1027 = vmatmul.mubr.bf16.gmra.mxu0 %v989
  %v1028 = vpop.f32.mrf.mxu0
  %v1029 = vadd.f32 0.0, %v1028
  %v1030 = vpop.f32.mrf.mxu0
  %v1031 = vpop.f32.mrf.mxu0
  %v1032 = vpop.f32.mrf.mxu0
  %1033 = vdwg.mxu0
  %1034 = vrot.lane.b32.xlu0 %v419, 48
  %v1035 = vpop.permute.xlu0 %1034
  %v1037 = vsel %vm164, %v985, 0
  %v1040 = vsel %vm168, %v1035, 0
  %1042 = vmatprep.subr.bf16.mxu0 0
  %1043 = vmatpush1.bf16.msra.mxu0 0
  %1044 = vmatprep.subr.bf16.mxu0 0
  %1045 = vmatpush1.bf16.msra.mxu0 0
  %1046 = vmatprep.subr.bf16.mxu0 0
  %1047 = vmatpush1.bf16.msra.mxu0 0
  %1048 = vmatprep.subr.bf16.mxu0 0
  %1049 = vmatpush1.bf16.msra.mxu0 0
  %1050 = vmatprep.subr.bf16.mxu0 0
  %1051 = vmatpush1.bf16.msra.mxu0 0
  %1052 = vmatprep.subr.bf16.mxu0 0
  %1053 = vmatpush1.bf16.msra.mxu0 0
  %1054 = vmatprep.subr.bf16.mxu0 0
  %1055 = vmatpush1.bf16.msra.mxu0 0
  %1056 = vmatprep.subr.bf16.mxu0 0
  %1057 = vmatpush1.bf16.msra.mxu0 %v1040
  %1058 = vmatprep.subr.bf16.mxu0 0
  %1059 = vmatpush2.bf16.msra.mxu0 0
  %1060 = vmatprep.subr.bf16.mxu0 0
  %1061 = vmatpush2.bf16.msra.mxu0 0
  %1062 = vmatprep.subr.bf16.mxu0 0
  %1063 = vmatpush2.bf16.msra.mxu0 0
  %1064 = vmatprep.subr.bf16.mxu0 0
  %1065 = vmatpush2.bf16.msra.mxu0 0
  %1066 = vmatprep.subr.bf16.mxu0 0
  %1067 = vmatpush2.bf16.msra.mxu0 0
  %1068 = vmatprep.subr.bf16.mxu0 0
  %1069 = vmatpush2.bf16.msra.mxu0 0
  %1070 = vmatprep.subr.bf16.mxu0 0
  %1071 = vmatpush2.bf16.msra.mxu0 0
  %1072 = vmatprep.subr.bf16.mxu0 0
  %1073 = vmatpush2.bf16.msra.mxu0 0
  %1074 = vmatprep.mubr.bf16.mxu0 0
  %1075 = vmatmul.mubr.bf16.gmra.mxu0 %v1037
  %v1076 = vpop.f32.mrf.mxu0
  %v1077 = vadd.f32 0.0, %v1076
  %v1078 = vpop.f32.mrf.mxu0
  %v1079 = vpop.f32.mrf.mxu0
  %v1080 = vpop.f32.mrf.mxu0
  %1081 = vdwg.mxu0
  %1082 = vrot.lane.b32.xlu0 %v418, 104
  %v1083 = vpop.permute.xlu0 %1082
  %1084 = vrot.lane.b32.xlu0 %v418, 72
  %v1085 = vpop.permute.xlu0 %1084
  %v1087 = vsel %vm164, %v1083, 0
  %v1090 = vsel %vm164, %v1085, 0
  %1092 = vmatprep.subr.bf16.mxu0 0
  %1093 = vmatpush1.bf16.xpose.msra.mxu0 0
  %1094 = vmatprep.subr.bf16.mxu0 0
  %1095 = vmatpush1.bf16.xpose.msra.mxu0 0
  %1096 = vmatprep.subr.bf16.mxu0 0
  %1097 = vmatpush1.bf16.xpose.msra.mxu0 0
  %1098 = vmatprep.subr.bf16.mxu0 0
  %1099 = vmatpush1.bf16.xpose.msra.mxu0 0
  %1100 = vmatprep.subr.bf16.mxu0 0
  %1101 = vmatpush1.bf16.xpose.msra.mxu0 0
  %1102 = vmatprep.subr.bf16.mxu0 0
  %1103 = vmatpush1.bf16.xpose.msra.mxu0 0
  %1104 = vmatprep.subr.bf16.mxu0 0
  %1105 = vmatpush1.bf16.xpose.msra.mxu0 0
  %1106 = vmatprep.subr.bf16.mxu0 0
  %1107 = vmatpush1.bf16.xpose.msra.mxu0 %v1090
  %1108 = vmatprep.subr.bf16.mxu0 0
  %1109 = vmatpush2.bf16.xpose.msra.mxu0 0
  %1110 = vmatprep.subr.bf16.mxu0 0
  %1111 = vmatpush2.bf16.xpose.msra.mxu0 0
  %1112 = vmatprep.subr.bf16.mxu0 0
  %1113 = vmatpush2.bf16.xpose.msra.mxu0 0
  %1114 = vmatprep.subr.bf16.mxu0 0
  %1115 = vmatpush2.bf16.xpose.msra.mxu0 0
  %1116 = vmatprep.subr.bf16.mxu0 0
  %1117 = vmatpush2.bf16.xpose.msra.mxu0 0
  %1118 = vmatprep.subr.bf16.mxu0 0
  %1119 = vmatpush2.bf16.xpose.msra.mxu0 0
  %1120 = vmatprep.subr.bf16.mxu0 0
  %1121 = vmatpush2.bf16.xpose.msra.mxu0 0
  %1122 = vmatprep.subr.bf16.mxu0 0
  %1123 = vmatpush2.bf16.xpose.msra.mxu0 0
  %1124 = vmatprep.mubr.bf16.mxu0 0
  %1125 = vmatmul.mubr.bf16.gmra.mxu0 %v1087
  %v1126 = vpop.f32.mrf.mxu0
  %v1127 = vadd.f32 0.0, %v1126
  %v1128 = vpop.f32.mrf.mxu0
  %v1129 = vpop.f32.mrf.mxu0
  %v1130 = vpop.f32.mrf.mxu0
  %1131 = vdwg.mxu0
  %1132 = vrot.lane.b32.xlu0 %v419, 104
  %v1133 = vpop.permute.xlu0 %1132
  %1134 = vrot.lane.b32.xlu0 %v419, 72
  %v1135 = vpop.permute.xlu0 %1134
  %v1137 = vsel %vm164, %v1133, 0
  %v1140 = vsel %vm164, %v1135, 0
  %1142 = vmatprep.subr.bf16.mxu0 0
  %1143 = vmatpush1.bf16.xpose.msra.mxu0 0
  %1144 = vmatprep.subr.bf16.mxu0 0
  %1145 = vmatpush1.bf16.xpose.msra.mxu0 0
  %1146 = vmatprep.subr.bf16.mxu0 0
  %1147 = vmatpush1.bf16.xpose.msra.mxu0 0
  %1148 = vmatprep.subr.bf16.mxu0 0
  %1149 = vmatpush1.bf16.xpose.msra.mxu0 0
  %1150 = vmatprep.subr.bf16.mxu0 0
  %1151 = vmatpush1.bf16.xpose.msra.mxu0 0
  %1152 = vmatprep.subr.bf16.mxu0 0
  %1153 = vmatpush1.bf16.xpose.msra.mxu0 0
  %1154 = vmatprep.subr.bf16.mxu0 0
  %1155 = vmatpush1.bf16.xpose.msra.mxu0 0
  %1156 = vmatprep.subr.bf16.mxu0 0
  %1157 = vmatpush1.bf16.xpose.msra.mxu0 %v1140
  %1158 = vmatprep.subr.bf16.mxu0 0
  %1159 = vmatpush2.bf16.xpose.msra.mxu0 0
  %1160 = vmatprep.subr.bf16.mxu0 0
  %1161 = vmatpush2.bf16.xpose.msra.mxu0 0
  %1162 = vmatprep.subr.bf16.mxu0 0
  %1163 = vmatpush2.bf16.xpose.msra.mxu0 0
  %1164 = vmatprep.subr.bf16.mxu0 0
  %1165 = vmatpush2.bf16.xpose.msra.mxu0 0
  %1166 = vmatprep.subr.bf16.mxu0 0
  %1167 = vmatpush2.bf16.xpose.msra.mxu0 0
  %1168 = vmatprep.subr.bf16.mxu0 0
  %1169 = vmatpush2.bf16.xpose.msra.mxu0 0
  %1170 = vmatprep.subr.bf16.mxu0 0
  %1171 = vmatpush2.bf16.xpose.msra.mxu0 0
  %1172 = vmatprep.subr.bf16.mxu0 0
  %1173 = vmatpush2.bf16.xpose.msra.mxu0 0
  %1174 = vmatprep.mubr.bf16.mxu0 0
  %1175 = vmatmul.mubr.bf16.gmra.mxu0 %v1137
  %v1176 = vpop.f32.mrf.mxu0
  %v1177 = vadd.f32 0.0, %v1176
  %v1178 = vpop.f32.mrf.mxu0
  %v1179 = vpop.f32.mrf.mxu0
  %v1180 = vpop.f32.mrf.mxu0
  %1181 = vdwg.mxu0
  %v1182 = vmul.f32 %v1127, 0.35355338
  %v1183 = vmul.f32 %v1177, 0.35355338
  %v1184 = vsel %vm164, %v1182, -inf
  %1185 = vmax.xlane.f32.xlu0 %v1184
  %v1186 = vpop.xlane.xlu0 %1185
  %v1187 = vsel %vm164, %v1183, -inf
  %1188 = vmax.xlane.f32.xlu0 %v1187
  %v1189 = vpop.xlane.xlu0 %1188
  %v1190 = vsub.f32 %v1182, %v1186
  %v1191 = vsub.f32 %v1183, %v1189
  %v1192 = vmul.f32 %v1190, 1.442695
  %v1193 = vpow.pop %v1192
  %v1194 = vmul.f32 %v1191, 1.442695
  %v1195 = vpow.pop %v1194
  %v1196 = vsel %vm164, %v1193, 0.0
  %1197 = vadd.xlane.f32.xlu0 %v1196
  %v1198 = vpop.xlane.xlu0 %1197
  %v1199 = vsel %vm164, %v1195, 0.0
  %1200 = vadd.xlane.f32.xlu0 %v1199
  %v1201 = vpop.xlane.xlu0 %1200
  %v1202 = vrcp.pop %v1198
  %v1203 = vrcp.pop %v1201
  %v1204 = vmul.f32 %v1193, %v1202
  %v1205 = vmul.f32 %v1195, %v1203
  %v1206 = vpack.c.bf16 %v1204, %v1204
  %v1207 = vpack.c.bf16 %v1205, %v1205
  %1208 = vrot.lane.b32.xlu0 %v418, 40
  %v1209 = vpop.permute.xlu0 %1208
  %v1211 = vsel %vm164, %v1206, 0
  %v1214 = vsel %vm168, %v1209, 0
  %1216 = vmatprep.subr.bf16.mxu0 0
  %1217 = vmatpush1.bf16.msra.mxu0 0
  %1218 = vmatprep.subr.bf16.mxu0 0
  %1219 = vmatpush1.bf16.msra.mxu0 0
  %1220 = vmatprep.subr.bf16.mxu0 0
  %1221 = vmatpush1.bf16.msra.mxu0 0
  %1222 = vmatprep.subr.bf16.mxu0 0
  %1223 = vmatpush1.bf16.msra.mxu0 0
  %1224 = vmatprep.subr.bf16.mxu0 0
  %1225 = vmatpush1.bf16.msra.mxu0 0
  %1226 = vmatprep.subr.bf16.mxu0 0
  %1227 = vmatpush1.bf16.msra.mxu0 0
  %1228 = vmatprep.subr.bf16.mxu0 0
  %1229 = vmatpush1.bf16.msra.mxu0 0
  %1230 = vmatprep.subr.bf16.mxu0 0
  %1231 = vmatpush1.bf16.msra.mxu0 %v1214
  %1232 = vmatprep.subr.bf16.mxu0 0
  %1233 = vmatpush2.bf16.msra.mxu0 0
  %1234 = vmatprep.subr.bf16.mxu0 0
  %1235 = vmatpush2.bf16.msra.mxu0 0
  %1236 = vmatprep.subr.bf16.mxu0 0
  %1237 = vmatpush2.bf16.msra.mxu0 0
  %1238 = vmatprep.subr.bf16.mxu0 0
  %1239 = vmatpush2.bf16.msra.mxu0 0
  %1240 = vmatprep.subr.bf16.mxu0 0
  %1241 = vmatpush2.bf16.msra.mxu0 0
  %1242 = vmatprep.subr.bf16.mxu0 0
  %1243 = vmatpush2.bf16.msra.mxu0 0
  %1244 = vmatprep.subr.bf16.mxu0 0
  %1245 = vmatpush2.bf16.msra.mxu0 0
  %1246 = vmatprep.subr.bf16.mxu0 0
  %1247 = vmatpush2.bf16.msra.mxu0 0
  %1248 = vmatprep.mubr.bf16.mxu0 0
  %1249 = vmatmul.mubr.bf16.gmra.mxu0 %v1211
  %v1250 = vpop.f32.mrf.mxu0
  %v1251 = vadd.f32 0.0, %v1250
  %v1252 = vpop.f32.mrf.mxu0
  %v1253 = vpop.f32.mrf.mxu0
  %v1254 = vpop.f32.mrf.mxu0
  %1255 = vdwg.mxu0
  %1256 = vrot.lane.b32.xlu0 %v419, 40
  %v1257 = vpop.permute.xlu0 %1256
  %v1259 = vsel %vm164, %v1207, 0
  %v1262 = vsel %vm168, %v1257, 0
  %1264 = vmatprep.subr.bf16.mxu0 0
  %1265 = vmatpush1.bf16.msra.mxu0 0
  %1266 = vmatprep.subr.bf16.mxu0 0
  %1267 = vmatpush1.bf16.msra.mxu0 0
  %1268 = vmatprep.subr.bf16.mxu0 0
  %1269 = vmatpush1.bf16.msra.mxu0 0
  %1270 = vmatprep.subr.bf16.mxu0 0
  %1271 = vmatpush1.bf16.msra.mxu0 0
  %1272 = vmatprep.subr.bf16.mxu0 0
  %1273 = vmatpush1.bf16.msra.mxu0 0
  %1274 = vmatprep.subr.bf16.mxu0 0
  %1275 = vmatpush1.bf16.msra.mxu0 0
  %1276 = vmatprep.subr.bf16.mxu0 0
  %1277 = vmatpush1.bf16.msra.mxu0 0
  %1278 = vmatprep.subr.bf16.mxu0 0
  %1279 = vmatpush1.bf16.msra.mxu0 %v1262
  %1280 = vmatprep.subr.bf16.mxu0 0
  %1281 = vmatpush2.bf16.msra.mxu0 0
  %1282 = vmatprep.subr.bf16.mxu0 0
  %1283 = vmatpush2.bf16.msra.mxu0 0
  %1284 = vmatprep.subr.bf16.mxu0 0
  %1285 = vmatpush2.bf16.msra.mxu0 0
  %1286 = vmatprep.subr.bf16.mxu0 0
  %1287 = vmatpush2.bf16.msra.mxu0 0
  %1288 = vmatprep.subr.bf16.mxu0 0
  %1289 = vmatpush2.bf16.msra.mxu0 0
  %1290 = vmatprep.subr.bf16.mxu0 0
  %1291 = vmatpush2.bf16.msra.mxu0 0
  %1292 = vmatprep.subr.bf16.mxu0 0
  %1293 = vmatpush2.bf16.msra.mxu0 0
  %1294 = vmatprep.subr.bf16.mxu0 0
  %1295 = vmatpush2.bf16.msra.mxu0 0
  %1296 = vmatprep.mubr.bf16.mxu0 0
  %1297 = vmatmul.mubr.bf16.gmra.mxu0 %v1259
  %v1298 = vpop.f32.mrf.mxu0
  %v1299 = vadd.f32 0.0, %v1298
  %v1300 = vpop.f32.mrf.mxu0
  %v1301 = vpop.f32.mrf.mxu0
  %v1302 = vpop.f32.mrf.mxu0
  %1303 = vdwg.mxu0
  %1306 = vrot.lane.b32.xlu0 %v807, 8
  %v1307 = vpop.permute.xlu0 %1306
  %1308 = vrot.lane.b32.xlu0 %v855, 8
  %v1309 = vpop.permute.xlu0 %1308
  %1314 = vrot.lane.b32.xlu0 %v1029, 16
  %v1315 = vpop.permute.xlu0 %1314
  %1316 = vrot.lane.b32.xlu0 %v1077, 16
  %v1317 = vpop.permute.xlu0 %1316
  %1322 = vrot.lane.b32.xlu0 %v1251, 24
  %v1323 = vpop.permute.xlu0 %1322
  %1324 = vrot.lane.b32.xlu0 %v1299, 24
  %v1325 = vpop.permute.xlu0 %1324
  %v1328 = vsel %vm164, %v585, %v1307
  %v1329 = vsel %vm164, %v633, %v1309
  %v1330 = vsel %vm227, %v1328, %v1315
  %v1331 = vsel %vm227, %v1329, %v1317
  %vm1332 = vcmask 195584
  %v1333 = vsel %vm1332, %v1330, %v1323
  %v1334 = vsel %vm1332, %v1331, %v1325
  %v1335 = vpack.c.bf16 %v1334, %v1333
  %v1336 = vld [vmem:[%s11] sm:$0xf]
  %v1337 = vld [vmem:[%s11 + $0x4] sm:$0xf]
  %v1338 = vld [vmem:[%s11 + $0x8] sm:$0xf]
  %v1339 = vld [vmem:[%s11 + $0xc] sm:$0xf]
  %v1340 = vld [vmem:[%s12] sm:$0x1]
  %v1342 = vlaneseq
  %v1343 = vshrl.u32 %v1342, 7
  %v1344 = vsub.s32 0, %v1343
  %v1345 = vrot.slane %v1340, %v1344
  %v1351 = vunpack.c.l.b16 %v1336
  %v1352 = vunpack.c.l.b16 %v1337
  %v1353 = vunpack.c.l.b16 %v1338
  %v1354 = vunpack.c.l.b16 %v1339
  %v1355 = vpack.c.b16 %v1352, %v1351
  %v1356 = vpack.c.b16 %v1354, %v1353
  %v1360 = vsel %vm369, %v1335, 0
  %1362 = vmatprep.subr.bf16.mxu0 0
  %1363 = vmatpush1.bf16.msra.mxu0 0
  %1364 = vmatprep.subr.bf16.mxu0 0
  %1365 = vmatpush1.bf16.msra.mxu0 0
  %1366 = vmatprep.subr.bf16.mxu0 0
  %1367 = vmatpush1.bf16.msra.mxu0 0
  %1368 = vmatprep.subr.bf16.mxu0 0
  %1369 = vmatpush1.bf16.msra.mxu0 0
  %1370 = vmatprep.subr.bf16.mxu0 0
  %1371 = vmatpush1.bf16.msra.mxu0 0
  %1372 = vmatprep.subr.bf16.mxu0 0
  %1373 = vmatpush1.bf16.msra.mxu0 0
  %1374 = vmatprep.subr.bf16.mxu0 0
  %1375 = vmatpush1.bf16.msra.mxu0 %v1356
  %1376 = vmatprep.subr.bf16.mxu0 0
  %1377 = vmatpush1.bf16.msra.mxu0 %v1355
  %1378 = vmatprep.subr.bf16.mxu0 0
  %1379 = vmatpush2.bf16.msra.mxu0 0
  %1380 = vmatprep.subr.bf16.mxu0 0
  %1381 = vmatpush2.bf16.msra.mxu0 0
  %1382 = vmatprep.subr.bf16.mxu0 0
  %1383 = vmatpush2.bf16.msra.mxu0 0
  %1384 = vmatprep.subr.bf16.mxu0 0
  %1385 = vmatpush2.bf16.msra.mxu0 0
  %1386 = vmatprep.subr.bf16.mxu0 0
  %1387 = vmatpush2.bf16.msra.mxu0 0
  %1388 = vmatprep.subr.bf16.mxu0 0
  %1389 = vmatpush2.bf16.msra.mxu0 0
  %1390 = vmatprep.subr.bf16.mxu0 0
  %1391 = vmatpush2.bf16.msra.mxu0 0
  %1392 = vmatprep.subr.bf16.mxu0 0
  %1393 = vmatpush2.bf16.msra.mxu0 0
  %1394 = vmatprep.mubr.bf16.mxu0 0
  %1395 = vmatmul.mubr.bf16.gmra.mxu0 %v1360
  %v1396 = vpop.f32.mrf.mxu0
  %v1397 = vadd.f32 %v1345, %v1396
  %v1398 = vpop.f32.mrf.mxu0
  %v1399 = vpop.f32.mrf.mxu0
  %v1400 = vadd.f32 %v1345, %v1399
  %v1401 = vpop.f32.mrf.mxu0
  %1402 = vdwg.mxu0
  %v1403 = vadd.f32 %v343, %v1397
  %v1404 = vadd.f32 %v344, %v1400
  %v1405 = vld [vmem:[%s13] sm:$0x1]
  %v1406 = vld [vmem:[%s14] sm:$0x1]
  %v1407 = vsel %vm369, %v1403, 0.0
  %1408 = vadd.xlane.f32.xlu0 %v1407
  %v1409 = vpop.xlane.xlu0 %1408
  %v1410 = vsel %vm369, %v1404, 0.0
  %1411 = vadd.xlane.f32.xlu0 %v1410
  %v1412 = vpop.xlane.xlu0 %1411
  %v1413 = vrcp.pop 32.0
  %v1414 = vmul.f32 %v1409, %v1413
  %v1415 = vmul.f32 %v1412, %v1413
  %v1416 = vsub.f32 %v1403, %v1414
  %v1417 = vsub.f32 %v1404, %v1415
  %v1418 = vmul.f32 %v1416, %v1416
  %v1419 = vmul.f32 %v1417, %v1417
  %v1420 = vsel %vm369, %v1418, 0.0
  %1421 = vadd.xlane.f32.xlu0 %v1420
  %v1422 = vpop.xlane.xlu0 %1421
  %v1423 = vsel %vm369, %v1419, 0.0
  %1424 = vadd.xlane.f32.xlu0 %v1423
  %v1425 = vpop.xlane.xlu0 %1424
  %v1426 = vmul.f32 %v1422, %v1413
  %v1427 = vmul.f32 %v1425, %v1413
  %v1428 = vadd.f32 %v1426, 1e-05
  %v1429 = vadd.f32 %v1427, 1e-05
  %v1430 = vrsqrt.pop %v1428
  %v1431 = vrsqrt.pop %v1429
  %v1432 = vmul.f32 %v1416, %v1430
  %v1433 = vmul.f32 %v1417, %v1431
  %v1435 = vlaneseq
  %v1436 = vshrl.u32 %v1435, 7
  %v1437 = vsub.s32 0, %v1436
  %v1438 = vrot.slane %v1405, %v1437
  %v1440 = vmul.f32 %v1432, %v1438
  %v1441 = vmul.f32 %v1433, %v1438
  %v1443 = vlaneseq
  %v1444 = vshrl.u32 %v1443, 7
  %v1445 = vsub.s32 0, %v1444
  %v1446 = vrot.slane %v1406, %v1445
  %v1448 = vadd.f32 %v1440, %v1446
  %v1449 = vadd.f32 %v1441, %v1446
  %v1450 = vpack.c.bf16 %v1449, %v1448
  %v1451 = vld [vmem:[%s15] sm:$0xf]
  %v1452 = vld [vmem:[%s15 + $0x4] sm:$0xf]
  %v1453 = vld [vmem:[%s15 + $0x8] sm:$0xf]
  %v1454 = vld [vmem:[%s15 + $0xc] sm:$0xf]
  %v1455 = vld [vmem:[%s16] sm:$0x1]
  %v1457 = vlaneseq
  %v1458 = vshrl.u32 %v1457, 7
  %v1459 = vsub.s32 0, %v1458
  %v1460 = vrot.slane %v1455, %v1459
  %v1466 = vunpack.c.l.b16 %v1451
  %v1467 = vunpack.c.l.b16 %v1452
  %v1468 = vunpack.c.l.b16 %v1453
  %v1469 = vunpack.c.l.b16 %v1454
  %v1470 = vpack.c.b16 %v1467, %v1466
  %v1471 = vpack.c.b16 %v1469, %v1468
  %v1475 = vsel %vm369, %v1450, 0
  %1477 = vmatprep.subr.bf16.mxu0 0
  %1478 = vmatpush1.bf16.msra.mxu0 0
  %1479 = vmatprep.subr.bf16.mxu0 0
  %1480 = vmatpush1.bf16.msra.mxu0 0
  %1481 = vmatprep.subr.bf16.mxu0 0
  %1482 = vmatpush1.bf16.msra.mxu0 0
  %1483 = vmatprep.subr.bf16.mxu0 0
  %1484 = vmatpush1.bf16.msra.mxu0 0
  %1485 = vmatprep.subr.bf16.mxu0 0
  %1486 = vmatpush1.bf16.msra.mxu0 0
  %1487 = vmatprep.subr.bf16.mxu0 0
  %1488 = vmatpush1.bf16.msra.mxu0 0
  %1489 = vmatprep.subr.bf16.mxu0 0
  %1490 = vmatpush1.bf16.msra.mxu0 %v1471
  %1491 = vmatprep.subr.bf16.mxu0 0
  %1492 = vmatpush1.bf16.msra.mxu0 %v1470
  %1493 = vmatprep.subr.bf16.mxu0 0
  %1494 = vmatpush2.bf16.msra.mxu0 0
  %1495 = vmatprep.subr.bf16.mxu0 0
  %1496 = vmatpush2.bf16.msra.mxu0 0
  %1497 = vmatprep.subr.bf16.mxu0 0
  %1498 = vmatpush2.bf16.msra.mxu0 0
  %1499 = vmatprep.subr.bf16.mxu0 0
  %1500 = vmatpush2.bf16.msra.mxu0 0
  %1501 = vmatprep.subr.bf16.mxu0 0
  %1502 = vmatpush2.bf16.msra.mxu0 0
  %1503 = vmatprep.subr.bf16.mxu0 0
  %1504 = vmatpush2.bf16.msra.mxu0 0
  %1505 = vmatprep.subr.bf16.mxu0 0
  %1506 = vmatpush2.bf16.msra.mxu0 0
  %1507 = vmatprep.subr.bf16.mxu0 0
  %1508 = vmatpush2.bf16.msra.mxu0 0
  %1509 = vmatprep.mubr.bf16.mxu0 0
  %1510 = vmatmul.mubr.bf16.gmra.mxu0 %v1475
  %v1511 = vpop.f32.mrf.mxu0
  %v1512 = vadd.f32 %v1460, %v1511
  %v1513 = vpop.f32.mrf.mxu0
  %v1514 = vpop.f32.mrf.mxu0
  %v1515 = vadd.f32 %v1460, %v1514
  %v1516 = vpop.f32.mrf.mxu0
  %1517 = vdwg.mxu0
  %vm1518 = vcmp.gt.f32.partialorder %v1512, 0.0
  %vm1519 = vcmp.gt.f32.partialorder %v1515, 0.0
  %v1520 = vmul.f32 %v1512, 1.442695
  %v1521 = vpow.pop %v1520
  %v1522 = vmul.f32 %v1515, 1.442695
  %v1523 = vpow.pop %v1522
  %v1524 = vsub.f32 %v1521, 1.0
  %v1525 = vsub.f32 %v1523, 1.0
  %v1526 = vmul.f32 %v1524, 1.6732632
  %v1527 = vmul.f32 %v1525, 1.6732632
  %v1528 = vsel %vm1518, %v1512, %v1526
  %v1529 = vsel %vm1519, %v1515, %v1527
  %v1530 = vmul.f32 %v1528, 1.050701
  %v1531 = vmul.f32 %v1529, 1.050701
  %v1532 = vpack.c.bf16 %v1531, %v1530
  %v1533 = vld [vmem:[%s17] sm:$0xf]
  %v1534 = vld [vmem:[%s17 + $0x4] sm:$0xf]
  %v1535 = vld [vmem:[%s17 + $0x8] sm:$0xf]
  %v1536 = vld [vmem:[%s17 + $0xc] sm:$0xf]
  %v1537 = vld [vmem:[%s17 + $0x10] sm:$0xf]
  %v1538 = vld [vmem:[%s17 + $0x14] sm:$0xf]
  %v1539 = vld [vmem:[%s17 + $0x18] sm:$0xf]
  %v1540 = vld [vmem:[%s17 + $0x1c] sm:$0xf]
  %v1541 = vld [vmem:[%s17 + $0x20] sm:$0xf]
  %v1542 = vld [vmem:[%s17 + $0x24] sm:$0xf]
  %v1543 = vld [vmem:[%s17 + $0x28] sm:$0xf]
  %v1544 = vld [vmem:[%s17 + $0x2c] sm:$0xf]
  %v1545 = vld [vmem:[%s17 + $0x30] sm:$0xf]
  %v1546 = vld [vmem:[%s17 + $0x34] sm:$0xf]
  %v1547 = vld [vmem:[%s17 + $0x38] sm:$0xf]
  %v1548 = vld [vmem:[%s17 + $0x3c] sm:$0xf]
  %v1549 = vld [vmem:[%s18] sm:$0x1]
  %v1551 = vlaneseq
  %v1552 = vshrl.u32 %v1551, 7
  %v1553 = vsub.s32 0, %v1552
  %v1554 = vrot.slane %v1549, %v1553
  %v1572 = vunpack.c.l.b16 %v1533
  %v1573 = vunpack.c.l.b16 %v1534
  %v1574 = vunpack.c.l.b16 %v1535
  %v1575 = vunpack.c.l.b16 %v1536
  %v1576 = vunpack.c.l.b16 %v1537
  %v1577 = vunpack.c.l.b16 %v1538
  %v1578 = vunpack.c.l.b16 %v1539
  %v1579 = vunpack.c.l.b16 %v1540
  %v1580 = vunpack.c.l.b16 %v1541
  %v1581 = vunpack.c.l.b16 %v1542
  %v1582 = vunpack.c.l.b16 %v1543
  %v1583 = vunpack.c.l.b16 %v1544
  %v1584 = vunpack.c.l.b16 %v1545
  %v1585 = vunpack.c.l.b16 %v1546
  %v1586 = vunpack.c.l.b16 %v1547
  %v1587 = vunpack.c.l.b16 %v1548
  %v1588 = vpack.c.b16 %v1573, %v1572
  %v1589 = vpack.c.b16 %v1575, %v1574
  %v1590 = vpack.c.b16 %v1577, %v1576
  %v1591 = vpack.c.b16 %v1579, %v1578
  %v1592 = vpack.c.b16 %v1581, %v1580
  %v1593 = vpack.c.b16 %v1583, %v1582
  %v1594 = vpack.c.b16 %v1585, %v1584
  %v1595 = vpack.c.b16 %v1587, %v1586
  %1604 = vmatprep.subr.bf16.mxu0 0
  %1605 = vmatpush1.bf16.msra.mxu0 %v1595
  %1606 = vmatprep.subr.bf16.mxu0 0
  %1607 = vmatpush1.bf16.msra.mxu0 %v1594
  %1608 = vmatprep.subr.bf16.mxu0 0
  %1609 = vmatpush1.bf16.msra.mxu0 %v1593
  %1610 = vmatprep.subr.bf16.mxu0 0
  %1611 = vmatpush1.bf16.msra.mxu0 %v1592
  %1612 = vmatprep.subr.bf16.mxu0 0
  %1613 = vmatpush1.bf16.msra.mxu0 %v1591
  %1614 = vmatprep.subr.bf16.mxu0 0
  %1615 = vmatpush1.bf16.msra.mxu0 %v1590
  %1616 = vmatprep.subr.bf16.mxu0 0
  %1617 = vmatpush1.bf16.msra.mxu0 %v1589
  %1618 = vmatprep.subr.bf16.mxu0 0
  %1619 = vmatpush1.bf16.msra.mxu0 %v1588
  %1620 = vmatprep.subr.bf16.mxu0 0
  %1621 = vmatpush2.bf16.msra.mxu0 0
  %1622 = vmatprep.subr.bf16.mxu0 0
  %1623 = vmatpush2.bf16.msra.mxu0 0
  %1624 = vmatprep.subr.bf16.mxu0 0
  %1625 = vmatpush2.bf16.msra.mxu0 0
  %1626 = vmatprep.subr.bf16.mxu0 0
  %1627 = vmatpush2.bf16.msra.mxu0 0
  %1628 = vmatprep.subr.bf16.mxu0 0
  %1629 = vmatpush2.bf16.msra.mxu0 0
  %1630 = vmatprep.subr.bf16.mxu0 0
  %1631 = vmatpush2.bf16.msra.mxu0 0
  %1632 = vmatprep.subr.bf16.mxu0 0
  %1633 = vmatpush2.bf16.msra.mxu0 0
  %1634 = vmatprep.subr.bf16.mxu0 0
  %1635 = vmatpush2.bf16.msra.mxu0 0
  %1636 = vmatprep.mubr.bf16.mxu0 0
  %1637 = vmatmul.mubr.bf16.gmra.mxu0 %v1532
  %v1638 = vpop.f32.mrf.mxu0
  %v1639 = vadd.f32 %v1554, %v1638
  %v1640 = vpop.f32.mrf.mxu0
  %v1641 = vpop.f32.mrf.mxu0
  %v1642 = vadd.f32 %v1554, %v1641
  %v1643 = vpop.f32.mrf.mxu0
  %1644 = vdwg.mxu0
  %v1645 = vadd.f32 %v1448, %v1639
  %v1646 = vadd.f32 %v1449, %v1642
  %v1647 = vld [vmem:[%s19] sm:$0x1]
  %v1648 = vld [vmem:[%s20] sm:$0x1]
  %v1649 = vsel %vm369, %v1645, 0.0
  %1650 = vadd.xlane.f32.xlu0 %v1649
  %v1651 = vpop.xlane.xlu0 %1650
  %v1652 = vsel %vm369, %v1646, 0.0
  %1653 = vadd.xlane.f32.xlu0 %v1652
  %v1654 = vpop.xlane.xlu0 %1653
  %v1655 = vmul.f32 %v1651, %v1413
  %v1656 = vmul.f32 %v1654, %v1413
  %v1657 = vsub.f32 %v1645, %v1655
  %v1658 = vsub.f32 %v1646, %v1656
  %v1659 = vmul.f32 %v1657, %v1657
  %v1660 = vmul.f32 %v1658, %v1658
  %v1661 = vsel %vm369, %v1659, 0.0
  %1662 = vadd.xlane.f32.xlu0 %v1661
  %v1663 = vpop.xlane.xlu0 %1662
  %v1664 = vsel %vm369, %v1660, 0.0
  %1665 = vadd.xlane.f32.xlu0 %v1664
  %v1666 = vpop.xlane.xlu0 %1665
  %v1667 = vmul.f32 %v1663, %v1413
  %v1668 = vmul.f32 %v1666, %v1413
  %v1669 = vadd.f32 %v1667, 1e-05
  %v1670 = vadd.f32 %v1668, 1e-05
  %v1671 = vrsqrt.pop %v1669
  %v1672 = vrsqrt.pop %v1670
  %v1673 = vmul.f32 %v1657, %v1671
  %v1674 = vmul.f32 %v1658, %v1672
  %v1676 = vlaneseq
  %v1677 = vshrl.u32 %v1676, 7
  %v1678 = vsub.s32 0, %v1677
  %v1679 = vrot.slane %v1647, %v1678
  %v1681 = vmul.f32 %v1673, %v1679
  %v1682 = vmul.f32 %v1674, %v1679
  %v1684 = vlaneseq
  %v1685 = vshrl.u32 %v1684, 7
  %v1686 = vsub.s32 0, %v1685
  %v1687 = vrot.slane %v1648, %v1686
  %v1689 = vadd.f32 %v1681, %v1687
  %v1690 = vadd.f32 %v1682, %v1687
  %v1691 = vpack.c.bf16 %v1690, %v1689
  %s1692 = scalar_lea.vmem %s9, 16
  %v1693 = vld [vmem:[%s1692] sm:$0xf]
  %v1694 = vld [vmem:[%s1692 + $0x4] sm:$0xf]
  %v1695 = vld [vmem:[%s1692 + $0x8] sm:$0xf]
  %v1696 = vld [vmem:[%s1692 + $0xc] sm:$0xf]
  %s1697 = scalar_lea.vmem %s10, 1
  %v1698 = vld [vmem:[%s1697] sm:$0x1]
  %v1700 = vlaneseq
  %v1701 = vshrl.u32 %v1700, 7
  %v1702 = vsub.s32 0, %v1701
  %v1703 = vrot.slane %v1698, %v1702
  %v1709 = vunpack.c.l.b16 %v1693
  %v1710 = vunpack.c.l.b16 %v1694
  %v1711 = vunpack.c.l.b16 %v1695
  %v1712 = vunpack.c.l.b16 %v1696
  %v1713 = vpack.c.b16 %v1710, %v1709
  %v1714 = vpack.c.b16 %v1712, %v1711
  %v1718 = vsel %vm369, %v1691, 0
  %1720 = vmatprep.subr.bf16.mxu0 0
  %1721 = vmatpush1.bf16.msra.mxu0 0
  %1722 = vmatprep.subr.bf16.mxu0 0
  %1723 = vmatpush1.bf16.msra.mxu0 0
  %1724 = vmatprep.subr.bf16.mxu0 0
  %1725 = vmatpush1.bf16.msra.mxu0 0
  %1726 = vmatprep.subr.bf16.mxu0 0
  %1727 = vmatpush1.bf16.msra.mxu0 0
  %1728 = vmatprep.subr.bf16.mxu0 0
  %1729 = vmatpush1.bf16.msra.mxu0 0
  %1730 = vmatprep.subr.bf16.mxu0 0
  %1731 = vmatpush1.bf16.msra.mxu0 0
  %1732 = vmatprep.subr.bf16.mxu0 0
  %1733 = vmatpush1.bf16.msra.mxu0 %v1714
  %1734 = vmatprep.subr.bf16.mxu0 0
  %1735 = vmatpush1.bf16.msra.mxu0 %v1713
  %1736 = vmatprep.subr.bf16.mxu0 0
  %1737 = vmatpush2.bf16.msra.mxu0 0
  %1738 = vmatprep.subr.bf16.mxu0 0
  %1739 = vmatpush2.bf16.msra.mxu0 0
  %1740 = vmatprep.subr.bf16.mxu0 0
  %1741 = vmatpush2.bf16.msra.mxu0 0
  %1742 = vmatprep.subr.bf16.mxu0 0
  %1743 = vmatpush2.bf16.msra.mxu0 0
  %1744 = vmatprep.subr.bf16.mxu0 0
  %1745 = vmatpush2.bf16.msra.mxu0 0
  %1746 = vmatprep.subr.bf16.mxu0 0
  %1747 = vmatpush2.bf16.msra.mxu0 0
  %1748 = vmatprep.subr.bf16.mxu0 0
  %1749 = vmatpush2.bf16.msra.mxu0 0
  %1750 = vmatprep.subr.bf16.mxu0 0
  %1751 = vmatpush2.bf16.msra.mxu0 0
  %1752 = vmatprep.mubr.bf16.mxu0 0
  %1753 = vmatmul.mubr.bf16.gmra.mxu0 %v1718
  %v1754 = vpop.f32.mrf.mxu0
  %v1755 = vadd.f32 %v1703, %v1754
  %v1756 = vpop.f32.mrf.mxu0
  %v1757 = vpop.f32.mrf.mxu0
  %v1758 = vadd.f32 %v1703, %v1757
  %v1759 = vpop.f32.mrf.mxu0
  %1760 = vdwg.mxu0
  %v1761 = vpack.c.bf16 %v1758, %v1755
  %v1763 = vunpack.c.l.b16 %v1761
  %v1764 = vunpack.c.h.b16 %v1761
  %v1765 = vpack.c.b16 %v1763, %v1763
  %v1766 = vpack.c.b16 %v1764, %v1764
  %1767 = vrot.lane.b32.xlu0 %v1765, 96
  %v1768 = vpop.permute.xlu0 %1767
  %v1770 = vsel %vm164, %v1765, 0
  %v1773 = vsel %vm164, %v1768, 0
  %1775 = vmatprep.subr.bf16.mxu0 0
  %1776 = vmatpush1.bf16.xpose.msra.mxu0 0
  %1777 = vmatprep.subr.bf16.mxu0 0
  %1778 = vmatpush1.bf16.xpose.msra.mxu0 0
  %1779 = vmatprep.subr.bf16.mxu0 0
  %1780 = vmatpush1.bf16.xpose.msra.mxu0 0
  %1781 = vmatprep.subr.bf16.mxu0 0
  %1782 = vmatpush1.bf16.xpose.msra.mxu0 0
  %1783 = vmatprep.subr.bf16.mxu0 0
  %1784 = vmatpush1.bf16.xpose.msra.mxu0 0
  %1785 = vmatprep.subr.bf16.mxu0 0
  %1786 = vmatpush1.bf16.xpose.msra.mxu0 0
  %1787 = vmatprep.subr.bf16.mxu0 0
  %1788 = vmatpush1.bf16.xpose.msra.mxu0 0
  %1789 = vmatprep.subr.bf16.mxu0 0
  %1790 = vmatpush1.bf16.xpose.msra.mxu0 %v1773
  %1791 = vmatprep.subr.bf16.mxu0 0
  %1792 = vmatpush2.bf16.xpose.msra.mxu0 0
  %1793 = vmatprep.subr.bf16.mxu0 0
  %1794 = vmatpush2.bf16.xpose.msra.mxu0 0
  %1795 = vmatprep.subr.bf16.mxu0 0
  %1796 = vmatpush2.bf16.xpose.msra.mxu0 0
  %1797 = vmatprep.subr.bf16.mxu0 0
  %1798 = vmatpush2.bf16.xpose.msra.mxu0 0
  %1799 = vmatprep.subr.bf16.mxu0 0
  %1800 = vmatpush2.bf16.xpose.msra.mxu0 0
  %1801 = vmatprep.subr.bf16.mxu0 0
  %1802 = vmatpush2.bf16.xpose.msra.mxu0 0
  %1803 = vmatprep.subr.bf16.mxu0 0
  %1804 = vmatpush2.bf16.xpose.msra.mxu0 0
  %1805 = vmatprep.subr.bf16.mxu0 0
  %1806 = vmatpush2.bf16.xpose.msra.mxu0 0
  %1807 = vmatprep.mubr.bf16.mxu0 0
  %1808 = vmatmul.mubr.bf16.gmra.mxu0 %v1770
  %v1809 = vpop.f32.mrf.mxu0
  %v1810 = vadd.f32 0.0, %v1809
  %v1811 = vpop.f32.mrf.mxu0
  %v1812 = vpop.f32.mrf.mxu0
  %v1813 = vpop.f32.mrf.mxu0
  %1814 = vdwg.mxu0
  %1815 = vrot.lane.b32.xlu0 %v1766, 96
  %v1816 = vpop.permute.xlu0 %1815
  %v1818 = vsel %vm164, %v1766, 0
  %v1821 = vsel %vm164, %v1816, 0
  %1823 = vmatprep.subr.bf16.mxu0 0
  %1824 = vmatpush1.bf16.xpose.msra.mxu0 0
  %1825 = vmatprep.subr.bf16.mxu0 0
  %1826 = vmatpush1.bf16.xpose.msra.mxu0 0
  %1827 = vmatprep.subr.bf16.mxu0 0
  %1828 = vmatpush1.bf16.xpose.msra.mxu0 0
  %1829 = vmatprep.subr.bf16.mxu0 0
  %1830 = vmatpush1.bf16.xpose.msra.mxu0 0
  %1831 = vmatprep.subr.bf16.mxu0 0
  %1832 = vmatpush1.bf16.xpose.msra.mxu0 0
  %1833 = vmatprep.subr.bf16.mxu0 0
  %1834 = vmatpush1.bf16.xpose.msra.mxu0 0
  %1835 = vmatprep.subr.bf16.mxu0 0
  %1836 = vmatpush1.bf16.xpose.msra.mxu0 0
  %1837 = vmatprep.subr.bf16.mxu0 0
  %1838 = vmatpush1.bf16.xpose.msra.mxu0 %v1821
  %1839 = vmatprep.subr.bf16.mxu0 0
  %1840 = vmatpush2.bf16.xpose.msra.mxu0 0
  %1841 = vmatprep.subr.bf16.mxu0 0
  %1842 = vmatpush2.bf16.xpose.msra.mxu0 0
  %1843 = vmatprep.subr.bf16.mxu0 0
  %1844 = vmatpush2.bf16.xpose.msra.mxu0 0
  %1845 = vmatprep.subr.bf16.mxu0 0
  %1846 = vmatpush2.bf16.xpose.msra.mxu0 0
  %1847 = vmatprep.subr.bf16.mxu0 0
  %1848 = vmatpush2.bf16.xpose.msra.mxu0 0
  %1849 = vmatprep.subr.bf16.mxu0 0
  %1850 = vmatpush2.bf16.xpose.msra.mxu0 0
  %1851 = vmatprep.subr.bf16.mxu0 0
  %1852 = vmatpush2.bf16.xpose.msra.mxu0 0
  %1853 = vmatprep.subr.bf16.mxu0 0
  %1854 = vmatpush2.bf16.xpose.msra.mxu0 0
  %1855 = vmatprep.mubr.bf16.mxu0 0
  %1856 = vmatmul.mubr.bf16.gmra.mxu0 %v1818
  %v1857 = vpop.f32.mrf.mxu0
  %v1858 = vadd.f32 0.0, %v1857
  %v1859 = vpop.f32.mrf.mxu0
  %v1860 = vpop.f32.mrf.mxu0
  %v1861 = vpop.f32.mrf.mxu0
  %1862 = vdwg.mxu0
  %v1863 = vmul.f32 %v1810, 0.35355338
  %v1864 = vmul.f32 %v1858, 0.35355338
  %v1865 = vsel %vm164, %v1863, -inf
  %1866 = vmax.xlane.f32.xlu0 %v1865
  %v1867 = vpop.xlane.xlu0 %1866
  %v1868 = vsel %vm164, %v1864, -inf
  %1869 = vmax.xlane.f32.xlu0 %v1868
  %v1870 = vpop.xlane.xlu0 %1869
  %v1871 = vsub.f32 %v1863, %v1867
  %v1872 = vsub.f32 %v1864, %v1870
  %v1873 = vmul.f32 %v1871, 1.442695
  %v1874 = vpow.pop %v1873
  %v1875 = vmul.f32 %v1872, 1.442695
  %v1876 = vpow.pop %v1875
  %v1877 = vsel %vm164, %v1874, 0.0
  %1878 = vadd.xlane.f32.xlu0 %v1877
  %v1879 = vpop.xlane.xlu0 %1878
  %v1880 = vsel %vm164, %v1876, 0.0
  %1881 = vadd.xlane.f32.xlu0 %v1880
  %v1882 = vpop.xlane.xlu0 %1881
  %v1883 = vrcp.pop %v1879
  %v1884 = vrcp.pop %v1882
  %v1885 = vmul.f32 %v1874, %v1883
  %v1886 = vmul.f32 %v1876, %v1884
  %v1887 = vpack.c.bf16 %v1885, %v1885
  %v1888 = vpack.c.bf16 %v1886, %v1886
  %1889 = vrot.lane.b32.xlu0 %v1765, 64
  %v1890 = vpop.permute.xlu0 %1889
  %v1892 = vsel %vm164, %v1887, 0
  %v1895 = vsel %vm168, %v1890, 0
  %1897 = vmatprep.subr.bf16.mxu0 0
  %1898 = vmatpush1.bf16.msra.mxu0 0
  %1899 = vmatprep.subr.bf16.mxu0 0
  %1900 = vmatpush1.bf16.msra.mxu0 0
  %1901 = vmatprep.subr.bf16.mxu0 0
  %1902 = vmatpush1.bf16.msra.mxu0 0
  %1903 = vmatprep.subr.bf16.mxu0 0
  %1904 = vmatpush1.bf16.msra.mxu0 0
  %1905 = vmatprep.subr.bf16.mxu0 0
  %1906 = vmatpush1.bf16.msra.mxu0 0
  %1907 = vmatprep.subr.bf16.mxu0 0
  %1908 = vmatpush1.bf16.msra.mxu0 0
  %1909 = vmatprep.subr.bf16.mxu0 0
  %1910 = vmatpush1.bf16.msra.mxu0 0
  %1911 = vmatprep.subr.bf16.mxu0 0
  %1912 = vmatpush1.bf16.msra.mxu0 %v1895
  %1913 = vmatprep.subr.bf16.mxu0 0
  %1914 = vmatpush2.bf16.msra.mxu0 0
  %1915 = vmatprep.subr.bf16.mxu0 0
  %1916 = vmatpush2.bf16.msra.mxu0 0
  %1917 = vmatprep.subr.bf16.mxu0 0
  %1918 = vmatpush2.bf16.msra.mxu0 0
  %1919 = vmatprep.subr.bf16.mxu0 0
  %1920 = vmatpush2.bf16.msra.mxu0 0
  %1921 = vmatprep.subr.bf16.mxu0 0
  %1922 = vmatpush2.bf16.msra.mxu0 0
  %1923 = vmatprep.subr.bf16.mxu0 0
  %1924 = vmatpush2.bf16.msra.mxu0 0
  %1925 = vmatprep.subr.bf16.mxu0 0
  %1926 = vmatpush2.bf16.msra.mxu0 0
  %1927 = vmatprep.subr.bf16.mxu0 0
  %1928 = vmatpush2.bf16.msra.mxu0 0
  %1929 = vmatprep.mubr.bf16.mxu0 0
  %1930 = vmatmul.mubr.bf16.gmra.mxu0 %v1892
  %v1931 = vpop.f32.mrf.mxu0
  %v1932 = vadd.f32 0.0, %v1931
  %v1933 = vpop.f32.mrf.mxu0
  %v1934 = vpop.f32.mrf.mxu0
  %v1935 = vpop.f32.mrf.mxu0
  %1936 = vdwg.mxu0
  %1937 = vrot.lane.b32.xlu0 %v1766, 64
  %v1938 = vpop.permute.xlu0 %1937
  %v1940 = vsel %vm164, %v1888, 0
  %v1943 = vsel %vm168, %v1938, 0
  %1945 = vmatprep.subr.bf16.mxu0 0
  %1946 = vmatpush1.bf16.msra.mxu0 0
  %1947 = vmatprep.subr.bf16.mxu0 0
  %1948 = vmatpush1.bf16.msra.mxu0 0
  %1949 = vmatprep.subr.bf16.mxu0 0
  %1950 = vmatpush1.bf16.msra.mxu0 0
  %1951 = vmatprep.subr.bf16.mxu0 0
  %1952 = vmatpush1.bf16.msra.mxu0 0
  %1953 = vmatprep.subr.bf16.mxu0 0
  %1954 = vmatpush1.bf16.msra.mxu0 0
  %1955 = vmatprep.subr.bf16.mxu0 0
  %1956 = vmatpush1.bf16.msra.mxu0 0
  %1957 = vmatprep.subr.bf16.mxu0 0
  %1958 = vmatpush1.bf16.msra.mxu0 0
  %1959 = vmatprep.subr.bf16.mxu0 0
  %1960 = vmatpush1.bf16.msra.mxu0 %v1943
  %1961 = vmatprep.subr.bf16.mxu0 0
  %1962 = vmatpush2.bf16.msra.mxu0 0
  %1963 = vmatprep.subr.bf16.mxu0 0
  %1964 = vmatpush2.bf16.msra.mxu0 0
  %1965 = vmatprep.subr.bf16.mxu0 0
  %1966 = vmatpush2.bf16.msra.mxu0 0
  %1967 = vmatprep.subr.bf16.mxu0 0
  %1968 = vmatpush2.bf16.msra.mxu0 0
  %1969 = vmatprep.subr.bf16.mxu0 0
  %1970 = vmatpush2.bf16.msra.mxu0 0
  %1971 = vmatprep.subr.bf16.mxu0 0
  %1972 = vmatpush2.bf16.msra.mxu0 0
  %1973 = vmatprep.subr.bf16.mxu0 0
  %1974 = vmatpush2.bf16.msra.mxu0 0
  %1975 = vmatprep.subr.bf16.mxu0 0
  %1976 = vmatpush2.bf16.msra.mxu0 0
  %1977 = vmatprep.mubr.bf16.mxu0 0
  %1978 = vmatmul.mubr.bf16.gmra.mxu0 %v1940
  %v1979 = vpop.f32.mrf.mxu0
  %v1980 = vadd.f32 0.0, %v1979
  %v1981 = vpop.f32.mrf.mxu0
  %v1982 = vpop.f32.mrf.mxu0
  %v1983 = vpop.f32.mrf.mxu0
  %1984 = vdwg.mxu0
  %1985 = vrot.lane.b32.xlu0 %v1765, 120
  %v1986 = vpop.permute.xlu0 %1985
  %1987 = vrot.lane.b32.xlu0 %v1765, 88
  %v1988 = vpop.permute.xlu0 %1987
  %v1990 = vsel %vm164, %v1986, 0
  %v1993 = vsel %vm164, %v1988, 0
  %1995 = vmatprep.subr.bf16.mxu0 0
  %1996 = vmatpush1.bf16.xpose.msra.mxu0 0
  %1997 = vmatprep.subr.bf16.mxu0 0
  %1998 = vmatpush1.bf16.xpose.msra.mxu0 0
  %1999 = vmatprep.subr.bf16.mxu0 0
  %2000 = vmatpush1.bf16.xpose.msra.mxu0 0
  %2001 = vmatprep.subr.bf16.mxu0 0
  %2002 = vmatpush1.bf16.xpose.msra.mxu0 0
  %2003 = vmatprep.subr.bf16.mxu0 0
  %2004 = vmatpush1.bf16.xpose.msra.mxu0 0
  %2005 = vmatprep.subr.bf16.mxu0 0
  %2006 = vmatpush1.bf16.xpose.msra.mxu0 0
  %2007 = vmatprep.subr.bf16.mxu0 0
  %2008 = vmatpush1.bf16.xpose.msra.mxu0 0
  %2009 = vmatprep.subr.bf16.mxu0 0
  %2010 = vmatpush1.bf16.xpose.msra.mxu0 %v1993
  %2011 = vmatprep.subr.bf16.mxu0 0
  %2012 = vmatpush2.bf16.xpose.msra.mxu0 0
  %2013 = vmatprep.subr.bf16.mxu0 0
  %2014 = vmatpush2.bf16.xpose.msra.mxu0 0
  %2015 = vmatprep.subr.bf16.mxu0 0
  %2016 = vmatpush2.bf16.xpose.msra.mxu0 0
  %2017 = vmatprep.subr.bf16.mxu0 0
  %2018 = vmatpush2.bf16.xpose.msra.mxu0 0
  %2019 = vmatprep.subr.bf16.mxu0 0
  %2020 = vmatpush2.bf16.xpose.msra.mxu0 0
  %2021 = vmatprep.subr.bf16.mxu0 0
  %2022 = vmatpush2.bf16.xpose.msra.mxu0 0
  %2023 = vmatprep.subr.bf16.mxu0 0
  %2024 = vmatpush2.bf16.xpose.msra.mxu0 0
  %2025 = vmatprep.subr.bf16.mxu0 0
  %2026 = vmatpush2.bf16.xpose.msra.mxu0 0
  %2027 = vmatprep.mubr.bf16.mxu0 0
  %2028 = vmatmul.mubr.bf16.gmra.mxu0 %v1990
  %v2029 = vpop.f32.mrf.mxu0
  %v2030 = vadd.f32 0.0, %v2029
  %v2031 = vpop.f32.mrf.mxu0
  %v2032 = vpop.f32.mrf.mxu0
  %v2033 = vpop.f32.mrf.mxu0
  %2034 = vdwg.mxu0
  %2035 = vrot.lane.b32.xlu0 %v1766, 120
  %v2036 = vpop.permute.xlu0 %2035
  %2037 = vrot.lane.b32.xlu0 %v1766, 88
  %v2038 = vpop.permute.xlu0 %2037
  %v2040 = vsel %vm164, %v2036, 0
  %v2043 = vsel %vm164, %v2038, 0
  %2045 = vmatprep.subr.bf16.mxu0 0
  %2046 = vmatpush1.bf16.xpose.msra.mxu0 0
  %2047 = vmatprep.subr.bf16.mxu0 0
  %2048 = vmatpush1.bf16.xpose.msra.mxu0 0
  %2049 = vmatprep.subr.bf16.mxu0 0
  %2050 = vmatpush1.bf16.xpose.msra.mxu0 0
  %2051 = vmatprep.subr.bf16.mxu0 0
  %2052 = vmatpush1.bf16.xpose.msra.mxu0 0
  %2053 = vmatprep.subr.bf16.mxu0 0
  %2054 = vmatpush1.bf16.xpose.msra.mxu0 0
  %2055 = vmatprep.subr.bf16.mxu0 0
  %2056 = vmatpush1.bf16.xpose.msra.mxu0 0
  %2057 = vmatprep.subr.bf16.mxu0 0
  %2058 = vmatpush1.bf16.xpose.msra.mxu0 0
  %2059 = vmatprep.subr.bf16.mxu0 0
  %2060 = vmatpush1.bf16.xpose.msra.mxu0 %v2043
  %2061 = vmatprep.subr.bf16.mxu0 0
  %2062 = vmatpush2.bf16.xpose.msra.mxu0 0
  %2063 = vmatprep.subr.bf16.mxu0 0
  %2064 = vmatpush2.bf16.xpose.msra.mxu0 0
  %2065 = vmatprep.subr.bf16.mxu0 0
  %2066 = vmatpush2.bf16.xpose.msra.mxu0 0
  %2067 = vmatprep.subr.bf16.mxu0 0
  %2068 = vmatpush2.bf16.xpose.msra.mxu0 0
  %2069 = vmatprep.subr.bf16.mxu0 0
  %2070 = vmatpush2.bf16.xpose.msra.mxu0 0
  %2071 = vmatprep.subr.bf16.mxu0 0
  %2072 = vmatpush2.bf16.xpose.msra.mxu0 0
  %2073 = vmatprep.subr.bf16.mxu0 0
  %2074 = vmatpush2.bf16.xpose.msra.mxu0 0
  %2075 = vmatprep.subr.bf16.mxu0 0
  %2076 = vmatpush2.bf16.xpose.msra.mxu0 0
  %2077 = vmatprep.mubr.bf16.mxu0 0
  %2078 = vmatmul.mubr.bf16.gmra.mxu0 %v2040
  %v2079 = vpop.f32.mrf.mxu0
  %v2080 = vadd.f32 0.0, %v2079
  %v2081 = vpop.f32.mrf.mxu0
  %v2082 = vpop.f32.mrf.mxu0
  %v2083 = vpop.f32.mrf.mxu0
  %2084 = vdwg.mxu0
  %v2085 = vmul.f32 %v2030, 0.35355338
  %v2086 = vmul.f32 %v2080, 0.35355338
  %v2087 = vsel %vm164, %v2085, -inf
  %2088 = vmax.xlane.f32.xlu0 %v2087
  %v2089 = vpop.xlane.xlu0 %2088
  %v2090 = vsel %vm164, %v2086, -inf
  %2091 = vmax.xlane.f32.xlu0 %v2090
  %v2092 = vpop.xlane.xlu0 %2091
  %v2093 = vsub.f32 %v2085, %v2089
  %v2094 = vsub.f32 %v2086, %v2092
  %v2095 = vmul.f32 %v2093, 1.442695
  %v2096 = vpow.pop %v2095
  %v2097 = vmul.f32 %v2094, 1.442695
  %v2098 = vpow.pop %v2097
  %v2099 = vsel %vm164, %v2096, 0.0
  %2100 = vadd.xlane.f32.xlu0 %v2099
  %v2101 = vpop.xlane.xlu0 %2100
  %v2102 = vsel %vm164, %v2098, 0.0
  %2103 = vadd.xlane.f32.xlu0 %v2102
  %v2104 = vpop.xlane.xlu0 %2103
  %v2105 = vrcp.pop %v2101
  %v2106 = vrcp.pop %v2104
  %v2107 = vmul.f32 %v2096, %v2105
  %v2108 = vmul.f32 %v2098, %v2106
  %v2109 = vpack.c.bf16 %v2107, %v2107
  %v2110 = vpack.c.bf16 %v2108, %v2108
  %2111 = vrot.lane.b32.xlu0 %v1765, 56
  %v2112 = vpop.permute.xlu0 %2111
  %v2114 = vsel %vm164, %v2109, 0
  %v2117 = vsel %vm168, %v2112, 0
  %2119 = vmatprep.subr.bf16.mxu0 0
  %2120 = vmatpush1.bf16.msra.mxu0 0
  %2121 = vmatprep.subr.bf16.mxu0 0
  %2122 = vmatpush1.bf16.msra.mxu0 0
  %2123 = vmatprep.subr.bf16.mxu0 0
  %2124 = vmatpush1.bf16.msra.mxu0 0
  %2125 = vmatprep.subr.bf16.mxu0 0
  %2126 = vmatpush1.bf16.msra.mxu0 0
  %2127 = vmatprep.subr.bf16.mxu0 0
  %2128 = vmatpush1.bf16.msra.mxu0 0
  %2129 = vmatprep.subr.bf16.mxu0 0
  %2130 = vmatpush1.bf16.msra.mxu0 0
  %2131 = vmatprep.subr.bf16.mxu0 0
  %2132 = vmatpush1.bf16.msra.mxu0 0
  %2133 = vmatprep.subr.bf16.mxu0 0
  %2134 = vmatpush1.bf16.msra.mxu0 %v2117
  %2135 = vmatprep.subr.bf16.mxu0 0
  %2136 = vmatpush2.bf16.msra.mxu0 0
  %2137 = vmatprep.subr.bf16.mxu0 0
  %2138 = vmatpush2.bf16.msra.mxu0 0
  %2139 = vmatprep.subr.bf16.mxu0 0
  %2140 = vmatpush2.bf16.msra.mxu0 0
  %2141 = vmatprep.subr.bf16.mxu0 0
  %2142 = vmatpush2.bf16.msra.mxu0 0
  %2143 = vmatprep.subr.bf16.mxu0 0
  %2144 = vmatpush2.bf16.msra.mxu0 0
  %2145 = vmatprep.subr.bf16.mxu0 0
  %2146 = vmatpush2.bf16.msra.mxu0 0
  %2147 = vmatprep.subr.bf16.mxu0 0
  %2148 = vmatpush2.bf16.msra.mxu0 0
  %2149 = vmatprep.subr.bf16.mxu0 0
  %2150 = vmatpush2.bf16.msra.mxu0 0
  %2151 = vmatprep.mubr.bf16.mxu0 0
  %2152 = vmatmul.mubr.bf16.gmra.mxu0 %v2114
  %v2153 = vpop.f32.mrf.mxu0
  %v2154 = vadd.f32 0.0, %v2153
  %v2155 = vpop.f32.mrf.mxu0
  %v2156 = vpop.f32.mrf.mxu0
  %v2157 = vpop.f32.mrf.mxu0
  %2158 = vdwg.mxu0
  %2159 = vrot.lane.b32.xlu0 %v1766, 56
  %v2160 = vpop.permute.xlu0 %2159
  %v2162 = vsel %vm164, %v2110, 0
  %v2165 = vsel %vm168, %v2160, 0
  %2167 = vmatprep.subr.bf16.mxu0 0
  %2168 = vmatpush1.bf16.msra.mxu0 0
  %2169 = vmatprep.subr.bf16.mxu0 0
  %2170 = vmatpush1.bf16.msra.mxu0 0
  %2171 = vmatprep.subr.bf16.mxu0 0
  %2172 = vmatpush1.bf16.msra.mxu0 0
  %2173 = vmatprep.subr.bf16.mxu0 0
  %2174 = vmatpush1.bf16.msra.mxu0 0
  %2175 = vmatprep.subr.bf16.mxu0 0
  %2176 = vmatpush1.bf16.msra.mxu0 0
  %2177 = vmatprep.subr.bf16.mxu0 0
  %2178 = vmatpush1.bf16.msra.mxu0 0
  %2179 = vmatprep.subr.bf16.mxu0 0
  %2180 = vmatpush1.bf16.msra.mxu0 0
  %2181 = vmatprep.subr.bf16.mxu0 0
  %2182 = vmatpush1.bf16.msra.mxu0 %v2165
  %2183 = vmatprep.subr.bf16.mxu0 0
  %2184 = vmatpush2.bf16.msra.mxu0 0
  %2185 = vmatprep.subr.bf16.mxu0 0
  %2186 = vmatpush2.bf16.msra.mxu0 0
  %2187 = vmatprep.subr.bf16.mxu0 0
  %2188 = vmatpush2.bf16.msra.mxu0 0
  %2189 = vmatprep.subr.bf16.mxu0 0
  %2190 = vmatpush2.bf16.msra.mxu0 0
  %2191 = vmatprep.subr.bf16.mxu0 0
  %2192 = vmatpush2.bf16.msra.mxu0 0
  %2193 = vmatprep.subr.bf16.mxu0 0
  %2194 = vmatpush2.bf16.msra.mxu0 0
  %2195 = vmatprep.subr.bf16.mxu0 0
  %2196 = vmatpush2.bf16.msra.mxu0 0
  %2197 = vmatprep.subr.bf16.mxu0 0
  %2198 = vmatpush2.bf16.msra.mxu0 0
  %2199 = vmatprep.mubr.bf16.mxu0 0
  %2200 = vmatmul.mubr.bf16.gmra.mxu0 %v2162
  %v2201 = vpop.f32.mrf.mxu0
  %v2202 = vadd.f32 0.0, %v2201
  %v2203 = vpop.f32.mrf.mxu0
  %v2204 = vpop.f32.mrf.mxu0
  %v2205 = vpop.f32.mrf.mxu0
  %2206 = vdwg.mxu0
  %2207 = vrot.lane.b32.xlu0 %v1765, 112
  %v2208 = vpop.permute.xlu0 %2207
  %2209 = vrot.lane.b32.xlu0 %v1765, 80
  %v2210 = vpop.permute.xlu0 %2209
  %v2212 = vsel %vm164, %v2208, 0
  %v2215 = vsel %vm164, %v2210, 0
  %2217 = vmatprep.subr.bf16.mxu0 0
  %2218 = vmatpush1.bf16.xpose.msra.mxu0 0
  %2219 = vmatprep.subr.bf16.mxu0 0
  %2220 = vmatpush1.bf16.xpose.msra.mxu0 0
  %2221 = vmatprep.subr.bf16.mxu0 0
  %2222 = vmatpush1.bf16.xpose.msra.mxu0 0
  %2223 = vmatprep.subr.bf16.mxu0 0
  %2224 = vmatpush1.bf16.xpose.msra.mxu0 0
  %2225 = vmatprep.subr.bf16.mxu0 0
  %2226 = vmatpush1.bf16.xpose.msra.mxu0 0
  %2227 = vmatprep.subr.bf16.mxu0 0
  %2228 = vmatpush1.bf16.xpose.msra.mxu0 0
  %2229 = vmatprep.subr.bf16.mxu0 0
  %2230 = vmatpush1.bf16.xpose.msra.mxu0 0
  %2231 = vmatprep.subr.bf16.mxu0 0
  %2232 = vmatpush1.bf16.xpose.msra.mxu0 %v2215
  %2233 = vmatprep.subr.bf16.mxu0 0
  %2234 = vmatpush2.bf16.xpose.msra.mxu0 0
  %2235 = vmatprep.subr.bf16.mxu0 0
  %2236 = vmatpush2.bf16.xpose.msra.mxu0 0
  %2237 = vmatprep.subr.bf16.mxu0 0
  %2238 = vmatpush2.bf16.xpose.msra.mxu0 0
  %2239 = vmatprep.subr.bf16.mxu0 0
  %2240 = vmatpush2.bf16.xpose.msra.mxu0 0
  %2241 = vmatprep.subr.bf16.mxu0 0
  %2242 = vmatpush2.bf16.xpose.msra.mxu0 0
  %2243 = vmatprep.subr.bf16.mxu0 0
  %2244 = vmatpush2.bf16.xpose.msra.mxu0 0
  %2245 = vmatprep.subr.bf16.mxu0 0
  %2246 = vmatpush2.bf16.xpose.msra.mxu0 0
  %2247 = vmatprep.subr.bf16.mxu0 0
  %2248 = vmatpush2.bf16.xpose.msra.mxu0 0
  %2249 = vmatprep.mubr.bf16.mxu0 0
  %2250 = vmatmul.mubr.bf16.gmra.mxu0 %v2212
  %v2251 = vpop.f32.mrf.mxu0
  %v2252 = vadd.f32 0.0, %v2251
  %v2253 = vpop.f32.mrf.mxu0
  %v2254 = vpop.f32.mrf.mxu0
  %v2255 = vpop.f32.mrf.mxu0
  %2256 = vdwg.mxu0
  %2257 = vrot.lane.b32.xlu0 %v1766, 112
  %v2258 = vpop.permute.xlu0 %2257
  %2259 = vrot.lane.b32.xlu0 %v1766, 80
  %v2260 = vpop.permute.xlu0 %2259
  %v2262 = vsel %vm164, %v2258, 0
  %v2265 = vsel %vm164, %v2260, 0
  %2267 = vmatprep.subr.bf16.mxu0 0
  %2268 = vmatpush1.bf16.xpose.msra.mxu0 0
  %2269 = vmatprep.subr.bf16.mxu0 0
  %2270 = vmatpush1.bf16.xpose.msra.mxu0 0
  %2271 = vmatprep.subr.bf16.mxu0 0
  %2272 = vmatpush1.bf16.xpose.msra.mxu0 0
  %2273 = vmatprep.subr.bf16.mxu0 0
  %2274 = vmatpush1.bf16.xpose.msra.mxu0 0
  %2275 = vmatprep.subr.bf16.mxu0 0
  %2276 = vmatpush1.bf16.xpose.msra.mxu0 0
  %2277 = vmatprep.subr.bf16.mxu0 0
  %2278 = vmatpush1.bf16.xpose.msra.mxu0 0
  %2279 = vmatprep.subr.bf16.mxu0 0
  %2280 = vmatpush1.bf16.xpose.msra.mxu0 0
  %2281 = vmatprep.subr.bf16.mxu0 0
  %2282 = vmatpush1.bf16.xpose.msra.mxu0 %v2265
  %2283 = vmatprep.subr.bf16.mxu0 0
  %2284 = vmatpush2.bf16.xpose.msra.mxu0 0
  %2285 = vmatprep.subr.bf16.mxu0 0
  %2286 = vmatpush2.bf16.xpose.msra.mxu0 0
  %2287 = vmatprep.subr.bf16.mxu0 0
  %2288 = vmatpush2.bf16.xpose.msra.mxu0 0
  %2289 = vmatprep.subr.bf16.mxu0 0
  %2290 = vmatpush2.bf16.xpose.msra.mxu0 0
  %2291 = vmatprep.subr.bf16.mxu0 0
  %2292 = vmatpush2.bf16.xpose.msra.mxu0 0
  %2293 = vmatprep.subr.bf16.mxu0 0
  %2294 = vmatpush2.bf16.xpose.msra.mxu0 0
  %2295 = vmatprep.subr.bf16.mxu0 0
  %2296 = vmatpush2.bf16.xpose.msra.mxu0 0
  %2297 = vmatprep.subr.bf16.mxu0 0
  %2298 = vmatpush2.bf16.xpose.msra.mxu0 0
  %2299 = vmatprep.mubr.bf16.mxu0 0
  %2300 = vmatmul.mubr.bf16.gmra.mxu0 %v2262
  %v2301 = vpop.f32.mrf.mxu0
  %v2302 = vadd.f32 0.0, %v2301
  %v2303 = vpop.f32.mrf.mxu0
  %v2304 = vpop.f32.mrf.mxu0
  %v2305 = vpop.f32.mrf.mxu0
  %2306 = vdwg.mxu0
  %v2307 = vmul.f32 %v2252, 0.35355338
  %v2308 = vmul.f32 %v2302, 0.35355338
  %v2309 = vsel %vm164, %v2307, -inf
  %2310 = vmax.xlane.f32.xlu0 %v2309
  %v2311 = vpop.xlane.xlu0 %2310
  %v2312 = vsel %vm164, %v2308, -inf
  %2313 = vmax.xlane.f32.xlu0 %v2312
  %v2314 = vpop.xlane.xlu0 %2313
  %v2315 = vsub.f32 %v2307, %v2311
  %v2316 = vsub.f32 %v2308, %v2314
  %v2317 = vmul.f32 %v2315, 1.442695
  %v2318 = vpow.pop %v2317
  %v2319 = vmul.f32 %v2316, 1.442695
  %v2320 = vpow.pop %v2319
  %v2321 = vsel %vm164, %v2318, 0.0
  %2322 = vadd.xlane.f32.xlu0 %v2321
  %v2323 = vpop.xlane.xlu0 %2322
  %v2324 = vsel %vm164, %v2320, 0.0
  %2325 = vadd.xlane.f32.xlu0 %v2324
  %v2326 = vpop.xlane.xlu0 %2325
  %v2327 = vrcp.pop %v2323
  %v2328 = vrcp.pop %v2326
  %v2329 = vmul.f32 %v2318, %v2327
  %v2330 = vmul.f32 %v2320, %v2328
  %v2331 = vpack.c.bf16 %v2329, %v2329
  %v2332 = vpack.c.bf16 %v2330, %v2330
  %2333 = vrot.lane.b32.xlu0 %v1765, 48
  %v2334 = vpop.permute.xlu0 %2333
  %v2336 = vsel %vm164, %v2331, 0
  %v2339 = vsel %vm168, %v2334, 0
  %2341 = vmatprep.subr.bf16.mxu0 0
  %2342 = vmatpush1.bf16.msra.mxu0 0
  %2343 = vmatprep.subr.bf16.mxu0 0
  %2344 = vmatpush1.bf16.msra.mxu0 0
  %2345 = vmatprep.subr.bf16.mxu0 0
  %2346 = vmatpush1.bf16.msra.mxu0 0
  %2347 = vmatprep.subr.bf16.mxu0 0
  %2348 = vmatpush1.bf16.msra.mxu0 0
  %2349 = vmatprep.subr.bf16.mxu0 0
  %2350 = vmatpush1.bf16.msra.mxu0 0
  %2351 = vmatprep.subr.bf16.mxu0 0
  %2352 = vmatpush1.bf16.msra.mxu0 0
  %2353 = vmatprep.subr.bf16.mxu0 0
  %2354 = vmatpush1.bf16.msra.mxu0 0
  %2355 = vmatprep.subr.bf16.mxu0 0
  %2356 = vmatpush1.bf16.msra.mxu0 %v2339
  %2357 = vmatprep.subr.bf16.mxu0 0
  %2358 = vmatpush2.bf16.msra.mxu0 0
  %2359 = vmatprep.subr.bf16.mxu0 0
  %2360 = vmatpush2.bf16.msra.mxu0 0
  %2361 = vmatprep.subr.bf16.mxu0 0
  %2362 = vmatpush2.bf16.msra.mxu0 0
  %2363 = vmatprep.subr.bf16.mxu0 0
  %2364 = vmatpush2.bf16.msra.mxu0 0
  %2365 = vmatprep.subr.bf16.mxu0 0
  %2366 = vmatpush2.bf16.msra.mxu0 0
  %2367 = vmatprep.subr.bf16.mxu0 0
  %2368 = vmatpush2.bf16.msra.mxu0 0
  %2369 = vmatprep.subr.bf16.mxu0 0
  %2370 = vmatpush2.bf16.msra.mxu0 0
  %2371 = vmatprep.subr.bf16.mxu0 0
  %2372 = vmatpush2.bf16.msra.mxu0 0
  %2373 = vmatprep.mubr.bf16.mxu0 0
  %2374 = vmatmul.mubr.bf16.gmra.mxu0 %v2336
  %v2375 = vpop.f32.mrf.mxu0
  %v2376 = vadd.f32 0.0, %v2375
  %v2377 = vpop.f32.mrf.mxu0
  %v2378 = vpop.f32.mrf.mxu0
  %v2379 = vpop.f32.mrf.mxu0
  %2380 = vdwg.mxu0
  %2381 = vrot.lane.b32.xlu0 %v1766, 48
  %v2382 = vpop.permute.xlu0 %2381
  %v2384 = vsel %vm164, %v2332, 0
  %v2387 = vsel %vm168, %v2382, 0
  %2389 = vmatprep.subr.bf16.mxu0 0
  %2390 = vmatpush1.bf16.msra.mxu0 0
  %2391 = vmatprep.subr.bf16.mxu0 0
  %2392 = vmatpush1.bf16.msra.mxu0 0
  %2393 = vmatprep.subr.bf16.mxu0 0
  %2394 = vmatpush1.bf16.msra.mxu0 0
  %2395 = vmatprep.subr.bf16.mxu0 0
  %2396 = vmatpush1.bf16.msra.mxu0 0
  %2397 = vmatprep.subr.bf16.mxu0 0
  %2398 = vmatpush1.bf16.msra.mxu0 0
  %2399 = vmatprep.subr.bf16.mxu0 0
  %2400 = vmatpush1.bf16.msra.mxu0 0
  %2401 = vmatprep.subr.bf16.mxu0 0
  %2402 = vmatpush1.bf16.msra.mxu0 0
  %2403 = vmatprep.subr.bf16.mxu0 0
  %2404 = vmatpush1.bf16.msra.mxu0 %v2387
  %2405 = vmatprep.subr.bf16.mxu0 0
  %2406 = vmatpush2.bf16.msra.mxu0 0
  %2407 = vmatprep.subr.bf16.mxu0 0
  %2408 = vmatpush2.bf16.msra.mxu0 0
  %2409 = vmatprep.subr.bf16.mxu0 0
  %2410 = vmatpush2.bf16.msra.mxu0 0
  %2411 = vmatprep.subr.bf16.mxu0 0
  %2412 = vmatpush2.bf16.msra.mxu0 0
  %2413 = vmatprep.subr.bf16.mxu0 0
  %2414 = vmatpush2.bf16.msra.mxu0 0
  %2415 = vmatprep.subr.bf16.mxu0 0
  %2416 = vmatpush2.bf16.msra.mxu0 0
  %2417 = vmatprep.subr.bf16.mxu0 0
  %2418 = vmatpush2.bf16.msra.mxu0 0
  %2419 = vmatprep.subr.bf16.mxu0 0
  %2420 = vmatpush2.bf16.msra.mxu0 0
  %2421 = vmatprep.mubr.bf16.mxu0 0
  %2422 = vmatmul.mubr.bf16.gmra.mxu0 %v2384
  %v2423 = vpop.f32.mrf.mxu0
  %v2424 = vadd.f32 0.0, %v2423
  %v2425 = vpop.f32.mrf.mxu0
  %v2426 = vpop.f32.mrf.mxu0
  %v2427 = vpop.f32.mrf.mxu0
  %2428 = vdwg.mxu0
  %2429 = vrot.lane.b32.xlu0 %v1765, 104
  %v2430 = vpop.permute.xlu0 %2429
  %2431 = vrot.lane.b32.xlu0 %v1765, 72
  %v2432 = vpop.permute.xlu0 %2431
  %v2434 = vsel %vm164, %v2430, 0
  %v2437 = vsel %vm164, %v2432, 0
  %2439 = vmatprep.subr.bf16.mxu0 0
  %2440 = vmatpush1.bf16.xpose.msra.mxu0 0
  %2441 = vmatprep.subr.bf16.mxu0 0
  %2442 = vmatpush1.bf16.xpose.msra.mxu0 0
  %2443 = vmatprep.subr.bf16.mxu0 0
  %2444 = vmatpush1.bf16.xpose.msra.mxu0 0
  %2445 = vmatprep.subr.bf16.mxu0 0
  %2446 = vmatpush1.bf16.xpose.msra.mxu0 0
  %2447 = vmatprep.subr.bf16.mxu0 0
  %2448 = vmatpush1.bf16.xpose.msra.mxu0 0
  %2449 = vmatprep.subr.bf16.mxu0 0
  %2450 = vmatpush1.bf16.xpose.msra.mxu0 0
  %2451 = vmatprep.subr.bf16.mxu0 0
  %2452 = vmatpush1.bf16.xpose.msra.mxu0 0
  %2453 = vmatprep.subr.bf16.mxu0 0
  %2454 = vmatpush1.bf16.xpose.msra.mxu0 %v2437
  %2455 = vmatprep.subr.bf16.mxu0 0
  %2456 = vmatpush2.bf16.xpose.msra.mxu0 0
  %2457 = vmatprep.subr.bf16.mxu0 0
  %2458 = vmatpush2.bf16.xpose.msra.mxu0 0
  %2459 = vmatprep.subr.bf16.mxu0 0
  %2460 = vmatpush2.bf16.xpose.msra.mxu0 0
  %2461 = vmatprep.subr.bf16.mxu0 0
  %2462 = vmatpush2.bf16.xpose.msra.mxu0 0
  %2463 = vmatprep.subr.bf16.mxu0 0
  %2464 = vmatpush2.bf16.xpose.msra.mxu0 0
  %2465 = vmatprep.subr.bf16.mxu0 0
  %2466 = vmatpush2.bf16.xpose.msra.mxu0 0
  %2467 = vmatprep.subr.bf16.mxu0 0
  %2468 = vmatpush2.bf16.xpose.msra.mxu0 0
  %2469 = vmatprep.subr.bf16.mxu0 0
  %2470 = vmatpush2.bf16.xpose.msra.mxu0 0
  %2471 = vmatprep.mubr.bf16.mxu0 0
  %2472 = vmatmul.mubr.bf16.gmra.mxu0 %v2434
  %v2473 = vpop.f32.mrf.mxu0
  %v2474 = vadd.f32 0.0, %v2473
  %v2475 = vpop.f32.mrf.mxu0
  %v2476 = vpop.f32.mrf.mxu0
  %v2477 = vpop.f32.mrf.mxu0
  %2478 = vdwg.mxu0
  %2479 = vrot.lane.b32.xlu0 %v1766, 104
  %v2480 = vpop.permute.xlu0 %2479
  %2481 = vrot.lane.b32.xlu0 %v1766, 72
  %v2482 = vpop.permute.xlu0 %2481
  %v2484 = vsel %vm164, %v2480, 0
  %v2487 = vsel %vm164, %v2482, 0
  %2489 = vmatprep.subr.bf16.mxu0 0
  %2490 = vmatpush1.bf16.xpose.msra.mxu0 0
  %2491 = vmatprep.subr.bf16.mxu0 0
  %2492 = vmatpush1.bf16.xpose.msra.mxu0 0
  %2493 = vmatprep.subr.bf16.mxu0 0
  %2494 = vmatpush1.bf16.xpose.msra.mxu0 0
  %2495 = vmatprep.subr.bf16.mxu0 0
  %2496 = vmatpush1.bf16.xpose.msra.mxu0 0
  %2497 = vmatprep.subr.bf16.mxu0 0
  %2498 = vmatpush1.bf16.xpose.msra.mxu0 0
  %2499 = vmatprep.subr.bf16.mxu0 0
  %2500 = vmatpush1.bf16.xpose.msra.mxu0 0
  %2501 = vmatprep.subr.bf16.mxu0 0
  %2502 = vmatpush1.bf16.xpose.msra.mxu0 0
  %2503 = vmatprep.subr.bf16.mxu0 0
  %2504 = vmatpush1.bf16.xpose.msra.mxu0 %v2487
  %2505 = vmatprep.subr.bf16.mxu0 0
  %2506 = vmatpush2.bf16.xpose.msra.mxu0 0
  %2507 = vmatprep.subr.bf16.mxu0 0
  %2508 = vmatpush2.bf16.xpose.msra.mxu0 0
  %2509 = vmatprep.subr.bf16.mxu0 0
  %2510 = vmatpush2.bf16.xpose.msra.mxu0 0
  %2511 = vmatprep.subr.bf16.mxu0 0
  %2512 = vmatpush2.bf16.xpose.msra.mxu0 0
  %2513 = vmatprep.subr.bf16.mxu0 0
  %2514 = vmatpush2.bf16.xpose.msra.mxu0 0
  %2515 = vmatprep.subr.bf16.mxu0 0
  %2516 = vmatpush2.bf16.xpose.msra.mxu0 0
  %2517 = vmatprep.subr.bf16.mxu0 0
  %2518 = vmatpush2.bf16.xpose.msra.mxu0 0
  %2519 = vmatprep.subr.bf16.mxu0 0
  %2520 = vmatpush2.bf16.xpose.msra.mxu0 0
  %2521 = vmatprep.mubr.bf16.mxu0 0
  %2522 = vmatmul.mubr.bf16.gmra.mxu0 %v2484
  %v2523 = vpop.f32.mrf.mxu0
  %v2524 = vadd.f32 0.0, %v2523
  %v2525 = vpop.f32.mrf.mxu0
  %v2526 = vpop.f32.mrf.mxu0
  %v2527 = vpop.f32.mrf.mxu0
  %2528 = vdwg.mxu0
  %v2529 = vmul.f32 %v2474, 0.35355338
  %v2530 = vmul.f32 %v2524, 0.35355338
  %v2531 = vsel %vm164, %v2529, -inf
  %2532 = vmax.xlane.f32.xlu0 %v2531
  %v2533 = vpop.xlane.xlu0 %2532
  %v2534 = vsel %vm164, %v2530, -inf
  %2535 = vmax.xlane.f32.xlu0 %v2534
  %v2536 = vpop.xlane.xlu0 %2535
  %v2537 = vsub.f32 %v2529, %v2533
  %v2538 = vsub.f32 %v2530, %v2536
  %v2539 = vmul.f32 %v2537, 1.442695
  %v2540 = vpow.pop %v2539
  %v2541 = vmul.f32 %v2538, 1.442695
  %v2542 = vpow.pop %v2541
  %v2543 = vsel %vm164, %v2540, 0.0
  %2544 = vadd.xlane.f32.xlu0 %v2543
  %v2545 = vpop.xlane.xlu0 %2544
  %v2546 = vsel %vm164, %v2542, 0.0
  %2547 = vadd.xlane.f32.xlu0 %v2546
  %v2548 = vpop.xlane.xlu0 %2547
  %v2549 = vrcp.pop %v2545
  %v2550 = vrcp.pop %v2548
  %v2551 = vmul.f32 %v2540, %v2549
  %v2552 = vmul.f32 %v2542, %v2550
  %v2553 = vpack.c.bf16 %v2551, %v2551
  %v2554 = vpack.c.bf16 %v2552, %v2552
  %2555 = vrot.lane.b32.xlu0 %v1765, 40
  %v2556 = vpop.permute.xlu0 %2555
  %v2558 = vsel %vm164, %v2553, 0
  %v2561 = vsel %vm168, %v2556, 0
  %2563 = vmatprep.subr.bf16.mxu0 0
  %2564 = vmatpush1.bf16.msra.mxu0 0
  %2565 = vmatprep.subr.bf16.mxu0 0
  %2566 = vmatpush1.bf16.msra.mxu0 0
  %2567 = vmatprep.subr.bf16.mxu0 0
  %2568 = vmatpush1.bf16.msra.mxu0 0
  %2569 = vmatprep.subr.bf16.mxu0 0
  %2570 = vmatpush1.bf16.msra.mxu0 0
  %2571 = vmatprep.subr.bf16.mxu0 0
  %2572 = vmatpush1.bf16.msra.mxu0 0
  %2573 = vmatprep.subr.bf16.mxu0 0
  %2574 = vmatpush1.bf16.msra.mxu0 0
  %2575 = vmatprep.subr.bf16.mxu0 0
  %2576 = vmatpush1.bf16.msra.mxu0 0
  %2577 = vmatprep.subr.bf16.mxu0 0
  %2578 = vmatpush1.bf16.msra.mxu0 %v2561
  %2579 = vmatprep.subr.bf16.mxu0 0
  %2580 = vmatpush2.bf16.msra.mxu0 0
  %2581 = vmatprep.subr.bf16.mxu0 0
  %2582 = vmatpush2.bf16.msra.mxu0 0
  %2583 = vmatprep.subr.bf16.mxu0 0
  %2584 = vmatpush2.bf16.msra.mxu0 0
  %2585 = vmatprep.subr.bf16.mxu0 0
  %2586 = vmatpush2.bf16.msra.mxu0 0
  %2587 = vmatprep.subr.bf16.mxu0 0
  %2588 = vmatpush2.bf16.msra.mxu0 0
  %2589 = vmatprep.subr.bf16.mxu0 0
  %2590 = vmatpush2.bf16.msra.mxu0 0
  %2591 = vmatprep.subr.bf16.mxu0 0
  %2592 = vmatpush2.bf16.msra.mxu0 0
  %2593 = vmatprep.subr.bf16.mxu0 0
  %2594 = vmatpush2.bf16.msra.mxu0 0
  %2595 = vmatprep.mubr.bf16.mxu0 0
  %2596 = vmatmul.mubr.bf16.gmra.mxu0 %v2558
  %v2597 = vpop.f32.mrf.mxu0
  %v2598 = vadd.f32 0.0, %v2597
  %v2599 = vpop.f32.mrf.mxu0
  %v2600 = vpop.f32.mrf.mxu0
  %v2601 = vpop.f32.mrf.mxu0
  %2602 = vdwg.mxu0
  %2603 = vrot.lane.b32.xlu0 %v1766, 40
  %v2604 = vpop.permute.xlu0 %2603
  %v2606 = vsel %vm164, %v2554, 0
  %v2609 = vsel %vm168, %v2604, 0
  %2611 = vmatprep.subr.bf16.mxu0 0
  %2612 = vmatpush1.bf16.msra.mxu0 0
  %2613 = vmatprep.subr.bf16.mxu0 0
  %2614 = vmatpush1.bf16.msra.mxu0 0
  %2615 = vmatprep.subr.bf16.mxu0 0
  %2616 = vmatpush1.bf16.msra.mxu0 0
  %2617 = vmatprep.subr.bf16.mxu0 0
  %2618 = vmatpush1.bf16.msra.mxu0 0
  %2619 = vmatprep.subr.bf16.mxu0 0
  %2620 = vmatpush1.bf16.msra.mxu0 0
  %2621 = vmatprep.subr.bf16.mxu0 0
  %2622 = vmatpush1.bf16.msra.mxu0 0
  %2623 = vmatprep.subr.bf16.mxu0 0
  %2624 = vmatpush1.bf16.msra.mxu0 0
  %2625 = vmatprep.subr.bf16.mxu0 0
  %2626 = vmatpush1.bf16.msra.mxu0 %v2609
  %2627 = vmatprep.subr.bf16.mxu0 0
  %2628 = vmatpush2.bf16.msra.mxu0 0
  %2629 = vmatprep.subr.bf16.mxu0 0
  %2630 = vmatpush2.bf16.msra.mxu0 0
  %2631 = vmatprep.subr.bf16.mxu0 0
  %2632 = vmatpush2.bf16.msra.mxu0 0
  %2633 = vmatprep.subr.bf16.mxu0 0
  %2634 = vmatpush2.bf16.msra.mxu0 0
  %2635 = vmatprep.subr.bf16.mxu0 0
  %2636 = vmatpush2.bf16.msra.mxu0 0
  %2637 = vmatprep.subr.bf16.mxu0 0
  %2638 = vmatpush2.bf16.msra.mxu0 0
  %2639 = vmatprep.subr.bf16.mxu0 0
  %2640 = vmatpush2.bf16.msra.mxu0 0
  %2641 = vmatprep.subr.bf16.mxu0 0
  %2642 = vmatpush2.bf16.msra.mxu0 0
  %2643 = vmatprep.mubr.bf16.mxu0 0
  %2644 = vmatmul.mubr.bf16.gmra.mxu0 %v2606
  %v2645 = vpop.f32.mrf.mxu0
  %v2646 = vadd.f32 0.0, %v2645
  %v2647 = vpop.f32.mrf.mxu0
  %v2648 = vpop.f32.mrf.mxu0
  %v2649 = vpop.f32.mrf.mxu0
  %2650 = vdwg.mxu0
  %2653 = vrot.lane.b32.xlu0 %v2154, 8
  %v2654 = vpop.permute.xlu0 %2653
  %2655 = vrot.lane.b32.xlu0 %v2202, 8
  %v2656 = vpop.permute.xlu0 %2655
  %2661 = vrot.lane.b32.xlu0 %v2376, 16
  %v2662 = vpop.permute.xlu0 %2661
  %2663 = vrot.lane.b32.xlu0 %v2424, 16
  %v2664 = vpop.permute.xlu0 %2663
  %2669 = vrot.lane.b32.xlu0 %v2598, 24
  %v2670 = vpop.permute.xlu0 %2669
  %2671 = vrot.lane.b32.xlu0 %v2646, 24
  %v2672 = vpop.permute.xlu0 %2671
  %v2675 = vsel %vm164, %v1932, %v2654
  %v2676 = vsel %vm164, %v1980, %v2656
  %v2677 = vsel %vm227, %v2675, %v2662
  %v2678 = vsel %vm227, %v2676, %v2664
  %v2679 = vsel %vm1332, %v2677, %v2670
  %v2680 = vsel %vm1332, %v2678, %v2672
  %v2681 = vpack.c.bf16 %v2680, %v2679
  %s2682 = scalar_lea.vmem %s11, 16
  %v2683 = vld [vmem:[%s2682] sm:$0xf]
  %v2684 = vld [vmem:[%s2682 + $0x4] sm:$0xf]
  %v2685 = vld [vmem:[%s2682 + $0x8] sm:$0xf]
  %v2686 = vld [vmem:[%s2682 + $0xc] sm:$0xf]
  %s2687 = scalar_lea.vmem %s12, 1
  %v2688 = vld [vmem:[%s2687] sm:$0x1]
  %v2690 = vlaneseq
  %v2691 = vshrl.u32 %v2690, 7
  %v2692 = vsub.s32 0, %v2691
  %v2693 = vrot.slane %v2688, %v2692
  %v2699 = vunpack.c.l.b16 %v2683
  %v2700 = vunpack.c.l.b16 %v2684
  %v2701 = vunpack.c.l.b16 %v2685
  %v2702 = vunpack.c.l.b16 %v2686
  %v2703 = vpack.c.b16 %v2700, %v2699
  %v2704 = vpack.c.b16 %v2702, %v2701
  %v2708 = vsel %vm369, %v2681, 0
  %2710 = vmatprep.subr.bf16.mxu0 0
  %2711 = vmatpush1.bf16.msra.mxu0 0
  %2712 = vmatprep.subr.bf16.mxu0 0
  %2713 = vmatpush1.bf16.msra.mxu0 0
  %2714 = vmatprep.subr.bf16.mxu0 0
  %2715 = vmatpush1.bf16.msra.mxu0 0
  %2716 = vmatprep.subr.bf16.mxu0 0
  %2717 = vmatpush1.bf16.msra.mxu0 0
  %2718 = vmatprep.subr.bf16.mxu0 0
  %2719 = vmatpush1.bf16.msra.mxu0 0
  %2720 = vmatprep.subr.bf16.mxu0 0
  %2721 = vmatpush1.bf16.msra.mxu0 0
  %2722 = vmatprep.subr.bf16.mxu0 0
  %2723 = vmatpush1.bf16.msra.mxu0 %v2704
  %2724 = vmatprep.subr.bf16.mxu0 0
  %2725 = vmatpush1.bf16.msra.mxu0 %v2703
  %2726 = vmatprep.subr.bf16.mxu0 0
  %2727 = vmatpush2.bf16.msra.mxu0 0
  %2728 = vmatprep.subr.bf16.mxu0 0
  %2729 = vmatpush2.bf16.msra.mxu0 0
  %2730 = vmatprep.subr.bf16.mxu0 0
  %2731 = vmatpush2.bf16.msra.mxu0 0
  %2732 = vmatprep.subr.bf16.mxu0 0
  %2733 = vmatpush2.bf16.msra.mxu0 0
  %2734 = vmatprep.subr.bf16.mxu0 0
  %2735 = vmatpush2.bf16.msra.mxu0 0
  %2736 = vmatprep.subr.bf16.mxu0 0
  %2737 = vmatpush2.bf16.msra.mxu0 0
  %2738 = vmatprep.subr.bf16.mxu0 0
  %2739 = vmatpush2.bf16.msra.mxu0 0
  %2740 = vmatprep.subr.bf16.mxu0 0
  %2741 = vmatpush2.bf16.msra.mxu0 0
  %2742 = vmatprep.mubr.bf16.mxu0 0
  %2743 = vmatmul.mubr.bf16.gmra.mxu0 %v2708
  %v2744 = vpop.f32.mrf.mxu0
  %v2745 = vadd.f32 %v2693, %v2744
  %v2746 = vpop.f32.mrf.mxu0
  %v2747 = vpop.f32.mrf.mxu0
  %v2748 = vadd.f32 %v2693, %v2747
  %v2749 = vpop.f32.mrf.mxu0
  %2750 = vdwg.mxu0
  %v2751 = vadd.f32 %v1689, %v2745
  %v2752 = vadd.f32 %v1690, %v2748
  %s2753 = scalar_lea.vmem %s13, 1
  %v2754 = vld [vmem:[%s2753] sm:$0x1]
  %s2755 = scalar_lea.vmem %s14, 1
  %v2756 = vld [vmem:[%s2755] sm:$0x1]
  %v2757 = vsel %vm369, %v2751, 0.0
  %2758 = vadd.xlane.f32.xlu0 %v2757
  %v2759 = vpop.xlane.xlu0 %2758
  %v2760 = vsel %vm369, %v2752, 0.0
  %2761 = vadd.xlane.f32.xlu0 %v2760
  %v2762 = vpop.xlane.xlu0 %2761
  %v2763 = vmul.f32 %v2759, %v1413
  %v2764 = vmul.f32 %v2762, %v1413
  %v2765 = vsub.f32 %v2751, %v2763
  %v2766 = vsub.f32 %v2752, %v2764
  %v2767 = vmul.f32 %v2765, %v2765
  %v2768 = vmul.f32 %v2766, %v2766
  %v2769 = vsel %vm369, %v2767, 0.0
  %2770 = vadd.xlane.f32.xlu0 %v2769
  %v2771 = vpop.xlane.xlu0 %2770
  %v2772 = vsel %vm369, %v2768, 0.0
  %2773 = vadd.xlane.f32.xlu0 %v2772
  %v2774 = vpop.xlane.xlu0 %2773
  %v2775 = vmul.f32 %v2771, %v1413
  %v2776 = vmul.f32 %v2774, %v1413
  %v2777 = vadd.f32 %v2775, 1e-05
  %v2778 = vadd.f32 %v2776, 1e-05
  %v2779 = vrsqrt.pop %v2777
  %v2780 = vrsqrt.pop %v2778
  %v2781 = vmul.f32 %v2765, %v2779
  %v2782 = vmul.f32 %v2766, %v2780
  %v2784 = vlaneseq
  %v2785 = vshrl.u32 %v2784, 7
  %v2786 = vsub.s32 0, %v2785
  %v2787 = vrot.slane %v2754, %v2786
  %v2789 = vmul.f32 %v2781, %v2787
  %v2790 = vmul.f32 %v2782, %v2787
  %v2792 = vlaneseq
  %v2793 = vshrl.u32 %v2792, 7
  %v2794 = vsub.s32 0, %v2793
  %v2795 = vrot.slane %v2756, %v2794
  %v2797 = vadd.f32 %v2789, %v2795
  %v2798 = vadd.f32 %v2790, %v2795
  %v2799 = vpack.c.bf16 %v2798, %v2797
  %s2800 = scalar_lea.vmem %s15, 16
  %v2801 = vld [vmem:[%s2800] sm:$0xf]
  %v2802 = vld [vmem:[%s2800 + $0x4] sm:$0xf]
  %v2803 = vld [vmem:[%s2800 + $0x8] sm:$0xf]
  %v2804 = vld [vmem:[%s2800 + $0xc] sm:$0xf]
  %s2805 = scalar_lea.vmem %s16, 1
  %v2806 = vld [vmem:[%s2805] sm:$0x1]
  %v2808 = vlaneseq
  %v2809 = vshrl.u32 %v2808, 7
  %v2810 = vsub.s32 0, %v2809
  %v2811 = vrot.slane %v2806, %v2810
  %v2817 = vunpack.c.l.b16 %v2801
  %v2818 = vunpack.c.l.b16 %v2802
  %v2819 = vunpack.c.l.b16 %v2803
  %v2820 = vunpack.c.l.b16 %v2804
  %v2821 = vpack.c.b16 %v2818, %v2817
  %v2822 = vpack.c.b16 %v2820, %v2819
  %v2826 = vsel %vm369, %v2799, 0
  %2828 = vmatprep.subr.bf16.mxu0 0
  %2829 = vmatpush1.bf16.msra.mxu0 0
  %2830 = vmatprep.subr.bf16.mxu0 0
  %2831 = vmatpush1.bf16.msra.mxu0 0
  %2832 = vmatprep.subr.bf16.mxu0 0
  %2833 = vmatpush1.bf16.msra.mxu0 0
  %2834 = vmatprep.subr.bf16.mxu0 0
  %2835 = vmatpush1.bf16.msra.mxu0 0
  %2836 = vmatprep.subr.bf16.mxu0 0
  %2837 = vmatpush1.bf16.msra.mxu0 0
  %2838 = vmatprep.subr.bf16.mxu0 0
  %2839 = vmatpush1.bf16.msra.mxu0 0
  %2840 = vmatprep.subr.bf16.mxu0 0
  %2841 = vmatpush1.bf16.msra.mxu0 %v2822
  %2842 = vmatprep.subr.bf16.mxu0 0
  %2843 = vmatpush1.bf16.msra.mxu0 %v2821
  %2844 = vmatprep.subr.bf16.mxu0 0
  %2845 = vmatpush2.bf16.msra.mxu0 0
  %2846 = vmatprep.subr.bf16.mxu0 0
  %2847 = vmatpush2.bf16.msra.mxu0 0
  %2848 = vmatprep.subr.bf16.mxu0 0
  %2849 = vmatpush2.bf16.msra.mxu0 0
  %2850 = vmatprep.subr.bf16.mxu0 0
  %2851 = vmatpush2.bf16.msra.mxu0 0
  %2852 = vmatprep.subr.bf16.mxu0 0
  %2853 = vmatpush2.bf16.msra.mxu0 0
  %2854 = vmatprep.subr.bf16.mxu0 0
  %2855 = vmatpush2.bf16.msra.mxu0 0
  %2856 = vmatprep.subr.bf16.mxu0 0
  %2857 = vmatpush2.bf16.msra.mxu0 0
  %2858 = vmatprep.subr.bf16.mxu0 0
  %2859 = vmatpush2.bf16.msra.mxu0 0
  %2860 = vmatprep.mubr.bf16.mxu0 0
  %2861 = vmatmul.mubr.bf16.gmra.mxu0 %v2826
  %v2862 = vpop.f32.mrf.mxu0
  %v2863 = vadd.f32 %v2811, %v2862
  %v2864 = vpop.f32.mrf.mxu0
  %v2865 = vpop.f32.mrf.mxu0
  %v2866 = vadd.f32 %v2811, %v2865
  %v2867 = vpop.f32.mrf.mxu0
  %2868 = vdwg.mxu0
  %vm2869 = vcmp.gt.f32.partialorder %v2863, 0.0
  %vm2870 = vcmp.gt.f32.partialorder %v2866, 0.0
  %v2871 = vmul.f32 %v2863, 1.442695
  %v2872 = vpow.pop %v2871
  %v2873 = vmul.f32 %v2866, 1.442695
  %v2874 = vpow.pop %v2873
  %v2875 = vsub.f32 %v2872, 1.0
  %v2876 = vsub.f32 %v2874, 1.0
  %v2877 = vmul.f32 %v2875, 1.6732632
  %v2878 = vmul.f32 %v2876, 1.6732632
  %v2879 = vsel %vm2869, %v2863, %v2877
  %v2880 = vsel %vm2870, %v2866, %v2878
  %v2881 = vmul.f32 %v2879, 1.050701
  %v2882 = vmul.f32 %v2880, 1.050701
  %v2883 = vpack.c.bf16 %v2882, %v2881
  %s2884 = scalar_lea.vmem %s17, 64
  %v2885 = vld [vmem:[%s2884] sm:$0xf]
  %v2886 = vld [vmem:[%s2884 + $0x4] sm:$0xf]
  %v2887 = vld [vmem:[%s2884 + $0x8] sm:$0xf]
  %v2888 = vld [vmem:[%s2884 + $0xc] sm:$0xf]
  %v2889 = vld [vmem:[%s2884 + $0x10] sm:$0xf]
  %v2890 = vld [vmem:[%s2884 + $0x14] sm:$0xf]
  %v2891 = vld [vmem:[%s2884 + $0x18] sm:$0xf]
  %v2892 = vld [vmem:[%s2884 + $0x1c] sm:$0xf]
  %v2893 = vld [vmem:[%s2884 + $0x20] sm:$0xf]
  %v2894 = vld [vmem:[%s2884 + $0x24] sm:$0xf]
  %v2895 = vld [vmem:[%s2884 + $0x28] sm:$0xf]
  %v2896 = vld [vmem:[%s2884 + $0x2c] sm:$0xf]
  %v2897 = vld [vmem:[%s2884 + $0x30] sm:$0xf]
  %v2898 = vld [vmem:[%s2884 + $0x34] sm:$0xf]
  %v2899 = vld [vmem:[%s2884 + $0x38] sm:$0xf]
  %v2900 = vld [vmem:[%s2884 + $0x3c] sm:$0xf]
  %s2901 = scalar_lea.vmem %s18, 1
  %v2902 = vld [vmem:[%s2901] sm:$0x1]
  %v2904 = vlaneseq
  %v2905 = vshrl.u32 %v2904, 7
  %v2906 = vsub.s32 0, %v2905
  %v2907 = vrot.slane %v2902, %v2906
  %v2925 = vunpack.c.l.b16 %v2885
  %v2926 = vunpack.c.l.b16 %v2886
  %v2927 = vunpack.c.l.b16 %v2887
  %v2928 = vunpack.c.l.b16 %v2888
  %v2929 = vunpack.c.l.b16 %v2889
  %v2930 = vunpack.c.l.b16 %v2890
  %v2931 = vunpack.c.l.b16 %v2891
  %v2932 = vunpack.c.l.b16 %v2892
  %v2933 = vunpack.c.l.b16 %v2893
  %v2934 = vunpack.c.l.b16 %v2894
  %v2935 = vunpack.c.l.b16 %v2895
  %v2936 = vunpack.c.l.b16 %v2896
  %v2937 = vunpack.c.l.b16 %v2897
  %v2938 = vunpack.c.l.b16 %v2898
  %v2939 = vunpack.c.l.b16 %v2899
  %v2940 = vunpack.c.l.b16 %v2900
  %v2941 = vpack.c.b16 %v2926, %v2925
  %v2942 = vpack.c.b16 %v2928, %v2927
  %v2943 = vpack.c.b16 %v2930, %v2929
  %v2944 = vpack.c.b16 %v2932, %v2931
  %v2945 = vpack.c.b16 %v2934, %v2933
  %v2946 = vpack.c.b16 %v2936, %v2935
  %v2947 = vpack.c.b16 %v2938, %v2937
  %v2948 = vpack.c.b16 %v2940, %v2939
  %2957 = vmatprep.subr.bf16.mxu0 0
  %2958 = vmatpush1.bf16.msra.mxu0 %v2948
  %2959 = vmatprep.subr.bf16.mxu0 0
  %2960 = vmatpush1.bf16.msra.mxu0 %v2947
  %2961 = vmatprep.subr.bf16.mxu0 0
  %2962 = vmatpush1.bf16.msra.mxu0 %v2946
  %2963 = vmatprep.subr.bf16.mxu0 0
  %2964 = vmatpush1.bf16.msra.mxu0 %v2945
  %2965 = vmatprep.subr.bf16.mxu0 0
  %2966 = vmatpush1.bf16.msra.mxu0 %v2944
  %2967 = vmatprep.subr.bf16.mxu0 0
  %2968 = vmatpush1.bf16.msra.mxu0 %v2943
  %2969 = vmatprep.subr.bf16.mxu0 0
  %2970 = vmatpush1.bf16.msra.mxu0 %v2942
  %2971 = vmatprep.subr.bf16.mxu0 0
  %2972 = vmatpush1.bf16.msra.mxu0 %v2941
  %2973 = vmatprep.subr.bf16.mxu0 0
  %2974 = vmatpush2.bf16.msra.mxu0 0
  %2975 = vmatprep.subr.bf16.mxu0 0
  %2976 = vmatpush2.bf16.msra.mxu0 0
  %2977 = vmatprep.subr.bf16.mxu0 0
  %2978 = vmatpush2.bf16.msra.mxu0 0
  %2979 = vmatprep.subr.bf16.mxu0 0
  %2980 = vmatpush2.bf16.msra.mxu0 0
  %2981 = vmatprep.subr.bf16.mxu0 0
  %2982 = vmatpush2.bf16.msra.mxu0 0
  %2983 = vmatprep.subr.bf16.mxu0 0
  %2984 = vmatpush2.bf16.msra.mxu0 0
  %2985 = vmatprep.subr.bf16.mxu0 0
  %2986 = vmatpush2.bf16.msra.mxu0 0
  %2987 = vmatprep.subr.bf16.mxu0 0
  %2988 = vmatpush2.bf16.msra.mxu0 0
  %2989 = vmatprep.mubr.bf16.mxu0 0
  %2990 = vmatmul.mubr.bf16.gmra.mxu0 %v2883
  %v2991 = vpop.f32.mrf.mxu0
  %v2992 = vadd.f32 %v2907, %v2991
  %v2993 = vpop.f32.mrf.mxu0
  %v2994 = vpop.f32.mrf.mxu0
  %v2995 = vadd.f32 %v2907, %v2994
  %v2996 = vpop.f32.mrf.mxu0
  %2997 = vdwg.mxu0
  %v2998 = vadd.f32 %v2797, %v2992
  %v2999 = vadd.f32 %v2798, %v2995
  %s3000 = scalar_lea.vmem %s19, 1
  %v3001 = vld [vmem:[%s3000] sm:$0x1]
  %s3002 = scalar_lea.vmem %s20, 1
  %v3003 = vld [vmem:[%s3002] sm:$0x1]
  %v3004 = vsel %vm369, %v2998, 0.0
  %3005 = vadd.xlane.f32.xlu0 %v3004
  %v3006 = vpop.xlane.xlu0 %3005
  %v3007 = vsel %vm369, %v2999, 0.0
  %3008 = vadd.xlane.f32.xlu0 %v3007
  %v3009 = vpop.xlane.xlu0 %3008
  %v3010 = vmul.f32 %v3006, %v1413
  %v3011 = vmul.f32 %v3009, %v1413
  %v3012 = vsub.f32 %v2998, %v3010
  %v3013 = vsub.f32 %v2999, %v3011
  %v3014 = vmul.f32 %v3012, %v3012
  %v3015 = vmul.f32 %v3013, %v3013
  %v3016 = vsel %vm369, %v3014, 0.0
  %3017 = vadd.xlane.f32.xlu0 %v3016
  %v3018 = vpop.xlane.xlu0 %3017
  %v3019 = vsel %vm369, %v3015, 0.0
  %3020 = vadd.xlane.f32.xlu0 %v3019
  %v3021 = vpop.xlane.xlu0 %3020
  %v3022 = vmul.f32 %v3018, %v1413
  %v3023 = vmul.f32 %v3021, %v1413
  %v3024 = vadd.f32 %v3022, 1e-05
  %v3025 = vadd.f32 %v3023, 1e-05
  %v3026 = vrsqrt.pop %v3024
  %v3027 = vrsqrt.pop %v3025
  %v3028 = vmul.f32 %v3012, %v3026
  %v3029 = vmul.f32 %v3013, %v3027
  %v3031 = vlaneseq
  %v3032 = vshrl.u32 %v3031, 7
  %v3033 = vsub.s32 0, %v3032
  %v3034 = vrot.slane %v3001, %v3033
  %v3036 = vmul.f32 %v3028, %v3034
  %v3037 = vmul.f32 %v3029, %v3034
  %v3039 = vlaneseq
  %v3040 = vshrl.u32 %v3039, 7
  %v3041 = vsub.s32 0, %v3040
  %v3042 = vrot.slane %v3003, %v3041
  %v3044 = vadd.f32 %v3036, %v3042
  %v3045 = vadd.f32 %v3037, %v3042
  %v3046 = vpack.c.bf16 %v3045, %v3044
  %v3047 = vld [vmem:[%s21] sm:$0xf]
  %v3048 = vld [vmem:[%s21 + $0x4] sm:$0xf]
  %v3049 = vld [vmem:[%s21 + $0x8] sm:$0xf]
  %v3050 = vld [vmem:[%s21 + $0xc] sm:$0xf]
  %v3055 = vunpack.c.l.b16 %v3047
  %v3056 = vunpack.c.l.b16 %v3048
  %v3057 = vunpack.c.l.b16 %v3049
  %v3058 = vunpack.c.l.b16 %v3050
  %v3059 = vpack.c.b16 %v3056, %v3055
  %v3060 = vpack.c.b16 %v3058, %v3057
  %v3064 = vsel %vm369, %v3046, 0
  %3066 = vmatprep.subr.bf16.mxu0 0
  %3067 = vmatpush1.bf16.msra.mxu0 0
  %3068 = vmatprep.subr.bf16.mxu0 0
  %3069 = vmatpush1.bf16.msra.mxu0 0
  %3070 = vmatprep.subr.bf16.mxu0 0
  %3071 = vmatpush1.bf16.msra.mxu0 0
  %3072 = vmatprep.subr.bf16.mxu0 0
  %3073 = vmatpush1.bf16.msra.mxu0 0
  %3074 = vmatprep.subr.bf16.mxu0 0
  %3075 = vmatpush1.bf16.msra.mxu0 0
  %3076 = vmatprep.subr.bf16.mxu0 0
  %3077 = vmatpush1.bf16.msra.mxu0 0
  %3078 = vmatprep.subr.bf16.mxu0 0
  %3079 = vmatpush1.bf16.msra.mxu0 %v3060
  %3080 = vmatprep.subr.bf16.mxu0 0
  %3081 = vmatpush1.bf16.msra.mxu0 %v3059
  %3082 = vmatprep.subr.bf16.mxu0 0
  %3083 = vmatpush2.bf16.msra.mxu0 0
  %3084 = vmatprep.subr.bf16.mxu0 0
  %3085 = vmatpush2.bf16.msra.mxu0 0
  %3086 = vmatprep.subr.bf16.mxu0 0
  %3087 = vmatpush2.bf16.msra.mxu0 0
  %3088 = vmatprep.subr.bf16.mxu0 0
  %3089 = vmatpush2.bf16.msra.mxu0 0
  %3090 = vmatprep.subr.bf16.mxu0 0
  %3091 = vmatpush2.bf16.msra.mxu0 0
  %3092 = vmatprep.subr.bf16.mxu0 0
  %3093 = vmatpush2.bf16.msra.mxu0 0
  %3094 = vmatprep.subr.bf16.mxu0 0
  %3095 = vmatpush2.bf16.msra.mxu0 0
  %3096 = vmatprep.subr.bf16.mxu0 0
  %3097 = vmatpush2.bf16.msra.mxu0 0
  %3098 = vmatprep.mubr.bf16.mxu0 0
  %3099 = vmatmul.mubr.bf16.gmra.mxu0 %v3064
  %v3100 = vpop.f32.mrf.mxu0
  %v3101 = vadd.f32 0.0, %v3100
  %v3102 = vpop.f32.mrf.mxu0
  %v3103 = vpop.f32.mrf.mxu0
  %v3104 = vadd.f32 0.0, %v3103
  %v3105 = vpop.f32.mrf.mxu0
  %3106 = vdwg.mxu0
  %v3109 = vcombine.high %v3101, %v3101
  %v3111 = vunpack.c.l.s4 1966171168
  %v3112 = vunpack.c.0.s8 %v3111
  %v3113 = vlaneseq
  %v3114 = vshrl.u32 %v3113, 7
  %v3115 = vsub.s32 %v3112, %v3114
  %v3116 = vrot.slane %v3101, %v3115
  %v3118 = vunpack.c.l.s4 1966171168
  %v3119 = vunpack.c.0.s8 %v3118
  %v3120 = vlaneseq
  %v3121 = vshrl.u32 %v3120, 7
  %v3122 = vsub.s32 %v3119, %v3121
  %v3123 = vrot.slane %v3109, %v3122
  %v3124 = vcombine.high %v3116, %v3116
  %v3125 = vcombine.high %v3123, %v3123
  %v3127 = vunpack.c.l.s4 1966171168
  %v3128 = vunpack.c.0.s8 %v3127
  %v3129 = vlaneseq
  %v3130 = vshrl.u32 %v3129, 7
  %v3131 = vsub.s32 %v3128, %v3130
  %v3132 = vrot.slane %v3116, %v3131
  %v3134 = vunpack.c.l.s4 1966171168
  %v3135 = vunpack.c.0.s8 %v3134
  %v3136 = vlaneseq
  %v3137 = vshrl.u32 %v3136, 7
  %v3138 = vsub.s32 %v3135, %v3137
  %v3139 = vrot.slane %v3123, %v3138
  %v3141 = vunpack.c.l.s4 1966171168
  %v3142 = vunpack.c.0.s8 %v3141
  %v3143 = vlaneseq
  %v3144 = vshrl.u32 %v3143, 7
  %v3145 = vsub.s32 %v3142, %v3144
  %v3146 = vrot.slane %v3124, %v3145
  %v3148 = vunpack.c.l.s4 1966171168
  %v3149 = vunpack.c.0.s8 %v3148
  %v3150 = vlaneseq
  %v3151 = vshrl.u32 %v3150, 7
  %v3152 = vsub.s32 %v3149, %v3151
  %v3153 = vrot.slane %v3125, %v3152
  %v3154 = vcombine.high %v3132, %v3132
  %v3155 = vcombine.high %v3139, %v3139
  %v3156 = vcombine.high %v3146, %v3146
  %v3157 = vcombine.high %v3153, %v3153
  %v3158 = vcombine.high %v3104, %v3104
  %v3160 = vunpack.c.l.s4 1966171168
  %v3161 = vunpack.c.0.s8 %v3160
  %v3162 = vlaneseq
  %v3163 = vshrl.u32 %v3162, 7
  %v3164 = vsub.s32 %v3161, %v3163
  %v3165 = vrot.slane %v3104, %v3164
  %v3167 = vunpack.c.l.s4 1966171168
  %v3168 = vunpack.c.0.s8 %v3167
  %v3169 = vlaneseq
  %v3170 = vshrl.u32 %v3169, 7
  %v3171 = vsub.s32 %v3168, %v3170
  %v3172 = vrot.slane %v3158, %v3171
  %v3173 = vcombine.high %v3165, %v3165
  %v3174 = vcombine.high %v3172, %v3172
  %v3176 = vunpack.c.l.s4 1966171168
  %v3177 = vunpack.c.0.s8 %v3176
  %v3178 = vlaneseq
  %v3179 = vshrl.u32 %v3178, 7
  %v3180 = vsub.s32 %v3177, %v3179
  %v3181 = vrot.slane %v3165, %v3180
  %v3183 = vunpack.c.l.s4 1966171168
  %v3184 = vunpack.c.0.s8 %v3183
  %v3185 = vlaneseq
  %v3186 = vshrl.u32 %v3185, 7
  %v3187 = vsub.s32 %v3184, %v3186
  %v3188 = vrot.slane %v3172, %v3187
  %v3190 = vunpack.c.l.s4 1966171168
  %v3191 = vunpack.c.0.s8 %v3190
  %v3192 = vlaneseq
  %v3193 = vshrl.u32 %v3192, 7
  %v3194 = vsub.s32 %v3191, %v3193
  %v3195 = vrot.slane %v3173, %v3194
  %v3197 = vunpack.c.l.s4 1966171168
  %v3198 = vunpack.c.0.s8 %v3197
  %v3199 = vlaneseq
  %v3200 = vshrl.u32 %v3199, 7
  %v3201 = vsub.s32 %v3198, %v3200
  %v3202 = vrot.slane %v3174, %v3201
  %v3203 = vcombine.high %v3181, %v3181
  %v3204 = vcombine.high %v3188, %v3188
  %v3205 = vcombine.high %v3195, %v3195
  %v3206 = vcombine.high %v3202, %v3202
  %v3207 = vlaneseq
  %v3208 = vshrl.u32 %v3207, 7
  %v3209 = vsub.s32 0, %v3208
  %v3210 = vrot.slane %v3132, %v3209
  %v3211 = vlaneseq
  %v3212 = vshrl.u32 %v3211, 7
  %v3213 = vsub.s32 0, %v3212
  %v3214 = vrot.slane %v3146, %v3213
  %v3215 = vlaneseq
  %v3216 = vshrl.u32 %v3215, 7
  %v3217 = vsub.s32 0, %v3216
  %v3218 = vrot.slane %v3154, %v3217
  %v3219 = vlaneseq
  %v3220 = vshrl.u32 %v3219, 7
  %v3221 = vsub.s32 0, %v3220
  %v3222 = vrot.slane %v3156, %v3221
  %v3223 = vlaneseq
  %v3224 = vshrl.u32 %v3223, 7
  %v3225 = vsub.s32 0, %v3224
  %v3226 = vrot.slane %v3139, %v3225
  %v3227 = vlaneseq
  %v3228 = vshrl.u32 %v3227, 7
  %v3229 = vsub.s32 0, %v3228
  %v3230 = vrot.slane %v3153, %v3229
  %v3231 = vlaneseq
  %v3232 = vshrl.u32 %v3231, 7
  %v3233 = vsub.s32 0, %v3232
  %v3234 = vrot.slane %v3155, %v3233
  %v3235 = vlaneseq
  %v3236 = vshrl.u32 %v3235, 7
  %v3237 = vsub.s32 0, %v3236
  %v3238 = vrot.slane %v3157, %v3237
  %v3239 = vlaneseq
  %v3240 = vshrl.u32 %v3239, 7
  %v3241 = vsub.s32 0, %v3240
  %v3242 = vrot.slane %v3181, %v3241
  %v3243 = vlaneseq
  %v3244 = vshrl.u32 %v3243, 7
  %v3245 = vsub.s32 0, %v3244
  %v3246 = vrot.slane %v3195, %v3245
  %v3247 = vlaneseq
  %v3248 = vshrl.u32 %v3247, 7
  %v3249 = vsub.s32 0, %v3248
  %v3250 = vrot.slane %v3203, %v3249
  %v3251 = vlaneseq
  %v3252 = vshrl.u32 %v3251, 7
  %v3253 = vsub.s32 0, %v3252
  %v3254 = vrot.slane %v3205, %v3253
  %v3255 = vlaneseq
  %v3256 = vshrl.u32 %v3255, 7
  %v3257 = vsub.s32 0, %v3256
  %v3258 = vrot.slane %v3188, %v3257
  %v3259 = vlaneseq
  %v3260 = vshrl.u32 %v3259, 7
  %v3261 = vsub.s32 0, %v3260
  %v3262 = vrot.slane %v3202, %v3261
  %v3263 = vlaneseq
  %v3264 = vshrl.u32 %v3263, 7
  %v3265 = vsub.s32 0, %v3264
  %v3266 = vrot.slane %v3204, %v3265
  %v3267 = vlaneseq
  %v3268 = vshrl.u32 %v3267, 7
  %v3269 = vsub.s32 0, %v3268
  %v3270 = vrot.slane %v3206, %v3269
  %3287 = vrot.lane.b32.xlu0 %v3101, 96
  %v3288 = vpop.permute.xlu0 %3287
  %3289 = vrot.lane.b32.xlu0 %v3104, 96
  %v3290 = vpop.permute.xlu0 %3289
  %v3293 = vadd.f32 %v3210, %v3288
  %v3294 = vadd.f32 %v3214, %v3288
  %v3295 = vadd.f32 %v3218, %v3288
  %v3296 = vadd.f32 %v3222, %v3288
  %v3297 = vadd.f32 %v3226, %v3288
  %v3298 = vadd.f32 %v3230, %v3288
  %v3299 = vadd.f32 %v3234, %v3288
  %v3300 = vadd.f32 %v3238, %v3288
  %v3301 = vadd.f32 %v3242, %v3290
  %v3302 = vadd.f32 %v3246, %v3290
  %v3303 = vadd.f32 %v3250, %v3290
  %v3304 = vadd.f32 %v3254, %v3290
  %v3305 = vadd.f32 %v3258, %v3290
  %v3306 = vadd.f32 %v3262, %v3290
  %v3307 = vadd.f32 %v3266, %v3290
  %v3308 = vadd.f32 %v3270, %v3290
  %v3309 = vld [vmem:[%s22] sm:$0x1]
  %v3311 = vlaneseq
  %v3312 = vshrl.u32 %v3311, 7
  %v3313 = vsub.s32 0, %v3312
  %v3314 = vrot.slane %v3309, %v3313
  %v3316 = vadd.f32 %v3293, %v3314
  %v3317 = vadd.f32 %v3294, %v3314
  %v3318 = vadd.f32 %v3295, %v3314
  %v3319 = vadd.f32 %v3296, %v3314
  %v3320 = vadd.f32 %v3297, %v3314
  %v3321 = vadd.f32 %v3298, %v3314
  %v3322 = vadd.f32 %v3299, %v3314
  %v3323 = vadd.f32 %v3300, %v3314
  %v3324 = vadd.f32 %v3301, %v3314
  %v3325 = vadd.f32 %v3302, %v3314
  %v3326 = vadd.f32 %v3303, %v3314
  %v3327 = vadd.f32 %v3304, %v3314
  %v3328 = vadd.f32 %v3305, %v3314
  %v3329 = vadd.f32 %v3306, %v3314
  %v3330 = vadd.f32 %v3307, %v3314
  %v3331 = vadd.f32 %v3308, %v3314
  %vm3332 = vcmp.gt.f32.partialorder %v3316, 0.0
  %vm3333 = vcmp.gt.f32.partialorder %v3317, 0.0
  %vm3334 = vcmp.gt.f32.partialorder %v3318, 0.0
  %vm3335 = vcmp.gt.f32.partialorder %v3319, 0.0
  %vm3336 = vcmp.gt.f32.partialorder %v3320, 0.0
  %vm3337 = vcmp.gt.f32.partialorder %v3321, 0.0
  %vm3338 = vcmp.gt.f32.partialorder %v3322, 0.0
  %vm3339 = vcmp.gt.f32.partialorder %v3323, 0.0
  %vm3340 = vcmp.gt.f32.partialorder %v3324, 0.0
  %vm3341 = vcmp.gt.f32.partialorder %v3325, 0.0
  %vm3342 = vcmp.gt.f32.partialorder %v3326, 0.0
  %vm3343 = vcmp.gt.f32.partialorder %v3327, 0.0
  %vm3344 = vcmp.gt.f32.partialorder %v3328, 0.0
  %vm3345 = vcmp.gt.f32.partialorder %v3329, 0.0
  %vm3346 = vcmp.gt.f32.partialorder %v3330, 0.0
  %vm3347 = vcmp.gt.f32.partialorder %v3331, 0.0
  %v3348 = vmul.f32 %v3316, 1.442695
  %v3349 = vpow.pop %v3348
  %v3350 = vmul.f32 %v3317, 1.442695
  %v3351 = vpow.pop %v3350
  %v3352 = vmul.f32 %v3318, 1.442695
  %v3353 = vpow.pop %v3352
  %v3354 = vmul.f32 %v3319, 1.442695
  %v3355 = vpow.pop %v3354
  %v3356 = vmul.f32 %v3320, 1.442695
  %v3357 = vpow.pop %v3356
  %v3358 = vmul.f32 %v3321, 1.442695
  %v3359 = vpow.pop %v3358
  %v3360 = vmul.f32 %v3322, 1.442695
  %v3361 = vpow.pop %v3360
  %v3362 = vmul.f32 %v3323, 1.442695
  %v3363 = vpow.pop %v3362
  %v3364 = vmul.f32 %v3324, 1.442695
  %v3365 = vpow.pop %v3364
  %v3366 = vmul.f32 %v3325, 1.442695
  %v3367 = vpow.pop %v3366
  %v3368 = vmul.f32 %v3326, 1.442695
  %v3369 = vpow.pop %v3368
  %v3370 = vmul.f32 %v3327, 1.442695
  %v3371 = vpow.pop %v3370
  %v3372 = vmul.f32 %v3328, 1.442695
  %v3373 = vpow.pop %v3372
  %v3374 = vmul.f32 %v3329, 1.442695
  %v3375 = vpow.pop %v3374
  %v3376 = vmul.f32 %v3330, 1.442695
  %v3377 = vpow.pop %v3376
  %v3378 = vmul.f32 %v3331, 1.442695
  %v3379 = vpow.pop %v3378
  %v3380 = vsub.f32 %v3349, 1.0
  %v3381 = vsub.f32 %v3351, 1.0
  %v3382 = vsub.f32 %v3353, 1.0
  %v3383 = vsub.f32 %v3355, 1.0
  %v3384 = vsub.f32 %v3357, 1.0
  %v3385 = vsub.f32 %v3359, 1.0
  %v3386 = vsub.f32 %v3361, 1.0
  %v3387 = vsub.f32 %v3363, 1.0
  %v3388 = vsub.f32 %v3365, 1.0
  %v3389 = vsub.f32 %v3367, 1.0
  %v3390 = vsub.f32 %v3369, 1.0
  %v3391 = vsub.f32 %v3371, 1.0
  %v3392 = vsub.f32 %v3373, 1.0
  %v3393 = vsub.f32 %v3375, 1.0
  %v3394 = vsub.f32 %v3377, 1.0
  %v3395 = vsub.f32 %v3379, 1.0
  %v3396 = vmul.f32 %v3380, 1.6732632
  %v3397 = vmul.f32 %v3381, 1.6732632
  %v3398 = vmul.f32 %v3382, 1.6732632
  %v3399 = vmul.f32 %v3383, 1.6732632
  %v3400 = vmul.f32 %v3384, 1.6732632
  %v3401 = vmul.f32 %v3385, 1.6732632
  %v3402 = vmul.f32 %v3386, 1.6732632
  %v3403 = vmul.f32 %v3387, 1.6732632
  %v3404 = vmul.f32 %v3388, 1.6732632
  %v3405 = vmul.f32 %v3389, 1.6732632
  %v3406 = vmul.f32 %v3390, 1.6732632
  %v3407 = vmul.f32 %v3391, 1.6732632
  %v3408 = vmul.f32 %v3392, 1.6732632
  %v3409 = vmul.f32 %v3393, 1.6732632
  %v3410 = vmul.f32 %v3394, 1.6732632
  %v3411 = vmul.f32 %v3395, 1.6732632
  %v3412 = vsel %vm3332, %v3316, %v3396
  %v3413 = vsel %vm3333, %v3317, %v3397
  %v3414 = vsel %vm3334, %v3318, %v3398
  %v3415 = vsel %vm3335, %v3319, %v3399
  %v3416 = vsel %vm3336, %v3320, %v3400
  %v3417 = vsel %vm3337, %v3321, %v3401
  %v3418 = vsel %vm3338, %v3322, %v3402
  %v3419 = vsel %vm3339, %v3323, %v3403
  %v3420 = vsel %vm3340, %v3324, %v3404
  %v3421 = vsel %vm3341, %v3325, %v3405
  %v3422 = vsel %vm3342, %v3326, %v3406
  %v3423 = vsel %vm3343, %v3327, %v3407
  %v3424 = vsel %vm3344, %v3328, %v3408
  %v3425 = vsel %vm3345, %v3329, %v3409
  %v3426 = vsel %vm3346, %v3330, %v3410
  %v3427 = vsel %vm3347, %v3331, %v3411
  %v3428 = vmul.f32 %v3412, 1.050701
  %v3429 = vmul.f32 %v3413, 1.050701
  %v3430 = vmul.f32 %v3414, 1.050701
  %v3431 = vmul.f32 %v3415, 1.050701
  %v3432 = vmul.f32 %v3416, 1.050701
  %v3433 = vmul.f32 %v3417, 1.050701
  %v3434 = vmul.f32 %v3418, 1.050701
  %v3435 = vmul.f32 %v3419, 1.050701
  %v3436 = vmul.f32 %v3420, 1.050701
  %v3437 = vmul.f32 %v3421, 1.050701
  %v3438 = vmul.f32 %v3422, 1.050701
  %v3439 = vmul.f32 %v3423, 1.050701
  %v3440 = vmul.f32 %v3424, 1.050701
  %v3441 = vmul.f32 %v3425, 1.050701
  %v3442 = vmul.f32 %v3426, 1.050701
  %v3443 = vmul.f32 %v3427, 1.050701
  %v3444 = vpack.c.bf16 %v3429, %v3428
  %v3445 = vpack.c.bf16 %v3431, %v3430
  %v3446 = vpack.c.bf16 %v3433, %v3432
  %v3447 = vpack.c.bf16 %v3435, %v3434
  %v3448 = vpack.c.bf16 %v3437, %v3436
  %v3449 = vpack.c.bf16 %v3439, %v3438
  %v3450 = vpack.c.bf16 %v3441, %v3440
  %v3451 = vpack.c.bf16 %v3443, %v3442
  %v3452 = vld [vmem:[%s23] sm:$0xf]
  %v3453 = vld [vmem:[%s23 + $0x4] sm:$0xf]
  %v3454 = vld [vmem:[%s23 + $0x8] sm:$0xf]
  %v3455 = vld [vmem:[%s23 + $0xc] sm:$0xf]
  %v3456 = vld [vmem:[%s24] sm:$0x1]
  %v3458 = vlaneseq
  %v3459 = vshrl.u32 %v3458, 7
  %v3460 = vsub.s32 0, %v3459
  %v3461 = vrot.slane %v3456, %v3460
  %v3467 = vunpack.c.l.b16 %v3452
  %v3468 = vunpack.c.l.b16 %v3453
  %v3469 = vunpack.c.l.b16 %v3454
  %v3470 = vunpack.c.l.b16 %v3455
  %v3471 = vpack.c.b16 %v3468, %v3467
  %v3472 = vpack.c.b16 %v3470, %v3469
  %v3476 = vsel %vm369, %v3444, 0
  %v3479 = vsel %vm369, %v3445, 0
  %v3482 = vsel %vm369, %v3446, 0
  %v3485 = vsel %vm369, %v3447, 0
  %v3488 = vsel %vm369, %v3448, 0
  %v3491 = vsel %vm369, %v3449, 0
  %v3494 = vsel %vm369, %v3450, 0
  %v3497 = vsel %vm369, %v3451, 0
  %3499 = vmatprep.subr.bf16.mxu0 0
  %3500 = vmatpush1.bf16.msra.mxu0 0
  %3501 = vmatprep.subr.bf16.mxu0 0
  %3502 = vmatpush1.bf16.msra.mxu0 0
  %3503 = vmatprep.subr.bf16.mxu0 0
  %3504 = vmatpush1.bf16.msra.mxu0 0
  %3505 = vmatprep.subr.bf16.mxu0 0
  %3506 = vmatpush1.bf16.msra.mxu0 0
  %3507 = vmatprep.subr.bf16.mxu0 0
  %3508 = vmatpush1.bf16.msra.mxu0 0
  %3509 = vmatprep.subr.bf16.mxu0 0
  %3510 = vmatpush1.bf16.msra.mxu0 0
  %3511 = vmatprep.subr.bf16.mxu0 0
  %3512 = vmatpush1.bf16.msra.mxu0 %v3472
  %3513 = vmatprep.subr.bf16.mxu0 0
  %3514 = vmatpush1.bf16.msra.mxu0 %v3471
  %3515 = vmatprep.subr.bf16.mxu0 0
  %3516 = vmatpush2.bf16.msra.mxu0 0
  %3517 = vmatprep.subr.bf16.mxu0 0
  %3518 = vmatpush2.bf16.msra.mxu0 0
  %3519 = vmatprep.subr.bf16.mxu0 0
  %3520 = vmatpush2.bf16.msra.mxu0 0
  %3521 = vmatprep.subr.bf16.mxu0 0
  %3522 = vmatpush2.bf16.msra.mxu0 0
  %3523 = vmatprep.subr.bf16.mxu0 0
  %3524 = vmatpush2.bf16.msra.mxu0 0
  %3525 = vmatprep.subr.bf16.mxu0 0
  %3526 = vmatpush2.bf16.msra.mxu0 0
  %3527 = vmatprep.subr.bf16.mxu0 0
  %3528 = vmatpush2.bf16.msra.mxu0 0
  %3529 = vmatprep.subr.bf16.mxu0 0
  %3530 = vmatpush2.bf16.msra.mxu0 0
  %3531 = vmatprep.mubr.bf16.mxu0 0
  %3532 = vmatmul.mubr.bf16.gmra.mxu0 %v3476
  %v3533 = vpop.f32.mrf.mxu0
  %v3534 = vadd.f32 %v3461, %v3533
  %v3535 = vpop.f32.mrf.mxu0
  %v3536 = vpop.f32.mrf.mxu0
  %v3537 = vadd.f32 %v3461, %v3536
  %v3538 = vpop.f32.mrf.mxu0
  %3539 = vmatprep.mubr.bf16.mxu0 0
  %3540 = vmatmul.mubr.bf16.gmra.mxu0 %v3479
  %v3541 = vpop.f32.mrf.mxu0
  %v3542 = vadd.f32 %v3461, %v3541
  %v3543 = vpop.f32.mrf.mxu0
  %v3544 = vpop.f32.mrf.mxu0
  %v3545 = vadd.f32 %v3461, %v3544
  %v3546 = vpop.f32.mrf.mxu0
  %3547 = vmatprep.mubr.bf16.mxu0 0
  %3548 = vmatmul.mubr.bf16.gmra.mxu0 %v3482
  %v3549 = vpop.f32.mrf.mxu0
  %v3550 = vadd.f32 %v3461, %v3549
  %v3551 = vpop.f32.mrf.mxu0
  %v3552 = vpop.f32.mrf.mxu0
  %v3553 = vadd.f32 %v3461, %v3552
  %v3554 = vpop.f32.mrf.mxu0
  %3555 = vmatprep.mubr.bf16.mxu0 0
  %3556 = vmatmul.mubr.bf16.gmra.mxu0 %v3485
  %v3557 = vpop.f32.mrf.mxu0
  %v3558 = vadd.f32 %v3461, %v3557
  %v3559 = vpop.f32.mrf.mxu0
  %v3560 = vpop.f32.mrf.mxu0
  %v3561 = vadd.f32 %v3461, %v3560
  %v3562 = vpop.f32.mrf.mxu0
  %3563 = vmatprep.mubr.bf16.mxu0 0
  %3564 = vmatmul.mubr.bf16.gmra.mxu0 %v3488
  %v3565 = vpop.f32.mrf.mxu0
  %v3566 = vadd.f32 %v3461, %v3565
  %v3567 = vpop.f32.mrf.mxu0
  %v3568 = vpop.f32.mrf.mxu0
  %v3569 = vadd.f32 %v3461, %v3568
  %v3570 = vpop.f32.mrf.mxu0
  %3571 = vmatprep.mubr.bf16.mxu0 0
  %3572 = vmatmul.mubr.bf16.gmra.mxu0 %v3491
  %v3573 = vpop.f32.mrf.mxu0
  %v3574 = vadd.f32 %v3461, %v3573
  %v3575 = vpop.f32.mrf.mxu0
  %v3576 = vpop.f32.mrf.mxu0
  %v3577 = vadd.f32 %v3461, %v3576
  %v3578 = vpop.f32.mrf.mxu0
  %3579 = vmatprep.mubr.bf16.mxu0 0
  %3580 = vmatmul.mubr.bf16.gmra.mxu0 %v3494
  %v3581 = vpop.f32.mrf.mxu0
  %v3582 = vadd.f32 %v3461, %v3581
  %v3583 = vpop.f32.mrf.mxu0
  %v3584 = vpop.f32.mrf.mxu0
  %v3585 = vadd.f32 %v3461, %v3584
  %v3586 = vpop.f32.mrf.mxu0
  %3587 = vmatprep.mubr.bf16.mxu0 0
  %3588 = vmatmul.mubr.bf16.gmra.mxu0 %v3497
  %v3589 = vpop.f32.mrf.mxu0
  %v3590 = vadd.f32 %v3461, %v3589
  %v3591 = vpop.f32.mrf.mxu0
  %v3592 = vpop.f32.mrf.mxu0
  %v3593 = vadd.f32 %v3461, %v3592
  %v3594 = vpop.f32.mrf.mxu0
  %3595 = vdwg.mxu0
  %vm3596 = vcmask 39936
  %3597 = vst.msk [vmem:[%s25] sm:$0xff] %vm3596, %v3534
  %3598 = vst.msk [vmem:[%s25 + $0x8] sm:$0xff] %vm3596, %v3537
  %3599 = vst.msk [vmem:[%s25 + $0x10] sm:$0xff] %vm3596, %v3542
  %3600 = vst.msk [vmem:[%s25 + $0x18] sm:$0xff] %vm3596, %v3545
  %3601 = vst.msk [vmem:[%s25 + $0x20] sm:$0xff] %vm3596, %v3550
  %3602 = vst.msk [vmem:[%s25 + $0x28] sm:$0xff] %vm3596, %v3553
  %3603 = vst.msk [vmem:[%s25 + $0x30] sm:$0xff] %vm3596, %v3558
  %3604 = vst.msk [vmem:[%s25 + $0x38] sm:$0xff] %vm3596, %v3561
  %3605 = vst.msk [vmem:[%s25 + $0x40] sm:$0xff] %vm3596, %v3566
  %3606 = vst.msk [vmem:[%s25 + $0x48] sm:$0xff] %vm3596, %v3569
  %3607 = vst.msk [vmem:[%s25 + $0x50] sm:$0xff] %vm3596, %v3574
  %3608 = vst.msk [vmem:[%s25 + $0x58] sm:$0xff] %vm3596, %v3577
  %3609 = vst.msk [vmem:[%s25 + $0x60] sm:$0xff] %vm3596, %v3582
  %3610 = vst.msk [vmem:[%s25 + $0x68] sm:$0xff] %vm3596, %v3585
  %3611 = vst.msk [vmem:[%s25 + $0x70] sm:$0xff] %vm3596, %v3590
  %3612 = vst.msk [vmem:[%s25 + $0x78] sm:$0xff] %vm3596, %v3593
  // Predicated region
  $region102: #{forward.1} parent=0 // pred_check
    _
  $region103: #{forward.1} parent=0 // pred_check_branch
    %3614 = sbr.rel (0) target = $region105
  $region104: #{forward.1} parent=0 // pred_region
    _
  $region105: #{forward.1} parent=0 // pred_fallthru
    _
  // Predicated region
  $region106: #{forward.1} parent=0 // pred_check
    _
  $region107: #{forward.1} parent=0 // pred_check_branch
    %3616 = sbr.rel (0) target = $region109
  $region108: #{forward.1} parent=0 // pred_region
    _
  $region109: #{forward.1} parent=0 // pred_fallthru
    _

</llo_original>
